<compile_context>
chip_gen: v6e
topology: v6e:2x2x1
jax: 0.10.0
libtpu: 0.0.40
codegen_flags: <defaults>
</compile_context>

<pallas_src>
import jax
import jax.numpy as jnp
from jax.experimental import pallas as pl
from jax.experimental.pallas import tpu as pltpu


def _complex_conv3d_kernel(x_ref, w_ref, o_ref):
    # x_ref: (1, tDp, Hp, Wp, 2C)   halo'd input tile (compute dtype)
    # w_ref: (K, 2Fp)               im2col-packed complex weights
    # o_ref: (1, tD, H, W, 2Fp)     f32 output tile, 2Fp lane-dense (x128)
    _, tD, H, W, Fp2 = o_ref.shape
    _, tDp, Hp, Wp, C2 = x_ref.shape
    kD, kH, kW = tDp - tD + 1, Hp - H + 1, Wp - W + 1
    K = kD * kH * kW * C2

    w = w_ref[...]  # (K, 2Fp) -- stays resident across the whole tile

    # Row-chunk along H so the f32 accumulator stays within a few vregs.
    tH = H
    while tH > 1 and tH * W > 256 and tH % 2 == 0:
        tH //= 2
    nH = H // tH

    for od in range(tD):
        for hb in range(nH):
            oh = hb * tH
            # im2col: concatenate shifted Ref-view slices along the channel
            # axis (tap-major, re/im-channel-minor -- matches w_ref rows).
            taps = []
            for kd in range(kD):
                for kh in range(kH):
                    for kw in range(kW):
                        taps.append(
                            x_ref[0, od + kd,
                                  oh + kh:oh + kh + tH,
                                  kw:kw + W, :])            # (tH, W, 2C)
            lhs = jnp.concatenate(taps, axis=-1)             # (tH, W, K)
            lhs = lhs.reshape(tH * W, K)
            acc = jnp.dot(lhs, w, preferred_element_type=jnp.float32)
            o_ref[0, od, oh:oh + tH, :, :] = (
                acc.reshape(tH, W, Fp2).astype(o_ref.dtype))


def _pick_tile_d(D, N, pd, plane_in_bytes, plane_out_bytes,
                 budget=4 * 1024 * 1024):
    """Largest D-tile (divisor of D, <= 8) whose halo'd tile fits the VMEM
    budget, preferring >= 4 total grid steps (pipelining + megacore)."""
    cands = [d for d in range(1, min(D, 8) + 1)
             if D % d == 0
             and (d + 2 * pd) * plane_in_bytes + d * plane_out_bytes <= budget]
    if not cands:
        return 1
    good = [d for d in cands if N * (D // d) >= 4]
    return max(good) if good else max(cands)


def complex_pad_conv3d(x, weight, compute_dtype=jnp.bfloat16):
    """Forward of ComplexPadConv3D with default options.

    x:      (N, C, D, H, W, 2) float32
    weight: (F, C, kD, kH, kW, 2) float32
    returns (N, F, D, H, W, 2) float32
    """
    N, C, D, H, W, _ = x.shape
    F, _, kD, kH, kW, _ = weight.shape
    if kD % 2 == 0 or kH % 2 == 0 or kW % 2 == 0:
        # TODO(synk): even kernel sizes / stride>1 (constructor-supported)
        # change the "same" geometry; only the default odd-k, stride-1 case.
        raise NotImplementedError("only odd kernel sizes / stride=1 supported")
    pd, ph, pw = kD // 2, kH // 2, kW // 2

    # ---- pack + pad input: (N,C,D,H,W,2) -> (N, Dp, Hp, Wp, 2C) with channel
    # layout [re_0..re_{C-1}, im_0..im_{C-1}] (one transpose+reshape, one pad).
    x_pack = jnp.transpose(x, (0, 2, 3, 4, 5, 1)).reshape(N, D, H, W, 2 * C)
    x_pack = x_pack.astype(compute_dtype)
    if pd or ph or pw:
        x_pack = jnp.pad(
            x_pack, ((0, 0), (pd, pd), (ph, ph), (pw, pw), (0, 0)),
            mode="symmetric")
    Dp, Hp, Wp = D + 2 * pd, H + 2 * ph, W + 2 * pw

    # ---- pack weights into one im2col matrix (K, 2F):
    #   rows for re input channels: [ w_re | w_im ]
    #   rows for im input channels: [-w_im | w_re ]
    wr = jnp.transpose(weight[..., 0], (2, 3, 4, 1, 0))   # (kD,kH,kW,C,F)
    wi = jnp.transpose(weight[..., 1], (2, 3, 4, 1, 0))
    w_top = jnp.concatenate([wr, wi], axis=-1)            # multiplies x_re
    w_bot = jnp.concatenate([-wi, wr], axis=-1)           # multiplies x_im
    K = kD * kH * kW * 2 * C
    w_pack = jnp.concatenate([w_top, w_bot], axis=-2).reshape(K, 2 * F)
    Fp2 = int(pl.cdiv(2 * F, 128)) * 128                  # lane-dense output
    if Fp2 > 2 * F:
        w_pack = jnp.pad(w_pack, ((0, 0), (0, Fp2 - 2 * F)))
    w_pack = w_pack.astype(compute_dtype)

    # ---- choose the D tile and materialize halo'd, non-overlapping tiles.
    itemsize = jnp.dtype(compute_dtype).itemsize
    plane_in = Hp * Wp * 2 * C * itemsize
    plane_out = H * W * Fp2 * 4
    tD = _pick_tile_d(D, N, pd, plane_in, plane_out)
    nD = D // tD
    tDp = tD + 2 * pd
    x_tiles = jnp.stack(
        [x_pack[:, t * tD: t * tD + tDp] for t in range(nD)], axis=1)
    x_tiles = x_tiles.reshape(N * nD, tDp, Hp, Wp, 2 * C)

    # VMEM budget: double-buffered in/out tiles + weights + in-kernel temps.
    in_tile_b = tDp * plane_in
    out_tile_b = tD * plane_out
    w_b = K * Fp2 * itemsize
    need = 2 * (in_tile_b + out_tile_b) + 2 * w_b + 2 * 256 * (K + Fp2) * 4
    vmem_limit = int(min(max(2 * need, 32 * 1024 * 1024), 64 * 1024 * 1024))

    out = pl.pallas_call(
        _complex_conv3d_kernel,
        out_shape=jax.ShapeDtypeStruct((N * nD, tD, H, W, Fp2), jnp.float32),
        grid=(N, nD),
        in_specs=[
            pl.BlockSpec((1, tDp, Hp, Wp, 2 * C),
                         lambda n, t: (n * nD + t, 0, 0, 0, 0)),
            pl.BlockSpec((K, Fp2), lambda n, t: (0, 0)),
        ],
        out_specs=pl.BlockSpec((1, tD, H, W, Fp2),
                               lambda n, t: (n * nD + t, 0, 0, 0, 0)),
        compiler_params=pltpu.CompilerParams(
            dimension_semantics=("parallel", "parallel"),
            vmem_limit_bytes=vmem_limit),
    )(x_tiles, w_pack)

    # ---- strip lane padding, restore the module's (N, F, D, H, W, 2) layout.
    out = out.reshape(N, D, H, W, Fp2)[..., :2 * F]
    out = out.reshape(N, D, H, W, 2, F)
    return jnp.transpose(out, (0, 5, 1, 2, 3, 4))


def _reference_forward(x, weight):
    """Pure-JAX reference mirroring the PyTorch module (for verification)."""
    F_, C, kD, kH, kW, _ = weight.shape
    pd, ph, pw = kD // 2, kH // 2, kW // 2
    xr, xi = x[..., 0], x[..., 1]
    pads = ((0, 0), (0, 0), (pd, pd), (ph, ph), (pw, pw))
    xr = jnp.pad(xr, pads, mode="symmetric")
    xi = jnp.pad(xi, pads, mode="symmetric")
    wr, wi = weight[..., 0], weight[..., 1]

    def conv(a, b):
        return jax.lax.conv_general_dilated(
            a, b, (1, 1, 1), "VALID",
            dimension_numbers=("NCDHW", "OIDHW", "NCDHW"),
            precision=jax.lax.Precision.HIGHEST)

    out_re = conv(xr, wr) - conv(xi, wi)
    out_im = conv(xi, wr) + conv(xr, wi)
    return jnp.stack([out_re, out_im], axis=-1)


if __name__ == "__main__":
    # Small deterministic example consistent with the module:
    # in_channels=2, filters=4, kernel_size=3, batch=2, spatial 8x8x8.
    N, C, F = 2, 2, 4
    D = H = W = 8
    kD = kH = kW = 3

    key = jax.random.PRNGKey(0)
    kx, kw = jax.random.split(key)
    x = jax.random.normal(kx, (N, C, D, H, W, 2), jnp.float32)

    # Deterministic glorot-like init (stand-in for
    # complex_independent_filters_init(weight, 'glorot')).
    fan_in = C * kD * kH * kW
    fan_out = F * kD * kH * kW
    scale = jnp.sqrt(2.0 / (fan_in + fan_out)).astype(jnp.float32)
    weight = jax.random.normal(kw, (F, C, kD, kH, kW, 2), jnp.float32) * scale
    # TODO(synk): bias / zero_mean / bound_norm projections (disabled by
    # default in the module) are not applied here.

    ref = _reference_forward(x, weight)

    # Tight check on the all-f32 compute path.
    out_f32 = jax.block_until_ready(
        complex_pad_conv3d(x, weight, compute_dtype=jnp.float32))
    assert out_f32.shape == (N, F, D, H, W, 2), out_f32.shape
    assert jnp.all(jnp.isfinite(out_f32))
    err_f32 = float(jnp.max(jnp.abs(out_f32 - ref)))
    assert err_f32 < 5e-4, f"f32 path mismatch vs reference: {err_f32}"

    # Default fast path: bf16 inputs, f32 accumulation.
    out_bf16 = jax.block_until_ready(complex_pad_conv3d(x, weight))
    assert out_bf16.shape == (N, F, D, H, W, 2), out_bf16.shape
    assert jnp.all(jnp.isfinite(out_bf16))
    err_bf16 = float(jnp.max(jnp.abs(out_bf16 - ref)))
    assert err_bf16 < 3e-2, f"bf16 path mismatch vs reference: {err_bf16}"

    print("KERNEL_OK")
</pallas_src>

<mosaic_0001>
module attributes {stable_mosaic.version = 11 : i64} {
  func.func @_complex_conv3d_kernel(%arg0: i32, %arg1: i32, %arg2: memref<1x6x10x10x4xf32, #tpu.memory_space<vmem>>, %arg3: memref<108x128xf32, #tpu.memory_space<vmem>>, %arg4: memref<1x4x8x8x128xf32, #tpu.memory_space<vmem>>) attributes {dimension_semantics = [#tpu.dimension_semantics<parallel>, #tpu.dimension_semantics<parallel>], iteration_bounds = array<i64: 2, 2>, scalar_prefetch = 0 : i64, scratch_operands = 0 : i64, tpu.core_type = #tpu.core_type<tc>, window_params = [{transform_indices = @transform_0, window_bounds = array<i64: 1, 6, 10, 10, 4>}, {pipeline_mode = #tpu.pipeline_mode<synchronous>, transform_indices = @transform_1, window_bounds = array<i64: 108, 128>}, {transform_indices = @transform_2, window_bounds = array<i64: 1, 4, 8, 8, 128>}]} {
    %c0 = arith.constant 0 : index
    %c0_0 = arith.constant 0 : index
    %0 = vector.load %arg3[%c0, %c0_0] : memref<108x128xf32, #tpu.memory_space<vmem>>, vector<108x128xf32>
    %c0_1 = arith.constant 0 : index
    %c0_2 = arith.constant 0 : index
    %c0_3 = arith.constant 0 : index
    %c0_4 = arith.constant 0 : index
    %c0_5 = arith.constant 0 : index
    %1 = vector.load %arg2[%c0_1, %c0_2, %c0_3, %c0_4, %c0_5] : memref<1x6x10x10x4xf32, #tpu.memory_space<vmem>>, vector<1x1x8x8x4xf32>
    %2 = vector.shape_cast %1 : vector<1x1x8x8x4xf32> to vector<8x8x4xf32>
    %c0_6 = arith.constant 0 : index
    %c0_7 = arith.constant 0 : index
    %c0_8 = arith.constant 0 : index
    %c1 = arith.constant 1 : index
    %c0_9 = arith.constant 0 : index
    %3 = vector.load %arg2[%c0_6, %c0_7, %c0_8, %c1, %c0_9] : memref<1x6x10x10x4xf32, #tpu.memory_space<vmem>>, vector<1x1x8x8x4xf32>
    %4 = vector.shape_cast %3 : vector<1x1x8x8x4xf32> to vector<8x8x4xf32>
    %c0_10 = arith.constant 0 : index
    %c0_11 = arith.constant 0 : index
    %c0_12 = arith.constant 0 : index
    %c2 = arith.constant 2 : index
    %c0_13 = arith.constant 0 : index
    %5 = vector.load %arg2[%c0_10, %c0_11, %c0_12, %c2, %c0_13] : memref<1x6x10x10x4xf32, #tpu.memory_space<vmem>>, vector<1x1x8x8x4xf32>
    %6 = vector.shape_cast %5 : vector<1x1x8x8x4xf32> to vector<8x8x4xf32>
    %c0_14 = arith.constant 0 : index
    %c0_15 = arith.constant 0 : index
    %c1_16 = arith.constant 1 : index
    %c0_17 = arith.constant 0 : index
    %c0_18 = arith.constant 0 : index
    %7 = vector.load %arg2[%c0_14, %c0_15, %c1_16, %c0_17, %c0_18] : memref<1x6x10x10x4xf32, #tpu.memory_space<vmem>>, vector<1x1x8x8x4xf32>
    %8 = vector.shape_cast %7 : vector<1x1x8x8x4xf32> to vector<8x8x4xf32>
    %c0_19 = arith.constant 0 : index
    %c0_20 = arith.constant 0 : index
    %c1_21 = arith.constant 1 : index
    %c1_22 = arith.constant 1 : index
    %c0_23 = arith.constant 0 : index
    %9 = vector.load %arg2[%c0_19, %c0_20, %c1_21, %c1_22, %c0_23] : memref<1x6x10x10x4xf32, #tpu.memory_space<vmem>>, vector<1x1x8x8x4xf32>
    %10 = vector.shape_cast %9 : vector<1x1x8x8x4xf32> to vector<8x8x4xf32>
    %c0_24 = arith.constant 0 : index
    %c0_25 = arith.constant 0 : index
    %c1_26 = arith.constant 1 : index
    %c2_27 = arith.constant 2 : index
    %c0_28 = arith.constant 0 : index
    %11 = vector.load %arg2[%c0_24, %c0_25, %c1_26, %c2_27, %c0_28] : memref<1x6x10x10x4xf32, #tpu.memory_space<vmem>>, vector<1x1x8x8x4xf32>
    %12 = vector.shape_cast %11 : vector<1x1x8x8x4xf32> to vector<8x8x4xf32>
    %c0_29 = arith.constant 0 : index
    %c0_30 = arith.constant 0 : index
    %c2_31 = arith.constant 2 : index
    %c0_32 = arith.constant 0 : index
    %c0_33 = arith.constant 0 : index
    %13 = vector.load %arg2[%c0_29, %c0_30, %c2_31, %c0_32, %c0_33] : memref<1x6x10x10x4xf32, #tpu.memory_space<vmem>>, vector<1x1x8x8x4xf32>
    %14 = vector.shape_cast %13 : vector<1x1x8x8x4xf32> to vector<8x8x4xf32>
    %c0_34 = arith.constant 0 : index
    %c0_35 = arith.constant 0 : index
    %c2_36 = arith.constant 2 : index
    %c1_37 = arith.constant 1 : index
    %c0_38 = arith.constant 0 : index
    %15 = vector.load %arg2[%c0_34, %c0_35, %c2_36, %c1_37, %c0_38] : memref<1x6x10x10x4xf32, #tpu.memory_space<vmem>>, vector<1x1x8x8x4xf32>
    %16 = vector.shape_cast %15 : vector<1x1x8x8x4xf32> to vector<8x8x4xf32>
    %c0_39 = arith.constant 0 : index
    %c0_40 = arith.constant 0 : index
    %c2_41 = arith.constant 2 : index
    %c2_42 = arith.constant 2 : index
    %c0_43 = arith.constant 0 : index
    %17 = vector.load %arg2[%c0_39, %c0_40, %c2_41, %c2_42, %c0_43] : memref<1x6x10x10x4xf32, #tpu.memory_space<vmem>>, vector<1x1x8x8x4xf32>
    %18 = vector.shape_cast %17 : vector<1x1x8x8x4xf32> to vector<8x8x4xf32>
    %c0_44 = arith.constant 0 : index
    %c1_45 = arith.constant 1 : index
    %c0_46 = arith.constant 0 : index
    %c0_47 = arith.constant 0 : index
    %c0_48 = arith.constant 0 : index
    %19 = vector.load %arg2[%c0_44, %c1_45, %c0_46, %c0_47, %c0_48] : memref<1x6x10x10x4xf32, #tpu.memory_space<vmem>>, vector<1x1x8x8x4xf32>
    %20 = vector.shape_cast %19 : vector<1x1x8x8x4xf32> to vector<8x8x4xf32>
    %c0_49 = arith.constant 0 : index
    %c1_50 = arith.constant 1 : index
    %c0_51 = arith.constant 0 : index
    %c1_52 = arith.constant 1 : index
    %c0_53 = arith.constant 0 : index
    %21 = vector.load %arg2[%c0_49, %c1_50, %c0_51, %c1_52, %c0_53] : memref<1x6x10x10x4xf32, #tpu.memory_space<vmem>>, vector<1x1x8x8x4xf32>
    %22 = vector.shape_cast %21 : vector<1x1x8x8x4xf32> to vector<8x8x4xf32>
    %c0_54 = arith.constant 0 : index
    %c1_55 = arith.constant 1 : index
    %c0_56 = arith.constant 0 : index
    %c2_57 = arith.constant 2 : index
    %c0_58 = arith.constant 0 : index
    %23 = vector.load %arg2[%c0_54, %c1_55, %c0_56, %c2_57, %c0_58] : memref<1x6x10x10x4xf32, #tpu.memory_space<vmem>>, vector<1x1x8x8x4xf32>
    %24 = vector.shape_cast %23 : vector<1x1x8x8x4xf32> to vector<8x8x4xf32>
    %c0_59 = arith.constant 0 : index
    %c1_60 = arith.constant 1 : index
    %c1_61 = arith.constant 1 : index
    %c0_62 = arith.constant 0 : index
    %c0_63 = arith.constant 0 : index
    %25 = vector.load %arg2[%c0_59, %c1_60, %c1_61, %c0_62, %c0_63] : memref<1x6x10x10x4xf32, #tpu.memory_space<vmem>>, vector<1x1x8x8x4xf32>
    %26 = vector.shape_cast %25 : vector<1x1x8x8x4xf32> to vector<8x8x4xf32>
    %c0_64 = arith.constant 0 : index
    %c1_65 = arith.constant 1 : index
    %c1_66 = arith.constant 1 : index
    %c1_67 = arith.constant 1 : index
    %c0_68 = arith.constant 0 : index
    %27 = vector.load %arg2[%c0_64, %c1_65, %c1_66, %c1_67, %c0_68] : memref<1x6x10x10x4xf32, #tpu.memory_space<vmem>>, vector<1x1x8x8x4xf32>
    %28 = vector.shape_cast %27 : vector<1x1x8x8x4xf32> to vector<8x8x4xf32>
    %c0_69 = arith.constant 0 : index
    %c1_70 = arith.constant 1 : index
    %c1_71 = arith.constant 1 : index
    %c2_72 = arith.constant 2 : index
    %c0_73 = arith.constant 0 : index
    %29 = vector.load %arg2[%c0_69, %c1_70, %c1_71, %c2_72, %c0_73] : memref<1x6x10x10x4xf32, #tpu.memory_space<vmem>>, vector<1x1x8x8x4xf32>
    %30 = vector.shape_cast %29 : vector<1x1x8x8x4xf32> to vector<8x8x4xf32>
    %c0_74 = arith.constant 0 : index
    %c1_75 = arith.constant 1 : index
    %c2_76 = arith.constant 2 : index
    %c0_77 = arith.constant 0 : index
    %c0_78 = arith.constant 0 : index
    %31 = vector.load %arg2[%c0_74, %c1_75, %c2_76, %c0_77, %c0_78] : memref<1x6x10x10x4xf32, #tpu.memory_space<vmem>>, vector<1x1x8x8x4xf32>
    %32 = vector.shape_cast %31 : vector<1x1x8x8x4xf32> to vector<8x8x4xf32>
    %c0_79 = arith.constant 0 : index
    %c1_80 = arith.constant 1 : index
    %c2_81 = arith.constant 2 : index
    %c1_82 = arith.constant 1 : index
    %c0_83 = arith.constant 0 : index
    %33 = vector.load %arg2[%c0_79, %c1_80, %c2_81, %c1_82, %c0_83] : memref<1x6x10x10x4xf32, #tpu.memory_space<vmem>>, vector<1x1x8x8x4xf32>
    %34 = vector.shape_cast %33 : vector<1x1x8x8x4xf32> to vector<8x8x4xf32>
    %c0_84 = arith.constant 0 : index
    %c1_85 = arith.constant 1 : index
    %c2_86 = arith.constant 2 : index
    %c2_87 = arith.constant 2 : index
    %c0_88 = arith.constant 0 : index
    %35 = vector.load %arg2[%c0_84, %c1_85, %c2_86, %c2_87, %c0_88] : memref<1x6x10x10x4xf32, #tpu.memory_space<vmem>>, vector<1x1x8x8x4xf32>
    %36 = vector.shape_cast %35 : vector<1x1x8x8x4xf32> to vector<8x8x4xf32>
    %c0_89 = arith.constant 0 : index
    %c2_90 = arith.constant 2 : index
    %c0_91 = arith.constant 0 : index
    %c0_92 = arith.constant 0 : index
    %c0_93 = arith.constant 0 : index
    %37 = vector.load %arg2[%c0_89, %c2_90, %c0_91, %c0_92, %c0_93] : memref<1x6x10x10x4xf32, #tpu.memory_space<vmem>>, vector<1x1x8x8x4xf32>
    %38 = vector.shape_cast %37 : vector<1x1x8x8x4xf32> to vector<8x8x4xf32>
    %c0_94 = arith.constant 0 : index
    %c2_95 = arith.constant 2 : index
    %c0_96 = arith.constant 0 : index
    %c1_97 = arith.constant 1 : index
    %c0_98 = arith.constant 0 : index
    %39 = vector.load %arg2[%c0_94, %c2_95, %c0_96, %c1_97, %c0_98] : memref<1x6x10x10x4xf32, #tpu.memory_space<vmem>>, vector<1x1x8x8x4xf32>
    %40 = vector.shape_cast %39 : vector<1x1x8x8x4xf32> to vector<8x8x4xf32>
    %c0_99 = arith.constant 0 : index
    %c2_100 = arith.constant 2 : index
    %c0_101 = arith.constant 0 : index
    %c2_102 = arith.constant 2 : index
    %c0_103 = arith.constant 0 : index
    %41 = vector.load %arg2[%c0_99, %c2_100, %c0_101, %c2_102, %c0_103] : memref<1x6x10x10x4xf32, #tpu.memory_space<vmem>>, vector<1x1x8x8x4xf32>
    %42 = vector.shape_cast %41 : vector<1x1x8x8x4xf32> to vector<8x8x4xf32>
    %c0_104 = arith.constant 0 : index
    %c2_105 = arith.constant 2 : index
    %c1_106 = arith.constant 1 : index
    %c0_107 = arith.constant 0 : index
    %c0_108 = arith.constant 0 : index
    %43 = vector.load %arg2[%c0_104, %c2_105, %c1_106, %c0_107, %c0_108] : memref<1x6x10x10x4xf32, #tpu.memory_space<vmem>>, vector<1x1x8x8x4xf32>
    %44 = vector.shape_cast %43 : vector<1x1x8x8x4xf32> to vector<8x8x4xf32>
    %c0_109 = arith.constant 0 : index
    %c2_110 = arith.constant 2 : index
    %c1_111 = arith.constant 1 : index
    %c1_112 = arith.constant 1 : index
    %c0_113 = arith.constant 0 : index
    %45 = vector.load %arg2[%c0_109, %c2_110, %c1_111, %c1_112, %c0_113] : memref<1x6x10x10x4xf32, #tpu.memory_space<vmem>>, vector<1x1x8x8x4xf32>
    %46 = vector.shape_cast %45 : vector<1x1x8x8x4xf32> to vector<8x8x4xf32>
    %c0_114 = arith.constant 0 : index
    %c2_115 = arith.constant 2 : index
    %c1_116 = arith.constant 1 : index
    %c2_117 = arith.constant 2 : index
    %c0_118 = arith.constant 0 : index
    %47 = vector.load %arg2[%c0_114, %c2_115, %c1_116, %c2_117, %c0_118] : memref<1x6x10x10x4xf32, #tpu.memory_space<vmem>>, vector<1x1x8x8x4xf32>
    %48 = vector.shape_cast %47 : vector<1x1x8x8x4xf32> to vector<8x8x4xf32>
    %c0_119 = arith.constant 0 : index
    %c2_120 = arith.constant 2 : index
    %c2_121 = arith.constant 2 : index
    %c0_122 = arith.constant 0 : index
    %c0_123 = arith.constant 0 : index
    %49 = vector.load %arg2[%c0_119, %c2_120, %c2_121, %c0_122, %c0_123] : memref<1x6x10x10x4xf32, #tpu.memory_space<vmem>>, vector<1x1x8x8x4xf32>
    %50 = vector.shape_cast %49 : vector<1x1x8x8x4xf32> to vector<8x8x4xf32>
    %c0_124 = arith.constant 0 : index
    %c2_125 = arith.constant 2 : index
    %c2_126 = arith.constant 2 : index
    %c1_127 = arith.constant 1 : index
    %c0_128 = arith.constant 0 : index
    %51 = vector.load %arg2[%c0_124, %c2_125, %c2_126, %c1_127, %c0_128] : memref<1x6x10x10x4xf32, #tpu.memory_space<vmem>>, vector<1x1x8x8x4xf32>
    %52 = vector.shape_cast %51 : vector<1x1x8x8x4xf32> to vector<8x8x4xf32>
    %c0_129 = arith.constant 0 : index
    %c2_130 = arith.constant 2 : index
    %c2_131 = arith.constant 2 : index
    %c2_132 = arith.constant 2 : index
    %c0_133 = arith.constant 0 : index
    %53 = vector.load %arg2[%c0_129, %c2_130, %c2_131, %c2_132, %c0_133] : memref<1x6x10x10x4xf32, #tpu.memory_space<vmem>>, vector<1x1x8x8x4xf32>
    %54 = vector.shape_cast %53 : vector<1x1x8x8x4xf32> to vector<8x8x4xf32>
    %55 = tpu.concatenate %2, %4, %6, %8, %10, %12, %14, %16, %18, %20, %22, %24, %26, %28, %30, %32 in 2 : vector<8x8x4xf32>, vector<8x8x4xf32>, vector<8x8x4xf32>, vector<8x8x4xf32>, vector<8x8x4xf32>, vector<8x8x4xf32>, vector<8x8x4xf32>, vector<8x8x4xf32>, vector<8x8x4xf32>, vector<8x8x4xf32>, vector<8x8x4xf32>, vector<8x8x4xf32>, vector<8x8x4xf32>, vector<8x8x4xf32>, vector<8x8x4xf32>, vector<8x8x4xf32> -> vector<8x8x64xf32>
    %56 = tpu.concatenate %34, %36, %38, %40, %42, %44, %46, %48, %50, %52, %54 in 2 : vector<8x8x4xf32>, vector<8x8x4xf32>, vector<8x8x4xf32>, vector<8x8x4xf32>, vector<8x8x4xf32>, vector<8x8x4xf32>, vector<8x8x4xf32>, vector<8x8x4xf32>, vector<8x8x4xf32>, vector<8x8x4xf32>, vector<8x8x4xf32> -> vector<8x8x44xf32>
    %57 = tpu.concatenate %55, %56 in 2 : vector<8x8x64xf32>, vector<8x8x44xf32> -> vector<8x8x108xf32>
    %58 = vector.shape_cast %57 : vector<8x8x108xf32> to vector<64x108xf32>
    %cst = arith.constant dense<0.000000e+00> : vector<64x128xf32>
    %59 = tpu.matmul %58, %0, %cst {dimension_numbers = #tpu.dot_dimension_numbers<[1], [0], [0], [1], [0, 0, 1, 1], [], []>} : vector<64x108xf32>, vector<108x128xf32>, vector<64x128xf32> -> vector<64x128xf32>
    %60 = vector.shape_cast %59 : vector<64x128xf32> to vector<8x8x128xf32>
    %c0_134 = arith.constant 0 : index
    %c0_135 = arith.constant 0 : index
    %c0_136 = arith.constant 0 : index
    %c0_137 = arith.constant 0 : index
    %c0_138 = arith.constant 0 : index
    %61 = vector.load %arg4[%c0_134, %c0_135, %c0_136, %c0_137, %c0_138] : memref<1x4x8x8x128xf32, #tpu.memory_space<vmem>>, vector<1x1x8x8x128xf32>
    %62 = vector.shape_cast %61 : vector<1x1x8x8x128xf32> to vector<8x8x128xf32>
    %63 = vector.shape_cast %60 : vector<8x8x128xf32> to vector<1x1x8x8x128xf32>
    tpu.vector_store %arg4[%c0_134, %c0_135, %c0_136, %c0_137, %c0_138], %63 {strides = array<i32>} : memref<1x4x8x8x128xf32, #tpu.memory_space<vmem>>, vector<1x1x8x8x128xf32>,
    %c0_139 = arith.constant 0 : index
    %c1_140 = arith.constant 1 : index
    %c0_141 = arith.constant 0 : index
    %c0_142 = arith.constant 0 : index
    %c0_143 = arith.constant 0 : index
    %64 = vector.load %arg2[%c0_139, %c1_140, %c0_141, %c0_142, %c0_143] : memref<1x6x10x10x4xf32, #tpu.memory_space<vmem>>, vector<1x1x8x8x4xf32>
    %65 = vector.shape_cast %64 : vector<1x1x8x8x4xf32> to vector<8x8x4xf32>
    %c0_144 = arith.constant 0 : index
    %c1_145 = arith.constant 1 : index
    %c0_146 = arith.constant 0 : index
    %c1_147 = arith.constant 1 : index
    %c0_148 = arith.constant 0 : index
    %66 = vector.load %arg2[%c0_144, %c1_145, %c0_146, %c1_147, %c0_148] : memref<1x6x10x10x4xf32, #tpu.memory_space<vmem>>, vector<1x1x8x8x4xf32>
    %67 = vector.shape_cast %66 : vector<1x1x8x8x4xf32> to vector<8x8x4xf32>
    %c0_149 = arith.constant 0 : index
    %c1_150 = arith.constant 1 : index
    %c0_151 = arith.constant 0 : index
    %c2_152 = arith.constant 2 : index
    %c0_153 = arith.constant 0 : index
    %68 = vector.load %arg2[%c0_149, %c1_150, %c0_151, %c2_152, %c0_153] : memref<1x6x10x10x4xf32, #tpu.memory_space<vmem>>, vector<1x1x8x8x4xf32>
    %69 = vector.shape_cast %68 : vector<1x1x8x8x4xf32> to vector<8x8x4xf32>
    %c0_154 = arith.constant 0 : index
    %c1_155 = arith.constant 1 : index
    %c1_156 = arith.constant 1 : index
    %c0_157 = arith.constant 0 : index
    %c0_158 = arith.constant 0 : index
    %70 = vector.load %arg2[%c0_154, %c1_155, %c1_156, %c0_157, %c0_158] : memref<1x6x10x10x4xf32, #tpu.memory_space<vmem>>, vector<1x1x8x8x4xf32>
    %71 = vector.shape_cast %70 : vector<1x1x8x8x4xf32> to vector<8x8x4xf32>
    %c0_159 = arith.constant 0 : index
    %c1_160 = arith.constant 1 : index
    %c1_161 = arith.constant 1 : index
    %c1_162 = arith.constant 1 : index
    %c0_163 = arith.constant 0 : index
    %72 = vector.load %arg2[%c0_159, %c1_160, %c1_161, %c1_162, %c0_163] : memref<1x6x10x10x4xf32, #tpu.memory_space<vmem>>, vector<1x1x8x8x4xf32>
    %73 = vector.shape_cast %72 : vector<1x1x8x8x4xf32> to vector<8x8x4xf32>
    %c0_164 = arith.constant 0 : index
    %c1_165 = arith.constant 1 : index
    %c1_166 = arith.constant 1 : index
    %c2_167 = arith.constant 2 : index
    %c0_168 = arith.constant 0 : index
    %74 = vector.load %arg2[%c0_164, %c1_165, %c1_166, %c2_167, %c0_168] : memref<1x6x10x10x4xf32, #tpu.memory_space<vmem>>, vector<1x1x8x8x4xf32>
    %75 = vector.shape_cast %74 : vector<1x1x8x8x4xf32> to vector<8x8x4xf32>
    %c0_169 = arith.constant 0 : index
    %c1_170 = arith.constant 1 : index
    %c2_171 = arith.constant 2 : index
    %c0_172 = arith.constant 0 : index
    %c0_173 = arith.constant 0 : index
    %76 = vector.load %arg2[%c0_169, %c1_170, %c2_171, %c0_172, %c0_173] : memref<1x6x10x10x4xf32, #tpu.memory_space<vmem>>, vector<1x1x8x8x4xf32>
    %77 = vector.shape_cast %76 : vector<1x1x8x8x4xf32> to vector<8x8x4xf32>
    %c0_174 = arith.constant 0 : index
    %c1_175 = arith.constant 1 : index
    %c2_176 = arith.constant 2 : index
    %c1_177 = arith.constant 1 : index
    %c0_178 = arith.constant 0 : index
    %78 = vector.load %arg2[%c0_174, %c1_175, %c2_176, %c1_177, %c0_178] : memref<1x6x10x10x4xf32, #tpu.memory_space<vmem>>, vector<1x1x8x8x4xf32>
    %79 = vector.shape_cast %78 : vector<1x1x8x8x4xf32> to vector<8x8x4xf32>
    %c0_179 = arith.constant 0 : index
    %c1_180 = arith.constant 1 : index
    %c2_181 = arith.constant 2 : index
    %c2_182 = arith.constant 2 : index
    %c0_183 = arith.constant 0 : index
    %80 = vector.load %arg2[%c0_179, %c1_180, %c2_181, %c2_182, %c0_183] : memref<1x6x10x10x4xf32, #tpu.memory_space<vmem>>, vector<1x1x8x8x4xf32>
    %81 = vector.shape_cast %80 : vector<1x1x8x8x4xf32> to vector<8x8x4xf32>
    %c0_184 = arith.constant 0 : index
    %c2_185 = arith.constant 2 : index
    %c0_186 = arith.constant 0 : index
    %c0_187 = arith.constant 0 : index
    %c0_188 = arith.constant 0 : index
    %82 = vector.load %arg2[%c0_184, %c2_185, %c0_186, %c0_187, %c0_188] : memref<1x6x10x10x4xf32, #tpu.memory_space<vmem>>, vector<1x1x8x8x4xf32>
    %83 = vector.shape_cast %82 : vector<1x1x8x8x4xf32> to vector<8x8x4xf32>
    %c0_189 = arith.constant 0 : index
    %c2_190 = arith.constant 2 : index
    %c0_191 = arith.constant 0 : index
    %c1_192 = arith.constant 1 : index
    %c0_193 = arith.constant 0 : index
    %84 = vector.load %arg2[%c0_189, %c2_190, %c0_191, %c1_192, %c0_193] : memref<1x6x10x10x4xf32, #tpu.memory_space<vmem>>, vector<1x1x8x8x4xf32>
    %85 = vector.shape_cast %84 : vector<1x1x8x8x4xf32> to vector<8x8x4xf32>
    %c0_194 = arith.constant 0 : index
    %c2_195 = arith.constant 2 : index
    %c0_196 = arith.constant 0 : index
    %c2_197 = arith.constant 2 : index
    %c0_198 = arith.constant 0 : index
    %86 = vector.load %arg2[%c0_194, %c2_195, %c0_196, %c2_197, %c0_198] : memref<1x6x10x10x4xf32, #tpu.memory_space<vmem>>, vector<1x1x8x8x4xf32>
    %87 = vector.shape_cast %86 : vector<1x1x8x8x4xf32> to vector<8x8x4xf32>
    %c0_199 = arith.constant 0 : index
    %c2_200 = arith.constant 2 : index
    %c1_201 = arith.constant 1 : index
    %c0_202 = arith.constant 0 : index
    %c0_203 = arith.constant 0 : index
    %88 = vector.load %arg2[%c0_199, %c2_200, %c1_201, %c0_202, %c0_203] : memref<1x6x10x10x4xf32, #tpu.memory_space<vmem>>, vector<1x1x8x8x4xf32>
    %89 = vector.shape_cast %88 : vector<1x1x8x8x4xf32> to vector<8x8x4xf32>
    %c0_204 = arith.constant 0 : index
    %c2_205 = arith.constant 2 : index
    %c1_206 = arith.constant 1 : index
    %c1_207 = arith.constant 1 : index
    %c0_208 = arith.constant 0 : index
    %90 = vector.load %arg2[%c0_204, %c2_205, %c1_206, %c1_207, %c0_208] : memref<1x6x10x10x4xf32, #tpu.memory_space<vmem>>, vector<1x1x8x8x4xf32>
    %91 = vector.shape_cast %90 : vector<1x1x8x8x4xf32> to vector<8x8x4xf32>
    %c0_209 = arith.constant 0 : index
    %c2_210 = arith.constant 2 : index
    %c1_211 = arith.constant 1 : index
    %c2_212 = arith.constant 2 : index
    %c0_213 = arith.constant 0 : index
    %92 = vector.load %arg2[%c0_209, %c2_210, %c1_211, %c2_212, %c0_213] : memref<1x6x10x10x4xf32, #tpu.memory_space<vmem>>, vector<1x1x8x8x4xf32>
    %93 = vector.shape_cast %92 : vector<1x1x8x8x4xf32> to vector<8x8x4xf32>
    %c0_214 = arith.constant 0 : index
    %c2_215 = arith.constant 2 : index
    %c2_216 = arith.constant 2 : index
    %c0_217 = arith.constant 0 : index
    %c0_218 = arith.constant 0 : index
    %94 = vector.load %arg2[%c0_214, %c2_215, %c2_216, %c0_217, %c0_218] : memref<1x6x10x10x4xf32, #tpu.memory_space<vmem>>, vector<1x1x8x8x4xf32>
    %95 = vector.shape_cast %94 : vector<1x1x8x8x4xf32> to vector<8x8x4xf32>
    %c0_219 = arith.constant 0 : index
    %c2_220 = arith.constant 2 : index
    %c2_221 = arith.constant 2 : index
    %c1_222 = arith.constant 1 : index
    %c0_223 = arith.constant 0 : index
    %96 = vector.load %arg2[%c0_219, %c2_220, %c2_221, %c1_222, %c0_223] : memref<1x6x10x10x4xf32, #tpu.memory_space<vmem>>, vector<1x1x8x8x4xf32>
    %97 = vector.shape_cast %96 : vector<1x1x8x8x4xf32> to vector<8x8x4xf32>
    %c0_224 = arith.constant 0 : index
    %c2_225 = arith.constant 2 : index
    %c2_226 = arith.constant 2 : index
    %c2_227 = arith.constant 2 : index
    %c0_228 = arith.constant 0 : index
    %98 = vector.load %arg2[%c0_224, %c2_225, %c2_226, %c2_227, %c0_228] : memref<1x6x10x10x4xf32, #tpu.memory_space<vmem>>, vector<1x1x8x8x4xf32>
    %99 = vector.shape_cast %98 : vector<1x1x8x8x4xf32> to vector<8x8x4xf32>
    %c0_229 = arith.constant 0 : index
    %c3 = arith.constant 3 : index
    %c0_230 = arith.constant 0 : index
    %c0_231 = arith.constant 0 : index
    %c0_232 = arith.constant 0 : index
    %100 = vector.load %arg2[%c0_229, %c3, %c0_230, %c0_231, %c0_232] : memref<1x6x10x10x4xf32, #tpu.memory_space<vmem>>, vector<1x1x8x8x4xf32>
    %101 = vector.shape_cast %100 : vector<1x1x8x8x4xf32> to vector<8x8x4xf32>
    %c0_233 = arith.constant 0 : index
    %c3_234 = arith.constant 3 : index
    %c0_235 = arith.constant 0 : index
    %c1_236 = arith.constant 1 : index
    %c0_237 = arith.constant 0 : index
    %102 = vector.load %arg2[%c0_233, %c3_234, %c0_235, %c1_236, %c0_237] : memref<1x6x10x10x4xf32, #tpu.memory_space<vmem>>, vector<1x1x8x8x4xf32>
    %103 = vector.shape_cast %102 : vector<1x1x8x8x4xf32> to vector<8x8x4xf32>
    %c0_238 = arith.constant 0 : index
    %c3_239 = arith.constant 3 : index
    %c0_240 = arith.constant 0 : index
    %c2_241 = arith.constant 2 : index
    %c0_242 = arith.constant 0 : index
    %104 = vector.load %arg2[%c0_238, %c3_239, %c0_240, %c2_241, %c0_242] : memref<1x6x10x10x4xf32, #tpu.memory_space<vmem>>, vector<1x1x8x8x4xf32>
    %105 = vector.shape_cast %104 : vector<1x1x8x8x4xf32> to vector<8x8x4xf32>
    %c0_243 = arith.constant 0 : index
    %c3_244 = arith.constant 3 : index
    %c1_245 = arith.constant 1 : index
    %c0_246 = arith.constant 0 : index
    %c0_247 = arith.constant 0 : index
    %106 = vector.load %arg2[%c0_243, %c3_244, %c1_245, %c0_246, %c0_247] : memref<1x6x10x10x4xf32, #tpu.memory_space<vmem>>, vector<1x1x8x8x4xf32>
    %107 = vector.shape_cast %106 : vector<1x1x8x8x4xf32> to vector<8x8x4xf32>
    %c0_248 = arith.constant 0 : index
    %c3_249 = arith.constant 3 : index
    %c1_250 = arith.constant 1 : index
    %c1_251 = arith.constant 1 : index
    %c0_252 = arith.constant 0 : index
    %108 = vector.load %arg2[%c0_248, %c3_249, %c1_250, %c1_251, %c0_252] : memref<1x6x10x10x4xf32, #tpu.memory_space<vmem>>, vector<1x1x8x8x4xf32>
    %109 = vector.shape_cast %108 : vector<1x1x8x8x4xf32> to vector<8x8x4xf32>
    %c0_253 = arith.constant 0 : index
    %c3_254 = arith.constant 3 : index
    %c1_255 = arith.constant 1 : index
    %c2_256 = arith.constant 2 : index
    %c0_257 = arith.constant 0 : index
    %110 = vector.load %arg2[%c0_253, %c3_254, %c1_255, %c2_256, %c0_257] : memref<1x6x10x10x4xf32, #tpu.memory_space<vmem>>, vector<1x1x8x8x4xf32>
    %111 = vector.shape_cast %110 : vector<1x1x8x8x4xf32> to vector<8x8x4xf32>
    %c0_258 = arith.constant 0 : index
    %c3_259 = arith.constant 3 : index
    %c2_260 = arith.constant 2 : index
    %c0_261 = arith.constant 0 : index
    %c0_262 = arith.constant 0 : index
    %112 = vector.load %arg2[%c0_258, %c3_259, %c2_260, %c0_261, %c0_262] : memref<1x6x10x10x4xf32, #tpu.memory_space<vmem>>, vector<1x1x8x8x4xf32>
    %113 = vector.shape_cast %112 : vector<1x1x8x8x4xf32> to vector<8x8x4xf32>
    %c0_263 = arith.constant 0 : index
    %c3_264 = arith.constant 3 : index
    %c2_265 = arith.constant 2 : index
    %c1_266 = arith.constant 1 : index
    %c0_267 = arith.constant 0 : index
    %114 = vector.load %arg2[%c0_263, %c3_264, %c2_265, %c1_266, %c0_267] : memref<1x6x10x10x4xf32, #tpu.memory_space<vmem>>, vector<1x1x8x8x4xf32>
    %115 = vector.shape_cast %114 : vector<1x1x8x8x4xf32> to vector<8x8x4xf32>
    %c0_268 = arith.constant 0 : index
    %c3_269 = arith.constant 3 : index
    %c2_270 = arith.constant 2 : index
    %c2_271 = arith.constant 2 : index
    %c0_272 = arith.constant 0 : index
    %116 = vector.load %arg2[%c0_268, %c3_269, %c2_270, %c2_271, %c0_272] : memref<1x6x10x10x4xf32, #tpu.memory_space<vmem>>, vector<1x1x8x8x4xf32>
    %117 = vector.shape_cast %116 : vector<1x1x8x8x4xf32> to vector<8x8x4xf32>
    %118 = tpu.concatenate %65, %67, %69, %71, %73, %75, %77, %79, %81, %83, %85, %87, %89, %91, %93, %95 in 2 : vector<8x8x4xf32>, vector<8x8x4xf32>, vector<8x8x4xf32>, vector<8x8x4xf32>, vector<8x8x4xf32>, vector<8x8x4xf32>, vector<8x8x4xf32>, vector<8x8x4xf32>, vector<8x8x4xf32>, vector<8x8x4xf32>, vector<8x8x4xf32>, vector<8x8x4xf32>, vector<8x8x4xf32>, vector<8x8x4xf32>, vector<8x8x4xf32>, vector<8x8x4xf32> -> vector<8x8x64xf32>
    %119 = tpu.concatenate %97, %99, %101, %103, %105, %107, %109, %111, %113, %115, %117 in 2 : vector<8x8x4xf32>, vector<8x8x4xf32>, vector<8x8x4xf32>, vector<8x8x4xf32>, vector<8x8x4xf32>, vector<8x8x4xf32>, vector<8x8x4xf32>, vector<8x8x4xf32>, vector<8x8x4xf32>, vector<8x8x4xf32>, vector<8x8x4xf32> -> vector<8x8x44xf32>
    %120 = tpu.concatenate %118, %119 in 2 : vector<8x8x64xf32>, vector<8x8x44xf32> -> vector<8x8x108xf32>
    %121 = vector.shape_cast %120 : vector<8x8x108xf32> to vector<64x108xf32>
    %cst_273 = arith.constant dense<0.000000e+00> : vector<64x128xf32>
    %122 = tpu.matmul %121, %0, %cst_273 {dimension_numbers = #tpu.dot_dimension_numbers<[1], [0], [0], [1], [0, 0, 1, 1], [], []>} : vector<64x108xf32>, vector<108x128xf32>, vector<64x128xf32> -> vector<64x128xf32>
    %123 = vector.shape_cast %122 : vector<64x128xf32> to vector<8x8x128xf32>
    %c0_274 = arith.constant 0 : index
    %c1_275 = arith.constant 1 : index
    %c0_276 = arith.constant 0 : index
    %c0_277 = arith.constant 0 : index
    %c0_278 = arith.constant 0 : index
    %124 = vector.load %arg4[%c0_274, %c1_275, %c0_276, %c0_277, %c0_278] : memref<1x4x8x8x128xf32, #tpu.memory_space<vmem>>, vector<1x1x8x8x128xf32>
    %125 = vector.shape_cast %124 : vector<1x1x8x8x128xf32> to vector<8x8x128xf32>
    %126 = vector.shape_cast %123 : vector<8x8x128xf32> to vector<1x1x8x8x128xf32>
    tpu.vector_store %arg4[%c0_274, %c1_275, %c0_276, %c0_277, %c0_278], %126 {strides = array<i32>} : memref<1x4x8x8x128xf32, #tpu.memory_space<vmem>>, vector<1x1x8x8x128xf32>,
    %c0_279 = arith.constant 0 : index
    %c2_280 = arith.constant 2 : index
    %c0_281 = arith.constant 0 : index
    %c0_282 = arith.constant 0 : index
    %c0_283 = arith.constant 0 : index
    %127 = vector.load %arg2[%c0_279, %c2_280, %c0_281, %c0_282, %c0_283] : memref<1x6x10x10x4xf32, #tpu.memory_space<vmem>>, vector<1x1x8x8x4xf32>
    %128 = vector.shape_cast %127 : vector<1x1x8x8x4xf32> to vector<8x8x4xf32>
    %c0_284 = arith.constant 0 : index
    %c2_285 = arith.constant 2 : index
    %c0_286 = arith.constant 0 : index
    %c1_287 = arith.constant 1 : index
    %c0_288 = arith.constant 0 : index
    %129 = vector.load %arg2[%c0_284, %c2_285, %c0_286, %c1_287, %c0_288] : memref<1x6x10x10x4xf32, #tpu.memory_space<vmem>>, vector<1x1x8x8x4xf32>
    %130 = vector.shape_cast %129 : vector<1x1x8x8x4xf32> to vector<8x8x4xf32>
    %c0_289 = arith.constant 0 : index
    %c2_290 = arith.constant 2 : index
    %c0_291 = arith.constant 0 : index
    %c2_292 = arith.constant 2 : index
    %c0_293 = arith.constant 0 : index
    %131 = vector.load %arg2[%c0_289, %c2_290, %c0_291, %c2_292, %c0_293] : memref<1x6x10x10x4xf32, #tpu.memory_space<vmem>>, vector<1x1x8x8x4xf32>
    %132 = vector.shape_cast %131 : vector<1x1x8x8x4xf32> to vector<8x8x4xf32>
    %c0_294 = arith.constant 0 : index
    %c2_295 = arith.constant 2 : index
    %c1_296 = arith.constant 1 : index
    %c0_297 = arith.constant 0 : index
    %c0_298 = arith.constant 0 : index
    %133 = vector.load %arg2[%c0_294, %c2_295, %c1_296, %c0_297, %c0_298] : memref<1x6x10x10x4xf32, #tpu.memory_space<vmem>>, vector<1x1x8x8x4xf32>
    %134 = vector.shape_cast %133 : vector<1x1x8x8x4xf32> to vector<8x8x4xf32>
    %c0_299 = arith.constant 0 : index
    %c2_300 = arith.constant 2 : index
    %c1_301 = arith.constant 1 : index
    %c1_302 = arith.constant 1 : index
    %c0_303 = arith.constant 0 : index
    %135 = vector.load %arg2[%c0_299, %c2_300, %c1_301, %c1_302, %c0_303] : memref<1x6x10x10x4xf32, #tpu.memory_space<vmem>>, vector<1x1x8x8x4xf32>
    %136 = vector.shape_cast %135 : vector<1x1x8x8x4xf32> to vector<8x8x4xf32>
    %c0_304 = arith.constant 0 : index
    %c2_305 = arith.constant 2 : index
    %c1_306 = arith.constant 1 : index
    %c2_307 = arith.constant 2 : index
    %c0_308 = arith.constant 0 : index
    %137 = vector.load %arg2[%c0_304, %c2_305, %c1_306, %c2_307, %c0_308] : memref<1x6x10x10x4xf32, #tpu.memory_space<vmem>>, vector<1x1x8x8x4xf32>
    %138 = vector.shape_cast %137 : vector<1x1x8x8x4xf32> to vector<8x8x4xf32>
    %c0_309 = arith.constant 0 : index
    %c2_310 = arith.constant 2 : index
    %c2_311 = arith.constant 2 : index
    %c0_312 = arith.constant 0 : index
    %c0_313 = arith.constant 0 : index
    %139 = vector.load %arg2[%c0_309, %c2_310, %c2_311, %c0_312, %c0_313] : memref<1x6x10x10x4xf32, #tpu.memory_space<vmem>>, vector<1x1x8x8x4xf32>
    %140 = vector.shape_cast %139 : vector<1x1x8x8x4xf32> to vector<8x8x4xf32>
    %c0_314 = arith.constant 0 : index
    %c2_315 = arith.constant 2 : index
    %c2_316 = arith.constant 2 : index
    %c1_317 = arith.constant 1 : index
    %c0_318 = arith.constant 0 : index
    %141 = vector.load %arg2[%c0_314, %c2_315, %c2_316, %c1_317, %c0_318] : memref<1x6x10x10x4xf32, #tpu.memory_space<vmem>>, vector<1x1x8x8x4xf32>
    %142 = vector.shape_cast %141 : vector<1x1x8x8x4xf32> to vector<8x8x4xf32>
    %c0_319 = arith.constant 0 : index
    %c2_320 = arith.constant 2 : index
    %c2_321 = arith.constant 2 : index
    %c2_322 = arith.constant 2 : index
    %c0_323 = arith.constant 0 : index
    %143 = vector.load %arg2[%c0_319, %c2_320, %c2_321, %c2_322, %c0_323] : memref<1x6x10x10x4xf32, #tpu.memory_space<vmem>>, vector<1x1x8x8x4xf32>
    %144 = vector.shape_cast %143 : vector<1x1x8x8x4xf32> to vector<8x8x4xf32>
    %c0_324 = arith.constant 0 : index
    %c3_325 = arith.constant 3 : index
    %c0_326 = arith.constant 0 : index
    %c0_327 = arith.constant 0 : index
    %c0_328 = arith.constant 0 : index
    %145 = vector.load %arg2[%c0_324, %c3_325, %c0_326, %c0_327, %c0_328] : memref<1x6x10x10x4xf32, #tpu.memory_space<vmem>>, vector<1x1x8x8x4xf32>
    %146 = vector.shape_cast %145 : vector<1x1x8x8x4xf32> to vector<8x8x4xf32>
    %c0_329 = arith.constant 0 : index
    %c3_330 = arith.constant 3 : index
    %c0_331 = arith.constant 0 : index
    %c1_332 = arith.constant 1 : index
    %c0_333 = arith.constant 0 : index
    %147 = vector.load %arg2[%c0_329, %c3_330, %c0_331, %c1_332, %c0_333] : memref<1x6x10x10x4xf32, #tpu.memory_space<vmem>>, vector<1x1x8x8x4xf32>
    %148 = vector.shape_cast %147 : vector<1x1x8x8x4xf32> to vector<8x8x4xf32>
    %c0_334 = arith.constant 0 : index
    %c3_335 = arith.constant 3 : index
    %c0_336 = arith.constant 0 : index
    %c2_337 = arith.constant 2 : index
    %c0_338 = arith.constant 0 : index
    %149 = vector.load %arg2[%c0_334, %c3_335, %c0_336, %c2_337, %c0_338] : memref<1x6x10x10x4xf32, #tpu.memory_space<vmem>>, vector<1x1x8x8x4xf32>
    %150 = vector.shape_cast %149 : vector<1x1x8x8x4xf32> to vector<8x8x4xf32>
    %c0_339 = arith.constant 0 : index
    %c3_340 = arith.constant 3 : index
    %c1_341 = arith.constant 1 : index
    %c0_342 = arith.constant 0 : index
    %c0_343 = arith.constant 0 : index
    %151 = vector.load %arg2[%c0_339, %c3_340, %c1_341, %c0_342, %c0_343] : memref<1x6x10x10x4xf32, #tpu.memory_space<vmem>>, vector<1x1x8x8x4xf32>
    %152 = vector.shape_cast %151 : vector<1x1x8x8x4xf32> to vector<8x8x4xf32>
    %c0_344 = arith.constant 0 : index
    %c3_345 = arith.constant 3 : index
    %c1_346 = arith.constant 1 : index
    %c1_347 = arith.constant 1 : index
    %c0_348 = arith.constant 0 : index
    %153 = vector.load %arg2[%c0_344, %c3_345, %c1_346, %c1_347, %c0_348] : memref<1x6x10x10x4xf32, #tpu.memory_space<vmem>>, vector<1x1x8x8x4xf32>
    %154 = vector.shape_cast %153 : vector<1x1x8x8x4xf32> to vector<8x8x4xf32>
    %c0_349 = arith.constant 0 : index
    %c3_350 = arith.constant 3 : index
    %c1_351 = arith.constant 1 : index
    %c2_352 = arith.constant 2 : index
    %c0_353 = arith.constant 0 : index
    %155 = vector.load %arg2[%c0_349, %c3_350, %c1_351, %c2_352, %c0_353] : memref<1x6x10x10x4xf32, #tpu.memory_space<vmem>>, vector<1x1x8x8x4xf32>
    %156 = vector.shape_cast %155 : vector<1x1x8x8x4xf32> to vector<8x8x4xf32>
    %c0_354 = arith.constant 0 : index
    %c3_355 = arith.constant 3 : index
    %c2_356 = arith.constant 2 : index
    %c0_357 = arith.constant 0 : index
    %c0_358 = arith.constant 0 : index
    %157 = vector.load %arg2[%c0_354, %c3_355, %c2_356, %c0_357, %c0_358] : memref<1x6x10x10x4xf32, #tpu.memory_space<vmem>>, vector<1x1x8x8x4xf32>
    %158 = vector.shape_cast %157 : vector<1x1x8x8x4xf32> to vector<8x8x4xf32>
    %c0_359 = arith.constant 0 : index
    %c3_360 = arith.constant 3 : index
    %c2_361 = arith.constant 2 : index
    %c1_362 = arith.constant 1 : index
    %c0_363 = arith.constant 0 : index
    %159 = vector.load %arg2[%c0_359, %c3_360, %c2_361, %c1_362, %c0_363] : memref<1x6x10x10x4xf32, #tpu.memory_space<vmem>>, vector<1x1x8x8x4xf32>
    %160 = vector.shape_cast %159 : vector<1x1x8x8x4xf32> to vector<8x8x4xf32>
    %c0_364 = arith.constant 0 : index
    %c3_365 = arith.constant 3 : index
    %c2_366 = arith.constant 2 : index
    %c2_367 = arith.constant 2 : index
    %c0_368 = arith.constant 0 : index
    %161 = vector.load %arg2[%c0_364, %c3_365, %c2_366, %c2_367, %c0_368] : memref<1x6x10x10x4xf32, #tpu.memory_space<vmem>>, vector<1x1x8x8x4xf32>
    %162 = vector.shape_cast %161 : vector<1x1x8x8x4xf32> to vector<8x8x4xf32>
    %c0_369 = arith.constant 0 : index
    %c4 = arith.constant 4 : index
    %c0_370 = arith.constant 0 : index
    %c0_371 = arith.constant 0 : index
    %c0_372 = arith.constant 0 : index
    %163 = vector.load %arg2[%c0_369, %c4, %c0_370, %c0_371, %c0_372] : memref<1x6x10x10x4xf32, #tpu.memory_space<vmem>>, vector<1x1x8x8x4xf32>
    %164 = vector.shape_cast %163 : vector<1x1x8x8x4xf32> to vector<8x8x4xf32>
    %c0_373 = arith.constant 0 : index
    %c4_374 = arith.constant 4 : index
    %c0_375 = arith.constant 0 : index
    %c1_376 = arith.constant 1 : index
    %c0_377 = arith.constant 0 : index
    %165 = vector.load %arg2[%c0_373, %c4_374, %c0_375, %c1_376, %c0_377] : memref<1x6x10x10x4xf32, #tpu.memory_space<vmem>>, vector<1x1x8x8x4xf32>
    %166 = vector.shape_cast %165 : vector<1x1x8x8x4xf32> to vector<8x8x4xf32>
    %c0_378 = arith.constant 0 : index
    %c4_379 = arith.constant 4 : index
    %c0_380 = arith.constant 0 : index
    %c2_381 = arith.constant 2 : index
    %c0_382 = arith.constant 0 : index
    %167 = vector.load %arg2[%c0_378, %c4_379, %c0_380, %c2_381, %c0_382] : memref<1x6x10x10x4xf32, #tpu.memory_space<vmem>>, vector<1x1x8x8x4xf32>
    %168 = vector.shape_cast %167 : vector<1x1x8x8x4xf32> to vector<8x8x4xf32>
    %c0_383 = arith.constant 0 : index
    %c4_384 = arith.constant 4 : index
    %c1_385 = arith.constant 1 : index
    %c0_386 = arith.constant 0 : index
    %c0_387 = arith.constant 0 : index
    %169 = vector.load %arg2[%c0_383, %c4_384, %c1_385, %c0_386, %c0_387] : memref<1x6x10x10x4xf32, #tpu.memory_space<vmem>>, vector<1x1x8x8x4xf32>
    %170 = vector.shape_cast %169 : vector<1x1x8x8x4xf32> to vector<8x8x4xf32>
    %c0_388 = arith.constant 0 : index
    %c4_389 = arith.constant 4 : index
    %c1_390 = arith.constant 1 : index
    %c1_391 = arith.constant 1 : index
    %c0_392 = arith.constant 0 : index
    %171 = vector.load %arg2[%c0_388, %c4_389, %c1_390, %c1_391, %c0_392] : memref<1x6x10x10x4xf32, #tpu.memory_space<vmem>>, vector<1x1x8x8x4xf32>
    %172 = vector.shape_cast %171 : vector<1x1x8x8x4xf32> to vector<8x8x4xf32>
    %c0_393 = arith.constant 0 : index
    %c4_394 = arith.constant 4 : index
    %c1_395 = arith.constant 1 : index
    %c2_396 = arith.constant 2 : index
    %c0_397 = arith.constant 0 : index
    %173 = vector.load %arg2[%c0_393, %c4_394, %c1_395, %c2_396, %c0_397] : memref<1x6x10x10x4xf32, #tpu.memory_space<vmem>>, vector<1x1x8x8x4xf32>
    %174 = vector.shape_cast %173 : vector<1x1x8x8x4xf32> to vector<8x8x4xf32>
    %c0_398 = arith.constant 0 : index
    %c4_399 = arith.constant 4 : index
    %c2_400 = arith.constant 2 : index
    %c0_401 = arith.constant 0 : index
    %c0_402 = arith.constant 0 : index
    %175 = vector.load %arg2[%c0_398, %c4_399, %c2_400, %c0_401, %c0_402] : memref<1x6x10x10x4xf32, #tpu.memory_space<vmem>>, vector<1x1x8x8x4xf32>
    %176 = vector.shape_cast %175 : vector<1x1x8x8x4xf32> to vector<8x8x4xf32>
    %c0_403 = arith.constant 0 : index
    %c4_404 = arith.constant 4 : index
    %c2_405 = arith.constant 2 : index
    %c1_406 = arith.constant 1 : index
    %c0_407 = arith.constant 0 : index
    %177 = vector.load %arg2[%c0_403, %c4_404, %c2_405, %c1_406, %c0_407] : memref<1x6x10x10x4xf32, #tpu.memory_space<vmem>>, vector<1x1x8x8x4xf32>
    %178 = vector.shape_cast %177 : vector<1x1x8x8x4xf32> to vector<8x8x4xf32>
    %c0_408 = arith.constant 0 : index
    %c4_409 = arith.constant 4 : index
    %c2_410 = arith.constant 2 : index
    %c2_411 = arith.constant 2 : index
    %c0_412 = arith.constant 0 : index
    %179 = vector.load %arg2[%c0_408, %c4_409, %c2_410, %c2_411, %c0_412] : memref<1x6x10x10x4xf32, #tpu.memory_space<vmem>>, vector<1x1x8x8x4xf32>
    %180 = vector.shape_cast %179 : vector<1x1x8x8x4xf32> to vector<8x8x4xf32>
    %181 = tpu.concatenate %128, %130, %132, %134, %136, %138, %140, %142, %144, %146, %148, %150, %152, %154, %156, %158 in 2 : vector<8x8x4xf32>, vector<8x8x4xf32>, vector<8x8x4xf32>, vector<8x8x4xf32>, vector<8x8x4xf32>, vector<8x8x4xf32>, vector<8x8x4xf32>, vector<8x8x4xf32>, vector<8x8x4xf32>, vector<8x8x4xf32>, vector<8x8x4xf32>, vector<8x8x4xf32>, vector<8x8x4xf32>, vector<8x8x4xf32>, vector<8x8x4xf32>, vector<8x8x4xf32> -> vector<8x8x64xf32>
    %182 = tpu.concatenate %160, %162, %164, %166, %168, %170, %172, %174, %176, %178, %180 in 2 : vector<8x8x4xf32>, vector<8x8x4xf32>, vector<8x8x4xf32>, vector<8x8x4xf32>, vector<8x8x4xf32>, vector<8x8x4xf32>, vector<8x8x4xf32>, vector<8x8x4xf32>, vector<8x8x4xf32>, vector<8x8x4xf32>, vector<8x8x4xf32> -> vector<8x8x44xf32>
    %183 = tpu.concatenate %181, %182 in 2 : vector<8x8x64xf32>, vector<8x8x44xf32> -> vector<8x8x108xf32>
    %184 = vector.shape_cast %183 : vector<8x8x108xf32> to vector<64x108xf32>
    %cst_413 = arith.constant dense<0.000000e+00> : vector<64x128xf32>
    %185 = tpu.matmul %184, %0, %cst_413 {dimension_numbers = #tpu.dot_dimension_numbers<[1], [0], [0], [1], [0, 0, 1, 1], [], []>} : vector<64x108xf32>, vector<108x128xf32>, vector<64x128xf32> -> vector<64x128xf32>
    %186 = vector.shape_cast %185 : vector<64x128xf32> to vector<8x8x128xf32>
    %c0_414 = arith.constant 0 : index
    %c2_415 = arith.constant 2 : index
    %c0_416 = arith.constant 0 : index
    %c0_417 = arith.constant 0 : index
    %c0_418 = arith.constant 0 : index
    %187 = vector.load %arg4[%c0_414, %c2_415, %c0_416, %c0_417, %c0_418] : memref<1x4x8x8x128xf32, #tpu.memory_space<vmem>>, vector<1x1x8x8x128xf32>
    %188 = vector.shape_cast %187 : vector<1x1x8x8x128xf32> to vector<8x8x128xf32>
    %189 = vector.shape_cast %186 : vector<8x8x128xf32> to vector<1x1x8x8x128xf32>
    tpu.vector_store %arg4[%c0_414, %c2_415, %c0_416, %c0_417, %c0_418], %189 {strides = array<i32>} : memref<1x4x8x8x128xf32, #tpu.memory_space<vmem>>, vector<1x1x8x8x128xf32>,
    %c0_419 = arith.constant 0 : index
    %c3_420 = arith.constant 3 : index
    %c0_421 = arith.constant 0 : index
    %c0_422 = arith.constant 0 : index
    %c0_423 = arith.constant 0 : index
    %190 = vector.load %arg2[%c0_419, %c3_420, %c0_421, %c0_422, %c0_423] : memref<1x6x10x10x4xf32, #tpu.memory_space<vmem>>, vector<1x1x8x8x4xf32>
    %191 = vector.shape_cast %190 : vector<1x1x8x8x4xf32> to vector<8x8x4xf32>
    %c0_424 = arith.constant 0 : index
    %c3_425 = arith.constant 3 : index
    %c0_426 = arith.constant 0 : index
    %c1_427 = arith.constant 1 : index
    %c0_428 = arith.constant 0 : index
    %192 = vector.load %arg2[%c0_424, %c3_425, %c0_426, %c1_427, %c0_428] : memref<1x6x10x10x4xf32, #tpu.memory_space<vmem>>, vector<1x1x8x8x4xf32>
    %193 = vector.shape_cast %192 : vector<1x1x8x8x4xf32> to vector<8x8x4xf32>
    %c0_429 = arith.constant 0 : index
    %c3_430 = arith.constant 3 : index
    %c0_431 = arith.constant 0 : index
    %c2_432 = arith.constant 2 : index
    %c0_433 = arith.constant 0 : index
    %194 = vector.load %arg2[%c0_429, %c3_430, %c0_431, %c2_432, %c0_433] : memref<1x6x10x10x4xf32, #tpu.memory_space<vmem>>, vector<1x1x8x8x4xf32>
    %195 = vector.shape_cast %194 : vector<1x1x8x8x4xf32> to vector<8x8x4xf32>
    %c0_434 = arith.constant 0 : index
    %c3_435 = arith.constant 3 : index
    %c1_436 = arith.constant 1 : index
    %c0_437 = arith.constant 0 : index
    %c0_438 = arith.constant 0 : index
    %196 = vector.load %arg2[%c0_434, %c3_435, %c1_436, %c0_437, %c0_438] : memref<1x6x10x10x4xf32, #tpu.memory_space<vmem>>, vector<1x1x8x8x4xf32>
    %197 = vector.shape_cast %196 : vector<1x1x8x8x4xf32> to vector<8x8x4xf32>
    %c0_439 = arith.constant 0 : index
    %c3_440 = arith.constant 3 : index
    %c1_441 = arith.constant 1 : index
    %c1_442 = arith.constant 1 : index
    %c0_443 = arith.constant 0 : index
    %198 = vector.load %arg2[%c0_439, %c3_440, %c1_441, %c1_442, %c0_443] : memref<1x6x10x10x4xf32, #tpu.memory_space<vmem>>, vector<1x1x8x8x4xf32>
    %199 = vector.shape_cast %198 : vector<1x1x8x8x4xf32> to vector<8x8x4xf32>
    %c0_444 = arith.constant 0 : index
    %c3_445 = arith.constant 3 : index
    %c1_446 = arith.constant 1 : index
    %c2_447 = arith.constant 2 : index
    %c0_448 = arith.constant 0 : index
    %200 = vector.load %arg2[%c0_444, %c3_445, %c1_446, %c2_447, %c0_448] : memref<1x6x10x10x4xf32, #tpu.memory_space<vmem>>, vector<1x1x8x8x4xf32>
    %201 = vector.shape_cast %200 : vector<1x1x8x8x4xf32> to vector<8x8x4xf32>
    %c0_449 = arith.constant 0 : index
    %c3_450 = arith.constant 3 : index
    %c2_451 = arith.constant 2 : index
    %c0_452 = arith.constant 0 : index
    %c0_453 = arith.constant 0 : index
    %202 = vector.load %arg2[%c0_449, %c3_450, %c2_451, %c0_452, %c0_453] : memref<1x6x10x10x4xf32, #tpu.memory_space<vmem>>, vector<1x1x8x8x4xf32>
    %203 = vector.shape_cast %202 : vector<1x1x8x8x4xf32> to vector<8x8x4xf32>
    %c0_454 = arith.constant 0 : index
    %c3_455 = arith.constant 3 : index
    %c2_456 = arith.constant 2 : index
    %c1_457 = arith.constant 1 : index
    %c0_458 = arith.constant 0 : index
    %204 = vector.load %arg2[%c0_454, %c3_455, %c2_456, %c1_457, %c0_458] : memref<1x6x10x10x4xf32, #tpu.memory_space<vmem>>, vector<1x1x8x8x4xf32>
    %205 = vector.shape_cast %204 : vector<1x1x8x8x4xf32> to vector<8x8x4xf32>
    %c0_459 = arith.constant 0 : index
    %c3_460 = arith.constant 3 : index
    %c2_461 = arith.constant 2 : index
    %c2_462 = arith.constant 2 : index
    %c0_463 = arith.constant 0 : index
    %206 = vector.load %arg2[%c0_459, %c3_460, %c2_461, %c2_462, %c0_463] : memref<1x6x10x10x4xf32, #tpu.memory_space<vmem>>, vector<1x1x8x8x4xf32>
    %207 = vector.shape_cast %206 : vector<1x1x8x8x4xf32> to vector<8x8x4xf32>
    %c0_464 = arith.constant 0 : index
    %c4_465 = arith.constant 4 : index
    %c0_466 = arith.constant 0 : index
    %c0_467 = arith.constant 0 : index
    %c0_468 = arith.constant 0 : index
    %208 = vector.load %arg2[%c0_464, %c4_465, %c0_466, %c0_467, %c0_468] : memref<1x6x10x10x4xf32, #tpu.memory_space<vmem>>, vector<1x1x8x8x4xf32>
    %209 = vector.shape_cast %208 : vector<1x1x8x8x4xf32> to vector<8x8x4xf32>
    %c0_469 = arith.constant 0 : index
    %c4_470 = arith.constant 4 : index
    %c0_471 = arith.constant 0 : index
    %c1_472 = arith.constant 1 : index
    %c0_473 = arith.constant 0 : index
    %210 = vector.load %arg2[%c0_469, %c4_470, %c0_471, %c1_472, %c0_473] : memref<1x6x10x10x4xf32, #tpu.memory_space<vmem>>, vector<1x1x8x8x4xf32>
    %211 = vector.shape_cast %210 : vector<1x1x8x8x4xf32> to vector<8x8x4xf32>
    %c0_474 = arith.constant 0 : index
    %c4_475 = arith.constant 4 : index
    %c0_476 = arith.constant 0 : index
    %c2_477 = arith.constant 2 : index
    %c0_478 = arith.constant 0 : index
    %212 = vector.load %arg2[%c0_474, %c4_475, %c0_476, %c2_477, %c0_478] : memref<1x6x10x10x4xf32, #tpu.memory_space<vmem>>, vector<1x1x8x8x4xf32>
    %213 = vector.shape_cast %212 : vector<1x1x8x8x4xf32> to vector<8x8x4xf32>
    %c0_479 = arith.constant 0 : index
    %c4_480 = arith.constant 4 : index
    %c1_481 = arith.constant 1 : index
    %c0_482 = arith.constant 0 : index
    %c0_483 = arith.constant 0 : index
    %214 = vector.load %arg2[%c0_479, %c4_480, %c1_481, %c0_482, %c0_483] : memref<1x6x10x10x4xf32, #tpu.memory_space<vmem>>, vector<1x1x8x8x4xf32>
    %215 = vector.shape_cast %214 : vector<1x1x8x8x4xf32> to vector<8x8x4xf32>
    %c0_484 = arith.constant 0 : index
    %c4_485 = arith.constant 4 : index
    %c1_486 = arith.constant 1 : index
    %c1_487 = arith.constant 1 : index
    %c0_488 = arith.constant 0 : index
    %216 = vector.load %arg2[%c0_484, %c4_485, %c1_486, %c1_487, %c0_488] : memref<1x6x10x10x4xf32, #tpu.memory_space<vmem>>, vector<1x1x8x8x4xf32>
    %217 = vector.shape_cast %216 : vector<1x1x8x8x4xf32> to vector<8x8x4xf32>
    %c0_489 = arith.constant 0 : index
    %c4_490 = arith.constant 4 : index
    %c1_491 = arith.constant 1 : index
    %c2_492 = arith.constant 2 : index
    %c0_493 = arith.constant 0 : index
    %218 = vector.load %arg2[%c0_489, %c4_490, %c1_491, %c2_492, %c0_493] : memref<1x6x10x10x4xf32, #tpu.memory_space<vmem>>, vector<1x1x8x8x4xf32>
    %219 = vector.shape_cast %218 : vector<1x1x8x8x4xf32> to vector<8x8x4xf32>
    %c0_494 = arith.constant 0 : index
    %c4_495 = arith.constant 4 : index
    %c2_496 = arith.constant 2 : index
    %c0_497 = arith.constant 0 : index
    %c0_498 = arith.constant 0 : index
    %220 = vector.load %arg2[%c0_494, %c4_495, %c2_496, %c0_497, %c0_498] : memref<1x6x10x10x4xf32, #tpu.memory_space<vmem>>, vector<1x1x8x8x4xf32>
    %221 = vector.shape_cast %220 : vector<1x1x8x8x4xf32> to vector<8x8x4xf32>
    %c0_499 = arith.constant 0 : index
    %c4_500 = arith.constant 4 : index
    %c2_501 = arith.constant 2 : index
    %c1_502 = arith.constant 1 : index
    %c0_503 = arith.constant 0 : index
    %222 = vector.load %arg2[%c0_499, %c4_500, %c2_501, %c1_502, %c0_503] : memref<1x6x10x10x4xf32, #tpu.memory_space<vmem>>, vector<1x1x8x8x4xf32>
    %223 = vector.shape_cast %222 : vector<1x1x8x8x4xf32> to vector<8x8x4xf32>
    %c0_504 = arith.constant 0 : index
    %c4_505 = arith.constant 4 : index
    %c2_506 = arith.constant 2 : index
    %c2_507 = arith.constant 2 : index
    %c0_508 = arith.constant 0 : index
    %224 = vector.load %arg2[%c0_504, %c4_505, %c2_506, %c2_507, %c0_508] : memref<1x6x10x10x4xf32, #tpu.memory_space<vmem>>, vector<1x1x8x8x4xf32>
    %225 = vector.shape_cast %224 : vector<1x1x8x8x4xf32> to vector<8x8x4xf32>
    %c0_509 = arith.constant 0 : index
    %c5 = arith.constant 5 : index
    %c0_510 = arith.constant 0 : index
    %c0_511 = arith.constant 0 : index
    %c0_512 = arith.constant 0 : index
    %226 = vector.load %arg2[%c0_509, %c5, %c0_510, %c0_511, %c0_512] : memref<1x6x10x10x4xf32, #tpu.memory_space<vmem>>, vector<1x1x8x8x4xf32>
    %227 = vector.shape_cast %226 : vector<1x1x8x8x4xf32> to vector<8x8x4xf32>
    %c0_513 = arith.constant 0 : index
    %c5_514 = arith.constant 5 : index
    %c0_515 = arith.constant 0 : index
    %c1_516 = arith.constant 1 : index
    %c0_517 = arith.constant 0 : index
    %228 = vector.load %arg2[%c0_513, %c5_514, %c0_515, %c1_516, %c0_517] : memref<1x6x10x10x4xf32, #tpu.memory_space<vmem>>, vector<1x1x8x8x4xf32>
    %229 = vector.shape_cast %228 : vector<1x1x8x8x4xf32> to vector<8x8x4xf32>
    %c0_518 = arith.constant 0 : index
    %c5_519 = arith.constant 5 : index
    %c0_520 = arith.constant 0 : index
    %c2_521 = arith.constant 2 : index
    %c0_522 = arith.constant 0 : index
    %230 = vector.load %arg2[%c0_518, %c5_519, %c0_520, %c2_521, %c0_522] : memref<1x6x10x10x4xf32, #tpu.memory_space<vmem>>, vector<1x1x8x8x4xf32>
    %231 = vector.shape_cast %230 : vector<1x1x8x8x4xf32> to vector<8x8x4xf32>
    %c0_523 = arith.constant 0 : index
    %c5_524 = arith.constant 5 : index
    %c1_525 = arith.constant 1 : index
    %c0_526 = arith.constant 0 : index
    %c0_527 = arith.constant 0 : index
    %232 = vector.load %arg2[%c0_523, %c5_524, %c1_525, %c0_526, %c0_527] : memref<1x6x10x10x4xf32, #tpu.memory_space<vmem>>, vector<1x1x8x8x4xf32>
    %233 = vector.shape_cast %232 : vector<1x1x8x8x4xf32> to vector<8x8x4xf32>
    %c0_528 = arith.constant 0 : index
    %c5_529 = arith.constant 5 : index
    %c1_530 = arith.constant 1 : index
    %c1_531 = arith.constant 1 : index
    %c0_532 = arith.constant 0 : index
    %234 = vector.load %arg2[%c0_528, %c5_529, %c1_530, %c1_531, %c0_532] : memref<1x6x10x10x4xf32, #tpu.memory_space<vmem>>, vector<1x1x8x8x4xf32>
    %235 = vector.shape_cast %234 : vector<1x1x8x8x4xf32> to vector<8x8x4xf32>
    %c0_533 = arith.constant 0 : index
    %c5_534 = arith.constant 5 : index
    %c1_535 = arith.constant 1 : index
    %c2_536 = arith.constant 2 : index
    %c0_537 = arith.constant 0 : index
    %236 = vector.load %arg2[%c0_533, %c5_534, %c1_535, %c2_536, %c0_537] : memref<1x6x10x10x4xf32, #tpu.memory_space<vmem>>, vector<1x1x8x8x4xf32>
    %237 = vector.shape_cast %236 : vector<1x1x8x8x4xf32> to vector<8x8x4xf32>
    %c0_538 = arith.constant 0 : index
    %c5_539 = arith.constant 5 : index
    %c2_540 = arith.constant 2 : index
    %c0_541 = arith.constant 0 : index
    %c0_542 = arith.constant 0 : index
    %238 = vector.load %arg2[%c0_538, %c5_539, %c2_540, %c0_541, %c0_542] : memref<1x6x10x10x4xf32, #tpu.memory_space<vmem>>, vector<1x1x8x8x4xf32>
    %239 = vector.shape_cast %238 : vector<1x1x8x8x4xf32> to vector<8x8x4xf32>
    %c0_543 = arith.constant 0 : index
    %c5_544 = arith.constant 5 : index
    %c2_545 = arith.constant 2 : index
    %c1_546 = arith.constant 1 : index
    %c0_547 = arith.constant 0 : index
    %240 = vector.load %arg2[%c0_543, %c5_544, %c2_545, %c1_546, %c0_547] : memref<1x6x10x10x4xf32, #tpu.memory_space<vmem>>, vector<1x1x8x8x4xf32>
    %241 = vector.shape_cast %240 : vector<1x1x8x8x4xf32> to vector<8x8x4xf32>
    %c0_548 = arith.constant 0 : index
    %c5_549 = arith.constant 5 : index
    %c2_550 = arith.constant 2 : index
    %c2_551 = arith.constant 2 : index
    %c0_552 = arith.constant 0 : index
    %242 = vector.load %arg2[%c0_548, %c5_549, %c2_550, %c2_551, %c0_552] : memref<1x6x10x10x4xf32, #tpu.memory_space<vmem>>, vector<1x1x8x8x4xf32>
    %243 = vector.shape_cast %242 : vector<1x1x8x8x4xf32> to vector<8x8x4xf32>
    %244 = tpu.concatenate %191, %193, %195, %197, %199, %201, %203, %205, %207, %209, %211, %213, %215, %217, %219, %221 in 2 : vector<8x8x4xf32>, vector<8x8x4xf32>, vector<8x8x4xf32>, vector<8x8x4xf32>, vector<8x8x4xf32>, vector<8x8x4xf32>, vector<8x8x4xf32>, vector<8x8x4xf32>, vector<8x8x4xf32>, vector<8x8x4xf32>, vector<8x8x4xf32>, vector<8x8x4xf32>, vector<8x8x4xf32>, vector<8x8x4xf32>, vector<8x8x4xf32>, vector<8x8x4xf32> -> vector<8x8x64xf32>
    %245 = tpu.concatenate %223, %225, %227, %229, %231, %233, %235, %237, %239, %241, %243 in 2 : vector<8x8x4xf32>, vector<8x8x4xf32>, vector<8x8x4xf32>, vector<8x8x4xf32>, vector<8x8x4xf32>, vector<8x8x4xf32>, vector<8x8x4xf32>, vector<8x8x4xf32>, vector<8x8x4xf32>, vector<8x8x4xf32>, vector<8x8x4xf32> -> vector<8x8x44xf32>
    %246 = tpu.concatenate %244, %245 in 2 : vector<8x8x64xf32>, vector<8x8x44xf32> -> vector<8x8x108xf32>
    %247 = vector.shape_cast %246 : vector<8x8x108xf32> to vector<64x108xf32>
    %cst_553 = arith.constant dense<0.000000e+00> : vector<64x128xf32>
    %248 = tpu.matmul %247, %0, %cst_553 {dimension_numbers = #tpu.dot_dimension_numbers<[1], [0], [0], [1], [0, 0, 1, 1], [], []>} : vector<64x108xf32>, vector<108x128xf32>, vector<64x128xf32> -> vector<64x128xf32>
    %249 = vector.shape_cast %248 : vector<64x128xf32> to vector<8x8x128xf32>
    %c0_554 = arith.constant 0 : index
    %c3_555 = arith.constant 3 : index
    %c0_556 = arith.constant 0 : index
    %c0_557 = arith.constant 0 : index
    %c0_558 = arith.constant 0 : index
    %250 = vector.load %arg4[%c0_554, %c3_555, %c0_556, %c0_557, %c0_558] : memref<1x4x8x8x128xf32, #tpu.memory_space<vmem>>, vector<1x1x8x8x128xf32>
    %251 = vector.shape_cast %250 : vector<1x1x8x8x128xf32> to vector<8x8x128xf32>
    %252 = vector.shape_cast %249 : vector<8x8x128xf32> to vector<1x1x8x8x128xf32>
    tpu.vector_store %arg4[%c0_554, %c3_555, %c0_556, %c0_557, %c0_558], %252 {strides = array<i32>} : memref<1x4x8x8x128xf32, #tpu.memory_space<vmem>>, vector<1x1x8x8x128xf32>,
    return
  }
  func.func @transform_0(%arg0: i32, %arg1: i32) -> (i32, i32, i32, i32, i32) {
    %c2_i32 = arith.constant 2 : i32
    %0 = arith.muli %arg0, %c2_i32 : i32
    %1 = arith.addi %0, %arg1 : i32
    %c0_i32 = arith.constant 0 : i32
    %c0_i32_0 = arith.constant 0 : i32
    %c0_i32_1 = arith.constant 0 : i32
    %c0_i32_2 = arith.constant 0 : i32
    %c0_i32_3 = arith.constant 0 : i32
    return %1, %c0_i32, %c0_i32_0, %c0_i32_1, %c0_i32_2 : i32, i32, i32, i32, i32
  }
  func.func @transform_1(%arg0: i32, %arg1: i32) -> (i32, i32) {
    %c0_i32 = arith.constant 0 : i32
    %c0_i32_0 = arith.constant 0 : i32
    %c0_i32_1 = arith.constant 0 : i32
    return %c0_i32, %c0_i32_0 : i32, i32
  }
  func.func @transform_2(%arg0: i32, %arg1: i32) -> (i32, i32, i32, i32, i32) {
    %c2_i32 = arith.constant 2 : i32
    %0 = arith.muli %arg0, %c2_i32 : i32
    %1 = arith.addi %0, %arg1 : i32
    %c0_i32 = arith.constant 0 : i32
    %c0_i32_0 = arith.constant 0 : i32
    %c0_i32_1 = arith.constant 0 : i32
    %c0_i32_2 = arith.constant 0 : i32
    %c0_i32_3 = arith.constant 0 : i32
    return %1, %c0_i32, %c0_i32_0, %c0_i32_1, %c0_i32_2 : i32, i32, i32, i32, i32
  }
}

</mosaic_0001>

<llo_original>
// kernel: tpu_custom_call.1
$region0: #{tpu_custom_call.1}
  #allocation0 [shape = 'u32[]', space=smem, size = 0x4, offset = 0x4, fixed_abs, tag = 'smem constant byte address 0x4 - core index']
  #allocation1 [shape = 'u32[144,128]{1,0:T(1,128)}', space=vmem, size = 0x12000, scoped, tag = 'internal scratch']
  %s0 = inlined_call_operand.vmem [shape: f32[4,6,10,10,4], index: 0, kind: input, shape index: {}]
  %s1 = inlined_call_operand.vmem [shape: f32[108,128], index: 1, kind: input, shape index: {}]
  %s2 = inlined_call_operand.hbm [shape: f32[4,4,8,8,128], index: 2, kind: output, shape index: {}]
  %s3 = sld [smem:[#allocation0]]
  $region41: #{tpu_custom_call.1} parent=0
    _
  %s5 = ssub.s32 1, %s3
  %s6 = scalar_select 0, %s5, %s3
  $region1: #{tpu_custom_call.1} parent=0
    #allocation2 [shape = 'u8[262144]{0}', space=vmem, size = 0x40000, scoped, tag = 'output window, operand 0']
    #allocation3 [shape = 's32[2]{0}', space=sflag, size = 0x8, scoped, tag = 'scoped memory for tpu_custom_call.1']
    %7 = vsyncpa [#allocation3], 0
    %s8 = scalar_lea.sflag [#allocation3], 1
    %9 = vsyncpa %s8, 0
    loop: start=0, step=1, limit=6
    $region2: #{tpu_custom_call.1} parent=1 // loop_pre_header
      _
    $region3: #{tpu_custom_call.1} parent=1 // loop_header
      %s11 = sphi 0, %s15
      %p12 = scmp.ge.s32.totalorder %s11, 6
      %s18 = sphi 0, %s30
      %s19 = sphi 0, %s26
      %s20 = sphi 0, %s18
      %s21 = sphi 0, %s19
      %s22 = sphi 0, %s20
      %s23 = sphi 0, %s21
      %s37 = sphi 0, %s39
      %s40 = sphi 0, %s37
      %s41 = sphi 0, %s40
      %s57 = sphi 0, %s41
      %s61 = sphi 0, %s61
      %s63 = sphi 0, %s61
      %s64 = sphi 0, %s63
      %s78 = sphi 0, %s64
      %s88 = sphi 0, %s90
      %s91 = sphi 0, %s88
      %s92 = sphi 0, %s91
      %s108 = sphi 0, %s92
    $region4: #{tpu_custom_call.1} parent=1 // loop_header_branch
      %14 = sbr.rel (%p12) target = $region8
    $region5: #{tpu_custom_call.1} parent=1 // loop_body
      %s16 = ssub.s32 %s11, 1
      %s17 = ssub.s32 %s11, 2
      %s24 = sadd.s32 1, %s19
      %p25 = scmp.ge.s32.totalorder %s24, 2
      %s26 = scalar_select %p25, 0, %s24
      %s27 = sadd.s32 1, %s18
      %s28 = scalar_select %p25, %s27, %s18
      %p29 = scmp.ge.s32.totalorder %s28, 2
      %s30 = scalar_select %p29, 0, %s28
      %s31 = smul.u32 %s18, 2
      %s32 = sadd.s32 %s31, %s19
      %s33 = smul.u32 %s30, 2
      %s34 = sadd.s32 %s33, %s26
      %s35 = ssub.s32 %s32, %s34
      %p36 = scmp.eq.s32.totalorder %s35, 0
      %s38 = sadd.s32 %s37, 1
      %s39 = scalar_select %p36, %s37, %s38
      %p42 = pneg %p36
      %p43 = scmp.eq.s32.totalorder %s11, 3
      %p44 = por %p42, %p43
      %p45 = scmp.ne.s32.totalorder %s37, %s40
      %p46 = scmp.eq.s32.totalorder %s11, 0
      %p47 = por %p45, %p46
      %p48 = scmp.ne.s32.totalorder %s37, %s40
      %p49 = scmp.eq.s32.totalorder %s16, 3
      %p50 = por %p48, %p49
      %p51 = scmp.ne.s32.totalorder %s40, %s41
      %p52 = scmp.eq.s32.totalorder %s16, 0
      %p53 = por %p51, %p52
      %p54 = scmp.ne.s32.totalorder %s40, %s41
      %p55 = scmp.eq.s32.totalorder %s17, 3
      %p56 = por %p54, %p55
      %p58 = scmp.ne.s32.totalorder %s41, %s57
      %p59 = scmp.eq.s32.totalorder %s17, 0
      %p60 = por %p58, %p59
      %s62 = sadd.s32 %s61, 1
      %p65 = scmp.eq.s32.totalorder %s11, 3
      %p66 = scmp.ne.s32.totalorder %s61, %s63
      %p67 = scmp.eq.s32.totalorder %s11, 0
      %p68 = por %p66, %p67
      %p69 = scmp.ne.s32.totalorder %s61, %s63
      %p70 = scmp.eq.s32.totalorder %s16, 3
      %p71 = por %p69, %p70
      %p72 = scmp.ne.s32.totalorder %s63, %s64
      %p73 = scmp.eq.s32.totalorder %s16, 0
      %p74 = por %p72, %p73
      %p75 = scmp.ne.s32.totalorder %s63, %s64
      %p76 = scmp.eq.s32.totalorder %s17, 3
      %p77 = por %p75, %p76
      %p79 = scmp.ne.s32.totalorder %s64, %s78
      %p80 = scmp.eq.s32.totalorder %s17, 0
      %p81 = por %p79, %p80
      %s82 = smul.u32 %s18, 2
      %s83 = sadd.s32 %s82, %s19
      %s84 = smul.u32 %s30, 2
      %s85 = sadd.s32 %s84, %s26
      %s86 = ssub.s32 %s83, %s85
      %p87 = scmp.eq.s32.totalorder %s86, 0
      %s89 = sadd.s32 %s88, 1
      %s90 = scalar_select %p87, %s88, %s89
      %p93 = pneg %p87
      %p94 = scmp.eq.s32.totalorder %s11, 3
      %p95 = por %p93, %p94
      %p96 = scmp.ne.s32.totalorder %s88, %s91
      %p97 = scmp.eq.s32.totalorder %s11, 0
      %p98 = por %p96, %p97
      %p99 = scmp.ne.s32.totalorder %s88, %s91
      %p100 = scmp.eq.s32.totalorder %s16, 3
      %p101 = por %p99, %p100
      %p102 = scmp.ne.s32.totalorder %s91, %s92
      %p103 = scmp.eq.s32.totalorder %s16, 0
      %p104 = por %p102, %p103
      %p105 = scmp.ne.s32.totalorder %s91, %s92
      %p106 = scmp.eq.s32.totalorder %s17, 3
      %p107 = por %p105, %p106
      %p109 = scmp.ne.s32.totalorder %s92, %s108
      %p110 = scmp.eq.s32.totalorder %s17, 0
      %p111 = por %p109, %p110
      %p112 = scmp.le.s32.totalorder 1, %s11
      %p113 = scmp.lt.s32.totalorder %s11, 5
      %p114 = pnand %p112, %p113
      %p115 = pneg %p114
      // Predicated region
      $region9: #{tpu_custom_call.1} parent=5 // pred_check
        _
      $region10: #{tpu_custom_call.1} parent=5 // pred_check_branch
        %117 = sbr.rel (%p114) target = $region12
      $region11: #{tpu_custom_call.1} parent=5 // pred_region
        %s118 = ssub.s32 %s11, 1
        // Predicated region
        $region13: #{tpu_custom_call.1} parent=11 // pred_check
          %p119 = pneg %p74
        $region14: #{tpu_custom_call.1} parent=11 // pred_check_branch
          %121 = sbr.rel (%p119) target = $region16
        $region15: #{tpu_custom_call.1} parent=11 // pred_region
          _
        $region16: #{tpu_custom_call.1} parent=11 // pred_fallthru
          _
      $region12: #{tpu_custom_call.1} parent=5 // pred_fallthru
        _
      %p122 = scmp.lt.s32.totalorder %s11, 4
      // Predicated region
      $region17: #{tpu_custom_call.1} parent=5 // pred_check
        %p123 = pneg %p122
      $region18: #{tpu_custom_call.1} parent=5 // pred_check_branch
        %125 = sbr.rel (%p123) target = $region20
      $region19: #{tpu_custom_call.1} parent=5 // pred_region
        // Predicated region
        $region21: #{tpu_custom_call.1} parent=19 // pred_check
          %p126 = pneg %p47
        $region22: #{tpu_custom_call.1} parent=19 // pred_check_branch
          %128 = sbr.rel (%p126) target = $region24
        $region23: #{tpu_custom_call.1} parent=19 // pred_region
          %s129 = smul.u32 %s18, 2
          %s130 = sadd.s32 %s129, %s19
          %p131 = scmp.lt.s32.totalorder %s130, 3
          %s132 = scalar_select %p131, %s130, 3
          %s133 = smul.addr %s132, 120
          %s134 = smul.addr %s133, 8
          %s135 = scalar_lea.vmem %s0, %s134
          %s136 = smul.u32 %s18, 2
          %s137 = sadd.s32 %s136, %s19
        $region24: #{tpu_custom_call.1} parent=19 // pred_fallthru
          _
      $region20: #{tpu_custom_call.1} parent=5 // pred_fallthru
        _
      %p138 = scmp.le.s32.totalorder 1, %s11
      %p139 = scmp.lt.s32.totalorder %s11, 5
      %p140 = pnand %p138, %p139
      %p141 = pneg %p140
      // Predicated region
      $region25: #{tpu_custom_call.1} parent=5 // pred_check
        _
      $region26: #{tpu_custom_call.1} parent=5 // pred_check_branch
        %143 = sbr.rel (%p140) target = $region28
      $region27: #{tpu_custom_call.1} parent=5 // pred_region
        %s144 = ssub.s32 %s11, 1
        %s145 = smul.u32 %s20, 2
        %s146 = sadd.s32 %s145, %s21
        %p147 = scmp.lt.s32.totalorder %s146, 3
        %s148 = scalar_select %p147, %s146, 3
        %s149 = smul.addr %s148, 120
        %s150 = smul.addr %s149, 8
        %s151 = scalar_lea.vmem %s0, %s150
        %p152 = pneg %p53
        %p153 = pneg %p50
        %p154 = pneg %p74
        %p155 = pneg %p71
        %p156 = pneg %p104
        %p157 = pneg %p101
        %s158 = sand.u32 %s91, 1
        %s159 = scalar_lea.sflag [#allocation3], %s158
        %s160 = sand.u32 %s91, 1
        %s161 = smul.addr %s160, 256
        %s162 = scalar_lea.vmem [#allocation2], %s161
        %s163 = smul.u32 %s20, 2
        %s164 = sadd.s32 %s163, %s21
        %p165 = scmp.lt.s32.totalorder %s164, 3
        %s166 = scalar_select %p165, %s164, 3
        %s167 = smul.addr %s166, 120
        %s168 = smul.addr %s167, 8
        %s169 = scalar_lea.vmem %s0, %s168
        %s170 = smul.u32 %s20, 2
        %s171 = sadd.s32 %s170, %s21
        %s172 = smul.u32 %s20, 2
        %s173 = sadd.s32 %s172, %s21
        %v174 = vld [vmem:[%s1] sm:$0xff]
        %v175 = vld [vmem:[%s1 + $0x8] sm:$0xff]
        %v176 = vld [vmem:[%s1 + $0x10] sm:$0xff]
        %v177 = vld [vmem:[%s1 + $0x18] sm:$0xff]
        %v178 = vld [vmem:[%s1 + $0x20] sm:$0xff]
        %v179 = vld [vmem:[%s1 + $0x28] sm:$0xff]
        %v180 = vld [vmem:[%s1 + $0x30] sm:$0xff]
        %v181 = vld [vmem:[%s1 + $0x38] sm:$0xff]
        %v182 = vld [vmem:[%s1 + $0x40] sm:$0xff]
        %v183 = vld [vmem:[%s1 + $0x48] sm:$0xff]
        %v184 = vld [vmem:[%s1 + $0x50] sm:$0xff]
        %v185 = vld [vmem:[%s1 + $0x58] sm:$0xff]
        %v186 = vld [vmem:[%s1 + $0x60] sm:$0xff]
        %v187 = vld [vmem:[%s1 + $0x68] sm:$0xf]
        %v188 = vld [vmem:[%s169] sm:$0xff]
        %v189 = vld [vmem:[%s169 + $0x10] sm:$0xff]
        %v190 = vld [vmem:[%s169 + $0x20] sm:$0xff]
        %v191 = vld [vmem:[%s169 + $0x30] sm:$0xff]
        %v192 = vld [vmem:[%s169 + $0x40] sm:$0xff]
        %v193 = vld [vmem:[%s169 + $0x50] sm:$0xff]
        %v194 = vld [vmem:[%s169 + $0x60] sm:$0xff]
        %v195 = vld [vmem:[%s169 + $0x70] sm:$0xff]
        %v196 = vld [vmem:[%s169 + $0x1] sm:$0xff]
        %v197 = vld [vmem:[%s169 + $0x11] sm:$0xff]
        %v198 = vld [vmem:[%s169 + $0x21] sm:$0xff]
        %v199 = vld [vmem:[%s169 + $0x31] sm:$0xff]
        %v200 = vld [vmem:[%s169 + $0x41] sm:$0xff]
        %v201 = vld [vmem:[%s169 + $0x51] sm:$0xff]
        %v202 = vld [vmem:[%s169 + $0x61] sm:$0xff]
        %v203 = vld [vmem:[%s169 + $0x71] sm:$0xff]
        %v204 = vld [vmem:[%s169 + $0x2] sm:$0xff]
        %v205 = vld [vmem:[%s169 + $0x12] sm:$0xff]
        %v206 = vld [vmem:[%s169 + $0x22] sm:$0xff]
        %v207 = vld [vmem:[%s169 + $0x32] sm:$0xff]
        %v208 = vld [vmem:[%s169 + $0x42] sm:$0xff]
        %v209 = vld [vmem:[%s169 + $0x52] sm:$0xff]
        %v210 = vld [vmem:[%s169 + $0x62] sm:$0xff]
        %v211 = vld [vmem:[%s169 + $0x72] sm:$0xff]
        %s212 = scalar_lea.vmem %s169, 16
        %v213 = vld [vmem:[%s212] sm:$0xff]
        %v214 = vld [vmem:[%s212 + $0x10] sm:$0xff]
        %v215 = vld [vmem:[%s212 + $0x20] sm:$0xff]
        %v216 = vld [vmem:[%s212 + $0x30] sm:$0xff]
        %v217 = vld [vmem:[%s212 + $0x40] sm:$0xff]
        %v218 = vld [vmem:[%s212 + $0x50] sm:$0xff]
        %v219 = vld [vmem:[%s212 + $0x60] sm:$0xff]
        %v220 = vld [vmem:[%s212 + $0x70] sm:$0xff]
        %v221 = vld [vmem:[%s212 + $0x1] sm:$0xff]
        %v222 = vld [vmem:[%s212 + $0x11] sm:$0xff]
        %v223 = vld [vmem:[%s212 + $0x21] sm:$0xff]
        %v224 = vld [vmem:[%s212 + $0x31] sm:$0xff]
        %v225 = vld [vmem:[%s212 + $0x41] sm:$0xff]
        %v226 = vld [vmem:[%s212 + $0x51] sm:$0xff]
        %v227 = vld [vmem:[%s212 + $0x61] sm:$0xff]
        %v228 = vld [vmem:[%s212 + $0x71] sm:$0xff]
        %v229 = vld [vmem:[%s212 + $0x2] sm:$0xff]
        %v230 = vld [vmem:[%s212 + $0x12] sm:$0xff]
        %v231 = vld [vmem:[%s212 + $0x22] sm:$0xff]
        %v232 = vld [vmem:[%s212 + $0x32] sm:$0xff]
        %v233 = vld [vmem:[%s212 + $0x42] sm:$0xff]
        %v234 = vld [vmem:[%s212 + $0x52] sm:$0xff]
        %v235 = vld [vmem:[%s212 + $0x62] sm:$0xff]
        %v236 = vld [vmem:[%s212 + $0x72] sm:$0xff]
        %s237 = scalar_lea.vmem %s169, 32
        %v238 = vld [vmem:[%s237] sm:$0xff]
        %v239 = vld [vmem:[%s237 + $0x10] sm:$0xff]
        %v240 = vld [vmem:[%s237 + $0x20] sm:$0xff]
        %v241 = vld [vmem:[%s237 + $0x30] sm:$0xff]
        %v242 = vld [vmem:[%s237 + $0x40] sm:$0xff]
        %v243 = vld [vmem:[%s237 + $0x50] sm:$0xff]
        %v244 = vld [vmem:[%s237 + $0x60] sm:$0xff]
        %v245 = vld [vmem:[%s237 + $0x70] sm:$0xff]
        %v246 = vld [vmem:[%s237 + $0x1] sm:$0xff]
        %v247 = vld [vmem:[%s237 + $0x11] sm:$0xff]
        %v248 = vld [vmem:[%s237 + $0x21] sm:$0xff]
        %v249 = vld [vmem:[%s237 + $0x31] sm:$0xff]
        %v250 = vld [vmem:[%s237 + $0x41] sm:$0xff]
        %v251 = vld [vmem:[%s237 + $0x51] sm:$0xff]
        %v252 = vld [vmem:[%s237 + $0x61] sm:$0xff]
        %v253 = vld [vmem:[%s237 + $0x71] sm:$0xff]
        %v254 = vld [vmem:[%s237 + $0x2] sm:$0xff]
        %v255 = vld [vmem:[%s237 + $0x12] sm:$0xff]
        %v256 = vld [vmem:[%s237 + $0x22] sm:$0xff]
        %v257 = vld [vmem:[%s237 + $0x32] sm:$0xff]
        %v258 = vld [vmem:[%s237 + $0x42] sm:$0xff]
        %v259 = vld [vmem:[%s237 + $0x52] sm:$0xff]
        %v260 = vld [vmem:[%s237 + $0x62] sm:$0xff]
        %v261 = vld [vmem:[%s237 + $0x72] sm:$0xff]
        %s262 = scalar_lea.vmem %s169, 160
        %v263 = vld [vmem:[%s262] sm:$0xff]
        %v264 = vld [vmem:[%s262 + $0x10] sm:$0xff]
        %v265 = vld [vmem:[%s262 + $0x20] sm:$0xff]
        %v266 = vld [vmem:[%s262 + $0x30] sm:$0xff]
        %v267 = vld [vmem:[%s262 + $0x40] sm:$0xff]
        %v268 = vld [vmem:[%s262 + $0x50] sm:$0xff]
        %v269 = vld [vmem:[%s262 + $0x60] sm:$0xff]
        %v270 = vld [vmem:[%s262 + $0x70] sm:$0xff]
        %v271 = vld [vmem:[%s262 + $0x1] sm:$0xff]
        %v272 = vld [vmem:[%s262 + $0x11] sm:$0xff]
        %v273 = vld [vmem:[%s262 + $0x21] sm:$0xff]
        %v274 = vld [vmem:[%s262 + $0x31] sm:$0xff]
        %v275 = vld [vmem:[%s262 + $0x41] sm:$0xff]
        %v276 = vld [vmem:[%s262 + $0x51] sm:$0xff]
        %v277 = vld [vmem:[%s262 + $0x61] sm:$0xff]
        %v278 = vld [vmem:[%s262 + $0x71] sm:$0xff]
        %v279 = vld [vmem:[%s262 + $0x2] sm:$0xff]
        %v280 = vld [vmem:[%s262 + $0x12] sm:$0xff]
        %v281 = vld [vmem:[%s262 + $0x22] sm:$0xff]
        %v282 = vld [vmem:[%s262 + $0x32] sm:$0xff]
        %v283 = vld [vmem:[%s262 + $0x42] sm:$0xff]
        %v284 = vld [vmem:[%s262 + $0x52] sm:$0xff]
        %v285 = vld [vmem:[%s262 + $0x62] sm:$0xff]
        %v286 = vld [vmem:[%s262 + $0x72] sm:$0xff]
        %s287 = scalar_lea.vmem %s169, 176
        %v288 = vld [vmem:[%s287] sm:$0xff]
        %v289 = vld [vmem:[%s287 + $0x10] sm:$0xff]
        %v290 = vld [vmem:[%s287 + $0x20] sm:$0xff]
        %v291 = vld [vmem:[%s287 + $0x30] sm:$0xff]
        %v292 = vld [vmem:[%s287 + $0x40] sm:$0xff]
        %v293 = vld [vmem:[%s287 + $0x50] sm:$0xff]
        %v294 = vld [vmem:[%s287 + $0x60] sm:$0xff]
        %v295 = vld [vmem:[%s287 + $0x70] sm:$0xff]
        %v296 = vld [vmem:[%s287 + $0x1] sm:$0xff]
        %v297 = vld [vmem:[%s287 + $0x11] sm:$0xff]
        %v298 = vld [vmem:[%s287 + $0x21] sm:$0xff]
        %v299 = vld [vmem:[%s287 + $0x31] sm:$0xff]
        %v300 = vld [vmem:[%s287 + $0x41] sm:$0xff]
        %v301 = vld [vmem:[%s287 + $0x51] sm:$0xff]
        %v302 = vld [vmem:[%s287 + $0x61] sm:$0xff]
        %v303 = vld [vmem:[%s287 + $0x71] sm:$0xff]
        %v304 = vld [vmem:[%s287 + $0x2] sm:$0xff]
        %v305 = vld [vmem:[%s287 + $0x12] sm:$0xff]
        %v306 = vld [vmem:[%s287 + $0x22] sm:$0xff]
        %v307 = vld [vmem:[%s287 + $0x32] sm:$0xff]
        %v308 = vld [vmem:[%s287 + $0x42] sm:$0xff]
        %v309 = vld [vmem:[%s287 + $0x52] sm:$0xff]
        %v310 = vld [vmem:[%s287 + $0x62] sm:$0xff]
        %v311 = vld [vmem:[%s287 + $0x72] sm:$0xff]
        %s312 = scalar_lea.vmem %s169, 192
        %v313 = vld [vmem:[%s312] sm:$0xff]
        %v314 = vld [vmem:[%s312 + $0x10] sm:$0xff]
        %v315 = vld [vmem:[%s312 + $0x20] sm:$0xff]
        %v316 = vld [vmem:[%s312 + $0x30] sm:$0xff]
        %v317 = vld [vmem:[%s312 + $0x40] sm:$0xff]
        %v318 = vld [vmem:[%s312 + $0x50] sm:$0xff]
        %v319 = vld [vmem:[%s312 + $0x60] sm:$0xff]
        %v320 = vld [vmem:[%s312 + $0x70] sm:$0xff]
        %v321 = vld [vmem:[%s312 + $0x1] sm:$0xff]
        %v322 = vld [vmem:[%s312 + $0x11] sm:$0xff]
        %v323 = vld [vmem:[%s312 + $0x21] sm:$0xff]
        %v324 = vld [vmem:[%s312 + $0x31] sm:$0xff]
        %v325 = vld [vmem:[%s312 + $0x41] sm:$0xff]
        %v326 = vld [vmem:[%s312 + $0x51] sm:$0xff]
        %v327 = vld [vmem:[%s312 + $0x61] sm:$0xff]
        %v328 = vld [vmem:[%s312 + $0x71] sm:$0xff]
        %v329 = vld [vmem:[%s312 + $0x2] sm:$0xff]
        %v330 = vld [vmem:[%s312 + $0x12] sm:$0xff]
        %v331 = vld [vmem:[%s312 + $0x22] sm:$0xff]
        %v332 = vld [vmem:[%s312 + $0x32] sm:$0xff]
        %v333 = vld [vmem:[%s312 + $0x42] sm:$0xff]
        %v334 = vld [vmem:[%s312 + $0x52] sm:$0xff]
        %v335 = vld [vmem:[%s312 + $0x62] sm:$0xff]
        %v336 = vld [vmem:[%s312 + $0x72] sm:$0xff]
        %s337 = scalar_lea.vmem %s169, 320
        %v338 = vld [vmem:[%s337] sm:$0xff]
        %v339 = vld [vmem:[%s337 + $0x10] sm:$0xff]
        %v340 = vld [vmem:[%s337 + $0x20] sm:$0xff]
        %v341 = vld [vmem:[%s337 + $0x30] sm:$0xff]
        %v342 = vld [vmem:[%s337 + $0x40] sm:$0xff]
        %v343 = vld [vmem:[%s337 + $0x50] sm:$0xff]
        %v344 = vld [vmem:[%s337 + $0x60] sm:$0xff]
        %v345 = vld [vmem:[%s337 + $0x70] sm:$0xff]
        %v346 = vld [vmem:[%s337 + $0x1] sm:$0xff]
        %v347 = vld [vmem:[%s337 + $0x11] sm:$0xff]
        %v348 = vld [vmem:[%s337 + $0x21] sm:$0xff]
        %v349 = vld [vmem:[%s337 + $0x31] sm:$0xff]
        %v350 = vld [vmem:[%s337 + $0x41] sm:$0xff]
        %v351 = vld [vmem:[%s337 + $0x51] sm:$0xff]
        %v352 = vld [vmem:[%s337 + $0x61] sm:$0xff]
        %v353 = vld [vmem:[%s337 + $0x71] sm:$0xff]
        %v354 = vld [vmem:[%s337 + $0x2] sm:$0xff]
        %v355 = vld [vmem:[%s337 + $0x12] sm:$0xff]
        %v356 = vld [vmem:[%s337 + $0x22] sm:$0xff]
        %v357 = vld [vmem:[%s337 + $0x32] sm:$0xff]
        %v358 = vld [vmem:[%s337 + $0x42] sm:$0xff]
        %v359 = vld [vmem:[%s337 + $0x52] sm:$0xff]
        %v360 = vld [vmem:[%s337 + $0x62] sm:$0xff]
        %v361 = vld [vmem:[%s337 + $0x72] sm:$0xff]
        %s362 = scalar_lea.vmem %s169, 336
        %v363 = vld [vmem:[%s362] sm:$0xff]
        %v364 = vld [vmem:[%s362 + $0x10] sm:$0xff]
        %v365 = vld [vmem:[%s362 + $0x20] sm:$0xff]
        %v366 = vld [vmem:[%s362 + $0x30] sm:$0xff]
        %v367 = vld [vmem:[%s362 + $0x40] sm:$0xff]
        %v368 = vld [vmem:[%s362 + $0x50] sm:$0xff]
        %v369 = vld [vmem:[%s362 + $0x60] sm:$0xff]
        %v370 = vld [vmem:[%s362 + $0x70] sm:$0xff]
        %v371 = vld [vmem:[%s362 + $0x1] sm:$0xff]
        %v372 = vld [vmem:[%s362 + $0x11] sm:$0xff]
        %v373 = vld [vmem:[%s362 + $0x21] sm:$0xff]
        %v374 = vld [vmem:[%s362 + $0x31] sm:$0xff]
        %v375 = vld [vmem:[%s362 + $0x41] sm:$0xff]
        %v376 = vld [vmem:[%s362 + $0x51] sm:$0xff]
        %v377 = vld [vmem:[%s362 + $0x61] sm:$0xff]
        %v378 = vld [vmem:[%s362 + $0x71] sm:$0xff]
        %v379 = vld [vmem:[%s362 + $0x2] sm:$0xff]
        %v380 = vld [vmem:[%s362 + $0x12] sm:$0xff]
        %v381 = vld [vmem:[%s362 + $0x22] sm:$0xff]
        %v382 = vld [vmem:[%s362 + $0x32] sm:$0xff]
        %v383 = vld [vmem:[%s362 + $0x42] sm:$0xff]
        %v384 = vld [vmem:[%s362 + $0x52] sm:$0xff]
        %v385 = vld [vmem:[%s362 + $0x62] sm:$0xff]
        %v386 = vld [vmem:[%s362 + $0x72] sm:$0xff]
        %s387 = scalar_lea.vmem %s169, 352
        %v388 = vld [vmem:[%s387] sm:$0xff]
        %v389 = vld [vmem:[%s387 + $0x10] sm:$0xff]
        %v390 = vld [vmem:[%s387 + $0x20] sm:$0xff]
        %v391 = vld [vmem:[%s387 + $0x30] sm:$0xff]
        %v392 = vld [vmem:[%s387 + $0x40] sm:$0xff]
        %v393 = vld [vmem:[%s387 + $0x50] sm:$0xff]
        %v394 = vld [vmem:[%s387 + $0x60] sm:$0xff]
        %v395 = vld [vmem:[%s387 + $0x70] sm:$0xff]
        %v396 = vld [vmem:[%s387 + $0x1] sm:$0xff]
        %v397 = vld [vmem:[%s387 + $0x11] sm:$0xff]
        %v398 = vld [vmem:[%s387 + $0x21] sm:$0xff]
        %v399 = vld [vmem:[%s387 + $0x31] sm:$0xff]
        %v400 = vld [vmem:[%s387 + $0x41] sm:$0xff]
        %v401 = vld [vmem:[%s387 + $0x51] sm:$0xff]
        %v402 = vld [vmem:[%s387 + $0x61] sm:$0xff]
        %v403 = vld [vmem:[%s387 + $0x71] sm:$0xff]
        %v404 = vld [vmem:[%s387 + $0x2] sm:$0xff]
        %v405 = vld [vmem:[%s387 + $0x12] sm:$0xff]
        %v406 = vld [vmem:[%s387 + $0x22] sm:$0xff]
        %v407 = vld [vmem:[%s387 + $0x32] sm:$0xff]
        %v408 = vld [vmem:[%s387 + $0x42] sm:$0xff]
        %v409 = vld [vmem:[%s387 + $0x52] sm:$0xff]
        %v410 = vld [vmem:[%s387 + $0x62] sm:$0xff]
        %v411 = vld [vmem:[%s387 + $0x72] sm:$0xff]
        %420 = vrot.lane.b32.xlu0 %v196, 4
        %v421 = vpop.permute.xlu0 %420
        %422 = vrot.lane.b32.xlu0 %v197, 4
        %v423 = vpop.permute.xlu0 %422
        %424 = vrot.lane.b32.xlu0 %v198, 4
        %v425 = vpop.permute.xlu0 %424
        %426 = vrot.lane.b32.xlu0 %v199, 4
        %v427 = vpop.permute.xlu0 %426
        %428 = vrot.lane.b32.xlu0 %v200, 4
        %v429 = vpop.permute.xlu0 %428
        %430 = vrot.lane.b32.xlu0 %v201, 4
        %v431 = vpop.permute.xlu0 %430
        %432 = vrot.lane.b32.xlu0 %v202, 4
        %v433 = vpop.permute.xlu0 %432
        %434 = vrot.lane.b32.xlu0 %v203, 4
        %v435 = vpop.permute.xlu0 %434
        %452 = vrot.lane.b32.xlu0 %v204, 8
        %v453 = vpop.permute.xlu0 %452
        %454 = vrot.lane.b32.xlu0 %v205, 8
        %v455 = vpop.permute.xlu0 %454
        %456 = vrot.lane.b32.xlu0 %v206, 8
        %v457 = vpop.permute.xlu0 %456
        %458 = vrot.lane.b32.xlu0 %v207, 8
        %v459 = vpop.permute.xlu0 %458
        %460 = vrot.lane.b32.xlu0 %v208, 8
        %v461 = vpop.permute.xlu0 %460
        %462 = vrot.lane.b32.xlu0 %v209, 8
        %v463 = vpop.permute.xlu0 %462
        %464 = vrot.lane.b32.xlu0 %v210, 8
        %v465 = vpop.permute.xlu0 %464
        %466 = vrot.lane.b32.xlu0 %v211, 8
        %v467 = vpop.permute.xlu0 %466
        %484 = vrot.lane.b32.xlu0 %v213, 12
        %v485 = vpop.permute.xlu0 %484
        %486 = vrot.lane.b32.xlu0 %v214, 12
        %v487 = vpop.permute.xlu0 %486
        %488 = vrot.lane.b32.xlu0 %v215, 12
        %v489 = vpop.permute.xlu0 %488
        %490 = vrot.lane.b32.xlu0 %v216, 12
        %v491 = vpop.permute.xlu0 %490
        %492 = vrot.lane.b32.xlu0 %v217, 12
        %v493 = vpop.permute.xlu0 %492
        %494 = vrot.lane.b32.xlu0 %v218, 12
        %v495 = vpop.permute.xlu0 %494
        %496 = vrot.lane.b32.xlu0 %v219, 12
        %v497 = vpop.permute.xlu0 %496
        %498 = vrot.lane.b32.xlu0 %v220, 12
        %v499 = vpop.permute.xlu0 %498
        %516 = vrot.lane.b32.xlu0 %v221, 16
        %v517 = vpop.permute.xlu0 %516
        %518 = vrot.lane.b32.xlu0 %v222, 16
        %v519 = vpop.permute.xlu0 %518
        %520 = vrot.lane.b32.xlu0 %v223, 16
        %v521 = vpop.permute.xlu0 %520
        %522 = vrot.lane.b32.xlu0 %v224, 16
        %v523 = vpop.permute.xlu0 %522
        %524 = vrot.lane.b32.xlu0 %v225, 16
        %v525 = vpop.permute.xlu0 %524
        %526 = vrot.lane.b32.xlu0 %v226, 16
        %v527 = vpop.permute.xlu0 %526
        %528 = vrot.lane.b32.xlu0 %v227, 16
        %v529 = vpop.permute.xlu0 %528
        %530 = vrot.lane.b32.xlu0 %v228, 16
        %v531 = vpop.permute.xlu0 %530
        %548 = vrot.lane.b32.xlu0 %v229, 20
        %v549 = vpop.permute.xlu0 %548
        %550 = vrot.lane.b32.xlu0 %v230, 20
        %v551 = vpop.permute.xlu0 %550
        %552 = vrot.lane.b32.xlu0 %v231, 20
        %v553 = vpop.permute.xlu0 %552
        %554 = vrot.lane.b32.xlu0 %v232, 20
        %v555 = vpop.permute.xlu0 %554
        %556 = vrot.lane.b32.xlu0 %v233, 20
        %v557 = vpop.permute.xlu0 %556
        %558 = vrot.lane.b32.xlu0 %v234, 20
        %v559 = vpop.permute.xlu0 %558
        %560 = vrot.lane.b32.xlu0 %v235, 20
        %v561 = vpop.permute.xlu0 %560
        %562 = vrot.lane.b32.xlu0 %v236, 20
        %v563 = vpop.permute.xlu0 %562
        %580 = vrot.lane.b32.xlu0 %v238, 24
        %v581 = vpop.permute.xlu0 %580
        %582 = vrot.lane.b32.xlu0 %v239, 24
        %v583 = vpop.permute.xlu0 %582
        %584 = vrot.lane.b32.xlu0 %v240, 24
        %v585 = vpop.permute.xlu0 %584
        %586 = vrot.lane.b32.xlu0 %v241, 24
        %v587 = vpop.permute.xlu0 %586
        %588 = vrot.lane.b32.xlu0 %v242, 24
        %v589 = vpop.permute.xlu0 %588
        %590 = vrot.lane.b32.xlu0 %v243, 24
        %v591 = vpop.permute.xlu0 %590
        %592 = vrot.lane.b32.xlu0 %v244, 24
        %v593 = vpop.permute.xlu0 %592
        %594 = vrot.lane.b32.xlu0 %v245, 24
        %v595 = vpop.permute.xlu0 %594
        %612 = vrot.lane.b32.xlu0 %v246, 28
        %v613 = vpop.permute.xlu0 %612
        %614 = vrot.lane.b32.xlu0 %v247, 28
        %v615 = vpop.permute.xlu0 %614
        %616 = vrot.lane.b32.xlu0 %v248, 28
        %v617 = vpop.permute.xlu0 %616
        %618 = vrot.lane.b32.xlu0 %v249, 28
        %v619 = vpop.permute.xlu0 %618
        %620 = vrot.lane.b32.xlu0 %v250, 28
        %v621 = vpop.permute.xlu0 %620
        %622 = vrot.lane.b32.xlu0 %v251, 28
        %v623 = vpop.permute.xlu0 %622
        %624 = vrot.lane.b32.xlu0 %v252, 28
        %v625 = vpop.permute.xlu0 %624
        %626 = vrot.lane.b32.xlu0 %v253, 28
        %v627 = vpop.permute.xlu0 %626
        %644 = vrot.lane.b32.xlu0 %v254, 32
        %v645 = vpop.permute.xlu0 %644
        %646 = vrot.lane.b32.xlu0 %v255, 32
        %v647 = vpop.permute.xlu0 %646
        %648 = vrot.lane.b32.xlu0 %v256, 32
        %v649 = vpop.permute.xlu0 %648
        %650 = vrot.lane.b32.xlu0 %v257, 32
        %v651 = vpop.permute.xlu0 %650
        %652 = vrot.lane.b32.xlu0 %v258, 32
        %v653 = vpop.permute.xlu0 %652
        %654 = vrot.lane.b32.xlu0 %v259, 32
        %v655 = vpop.permute.xlu0 %654
        %656 = vrot.lane.b32.xlu0 %v260, 32
        %v657 = vpop.permute.xlu0 %656
        %658 = vrot.lane.b32.xlu0 %v261, 32
        %v659 = vpop.permute.xlu0 %658
        %676 = vrot.lane.b32.xlu0 %v263, 36
        %v677 = vpop.permute.xlu0 %676
        %678 = vrot.lane.b32.xlu0 %v264, 36
        %v679 = vpop.permute.xlu0 %678
        %680 = vrot.lane.b32.xlu0 %v265, 36
        %v681 = vpop.permute.xlu0 %680
        %682 = vrot.lane.b32.xlu0 %v266, 36
        %v683 = vpop.permute.xlu0 %682
        %684 = vrot.lane.b32.xlu0 %v267, 36
        %v685 = vpop.permute.xlu0 %684
        %686 = vrot.lane.b32.xlu0 %v268, 36
        %v687 = vpop.permute.xlu0 %686
        %688 = vrot.lane.b32.xlu0 %v269, 36
        %v689 = vpop.permute.xlu0 %688
        %690 = vrot.lane.b32.xlu0 %v270, 36
        %v691 = vpop.permute.xlu0 %690
        %708 = vrot.lane.b32.xlu0 %v271, 40
        %v709 = vpop.permute.xlu0 %708
        %710 = vrot.lane.b32.xlu0 %v272, 40
        %v711 = vpop.permute.xlu0 %710
        %712 = vrot.lane.b32.xlu0 %v273, 40
        %v713 = vpop.permute.xlu0 %712
        %714 = vrot.lane.b32.xlu0 %v274, 40
        %v715 = vpop.permute.xlu0 %714
        %716 = vrot.lane.b32.xlu0 %v275, 40
        %v717 = vpop.permute.xlu0 %716
        %718 = vrot.lane.b32.xlu0 %v276, 40
        %v719 = vpop.permute.xlu0 %718
        %720 = vrot.lane.b32.xlu0 %v277, 40
        %v721 = vpop.permute.xlu0 %720
        %722 = vrot.lane.b32.xlu0 %v278, 40
        %v723 = vpop.permute.xlu0 %722
        %740 = vrot.lane.b32.xlu0 %v279, 44
        %v741 = vpop.permute.xlu0 %740
        %742 = vrot.lane.b32.xlu0 %v280, 44
        %v743 = vpop.permute.xlu0 %742
        %744 = vrot.lane.b32.xlu0 %v281, 44
        %v745 = vpop.permute.xlu0 %744
        %746 = vrot.lane.b32.xlu0 %v282, 44
        %v747 = vpop.permute.xlu0 %746
        %748 = vrot.lane.b32.xlu0 %v283, 44
        %v749 = vpop.permute.xlu0 %748
        %750 = vrot.lane.b32.xlu0 %v284, 44
        %v751 = vpop.permute.xlu0 %750
        %752 = vrot.lane.b32.xlu0 %v285, 44
        %v753 = vpop.permute.xlu0 %752
        %754 = vrot.lane.b32.xlu0 %v286, 44
        %v755 = vpop.permute.xlu0 %754
        %772 = vrot.lane.b32.xlu0 %v288, 48
        %v773 = vpop.permute.xlu0 %772
        %774 = vrot.lane.b32.xlu0 %v289, 48
        %v775 = vpop.permute.xlu0 %774
        %776 = vrot.lane.b32.xlu0 %v290, 48
        %v777 = vpop.permute.xlu0 %776
        %778 = vrot.lane.b32.xlu0 %v291, 48
        %v779 = vpop.permute.xlu0 %778
        %780 = vrot.lane.b32.xlu0 %v292, 48
        %v781 = vpop.permute.xlu0 %780
        %782 = vrot.lane.b32.xlu0 %v293, 48
        %v783 = vpop.permute.xlu0 %782
        %784 = vrot.lane.b32.xlu0 %v294, 48
        %v785 = vpop.permute.xlu0 %784
        %786 = vrot.lane.b32.xlu0 %v295, 48
        %v787 = vpop.permute.xlu0 %786
        %804 = vrot.lane.b32.xlu0 %v296, 52
        %v805 = vpop.permute.xlu0 %804
        %806 = vrot.lane.b32.xlu0 %v297, 52
        %v807 = vpop.permute.xlu0 %806
        %808 = vrot.lane.b32.xlu0 %v298, 52
        %v809 = vpop.permute.xlu0 %808
        %810 = vrot.lane.b32.xlu0 %v299, 52
        %v811 = vpop.permute.xlu0 %810
        %812 = vrot.lane.b32.xlu0 %v300, 52
        %v813 = vpop.permute.xlu0 %812
        %814 = vrot.lane.b32.xlu0 %v301, 52
        %v815 = vpop.permute.xlu0 %814
        %816 = vrot.lane.b32.xlu0 %v302, 52
        %v817 = vpop.permute.xlu0 %816
        %818 = vrot.lane.b32.xlu0 %v303, 52
        %v819 = vpop.permute.xlu0 %818
        %836 = vrot.lane.b32.xlu0 %v304, 56
        %v837 = vpop.permute.xlu0 %836
        %838 = vrot.lane.b32.xlu0 %v305, 56
        %v839 = vpop.permute.xlu0 %838
        %840 = vrot.lane.b32.xlu0 %v306, 56
        %v841 = vpop.permute.xlu0 %840
        %842 = vrot.lane.b32.xlu0 %v307, 56
        %v843 = vpop.permute.xlu0 %842
        %844 = vrot.lane.b32.xlu0 %v308, 56
        %v845 = vpop.permute.xlu0 %844
        %846 = vrot.lane.b32.xlu0 %v309, 56
        %v847 = vpop.permute.xlu0 %846
        %848 = vrot.lane.b32.xlu0 %v310, 56
        %v849 = vpop.permute.xlu0 %848
        %850 = vrot.lane.b32.xlu0 %v311, 56
        %v851 = vpop.permute.xlu0 %850
        %868 = vrot.lane.b32.xlu0 %v313, 60
        %v869 = vpop.permute.xlu0 %868
        %870 = vrot.lane.b32.xlu0 %v314, 60
        %v871 = vpop.permute.xlu0 %870
        %872 = vrot.lane.b32.xlu0 %v315, 60
        %v873 = vpop.permute.xlu0 %872
        %874 = vrot.lane.b32.xlu0 %v316, 60
        %v875 = vpop.permute.xlu0 %874
        %876 = vrot.lane.b32.xlu0 %v317, 60
        %v877 = vpop.permute.xlu0 %876
        %878 = vrot.lane.b32.xlu0 %v318, 60
        %v879 = vpop.permute.xlu0 %878
        %880 = vrot.lane.b32.xlu0 %v319, 60
        %v881 = vpop.permute.xlu0 %880
        %882 = vrot.lane.b32.xlu0 %v320, 60
        %v883 = vpop.permute.xlu0 %882
        %vm892 = vcmask 31744
        %v893 = vsel %vm892, %v188, %v421
        %v894 = vsel %vm892, %v189, %v423
        %v895 = vsel %vm892, %v190, %v425
        %v896 = vsel %vm892, %v191, %v427
        %v897 = vsel %vm892, %v192, %v429
        %v898 = vsel %vm892, %v193, %v431
        %v899 = vsel %vm892, %v194, %v433
        %v900 = vsel %vm892, %v195, %v435
        %vm901 = vcmask 64512
        %v902 = vsel %vm901, %v893, %v453
        %v903 = vsel %vm901, %v894, %v455
        %v904 = vsel %vm901, %v895, %v457
        %v905 = vsel %vm901, %v896, %v459
        %v906 = vsel %vm901, %v897, %v461
        %v907 = vsel %vm901, %v898, %v463
        %v908 = vsel %vm901, %v899, %v465
        %v909 = vsel %vm901, %v900, %v467
        %vm910 = vcmask 97280
        %v911 = vsel %vm910, %v902, %v485
        %v912 = vsel %vm910, %v903, %v487
        %v913 = vsel %vm910, %v904, %v489
        %v914 = vsel %vm910, %v905, %v491
        %v915 = vsel %vm910, %v906, %v493
        %v916 = vsel %vm910, %v907, %v495
        %v917 = vsel %vm910, %v908, %v497
        %v918 = vsel %vm910, %v909, %v499
        %vm919 = vcmask 130048
        %v920 = vsel %vm919, %v911, %v517
        %v921 = vsel %vm919, %v912, %v519
        %v922 = vsel %vm919, %v913, %v521
        %v923 = vsel %vm919, %v914, %v523
        %v924 = vsel %vm919, %v915, %v525
        %v925 = vsel %vm919, %v916, %v527
        %v926 = vsel %vm919, %v917, %v529
        %v927 = vsel %vm919, %v918, %v531
        %vm928 = vcmask 162816
        %v929 = vsel %vm928, %v920, %v549
        %v930 = vsel %vm928, %v921, %v551
        %v931 = vsel %vm928, %v922, %v553
        %v932 = vsel %vm928, %v923, %v555
        %v933 = vsel %vm928, %v924, %v557
        %v934 = vsel %vm928, %v925, %v559
        %v935 = vsel %vm928, %v926, %v561
        %v936 = vsel %vm928, %v927, %v563
        %vm937 = vcmask 195584
        %v938 = vsel %vm937, %v929, %v581
        %v939 = vsel %vm937, %v930, %v583
        %v940 = vsel %vm937, %v931, %v585
        %v941 = vsel %vm937, %v932, %v587
        %v942 = vsel %vm937, %v933, %v589
        %v943 = vsel %vm937, %v934, %v591
        %v944 = vsel %vm937, %v935, %v593
        %v945 = vsel %vm937, %v936, %v595
        %vm946 = vcmask 228352
        %v947 = vsel %vm946, %v938, %v613
        %v948 = vsel %vm946, %v939, %v615
        %v949 = vsel %vm946, %v940, %v617
        %v950 = vsel %vm946, %v941, %v619
        %v951 = vsel %vm946, %v942, %v621
        %v952 = vsel %vm946, %v943, %v623
        %v953 = vsel %vm946, %v944, %v625
        %v954 = vsel %vm946, %v945, %v627
        %vm955 = vcmask 261120
        %v956 = vsel %vm955, %v947, %v645
        %v957 = vsel %vm955, %v948, %v647
        %v958 = vsel %vm955, %v949, %v649
        %v959 = vsel %vm955, %v950, %v651
        %v960 = vsel %vm955, %v951, %v653
        %v961 = vsel %vm955, %v952, %v655
        %v962 = vsel %vm955, %v953, %v657
        %v963 = vsel %vm955, %v954, %v659
        %vm964 = vcmask 293888
        %v965 = vsel %vm964, %v956, %v677
        %v966 = vsel %vm964, %v957, %v679
        %v967 = vsel %vm964, %v958, %v681
        %v968 = vsel %vm964, %v959, %v683
        %v969 = vsel %vm964, %v960, %v685
        %v970 = vsel %vm964, %v961, %v687
        %v971 = vsel %vm964, %v962, %v689
        %v972 = vsel %vm964, %v963, %v691
        %vm973 = vcmask 326656
        %v974 = vsel %vm973, %v965, %v709
        %v975 = vsel %vm973, %v966, %v711
        %v976 = vsel %vm973, %v967, %v713
        %v977 = vsel %vm973, %v968, %v715
        %v978 = vsel %vm973, %v969, %v717
        %v979 = vsel %vm973, %v970, %v719
        %v980 = vsel %vm973, %v971, %v721
        %v981 = vsel %vm973, %v972, %v723
        %vm982 = vcmask 359424
        %v983 = vsel %vm982, %v974, %v741
        %v984 = vsel %vm982, %v975, %v743
        %v985 = vsel %vm982, %v976, %v745
        %v986 = vsel %vm982, %v977, %v747
        %v987 = vsel %vm982, %v978, %v749
        %v988 = vsel %vm982, %v979, %v751
        %v989 = vsel %vm982, %v980, %v753
        %v990 = vsel %vm982, %v981, %v755
        %vm991 = vcmask 392192
        %v992 = vsel %vm991, %v983, %v773
        %v993 = vsel %vm991, %v984, %v775
        %v994 = vsel %vm991, %v985, %v777
        %v995 = vsel %vm991, %v986, %v779
        %v996 = vsel %vm991, %v987, %v781
        %v997 = vsel %vm991, %v988, %v783
        %v998 = vsel %vm991, %v989, %v785
        %v999 = vsel %vm991, %v990, %v787
        %vm1000 = vcmask 424960
        %v1001 = vsel %vm1000, %v992, %v805
        %v1002 = vsel %vm1000, %v993, %v807
        %v1003 = vsel %vm1000, %v994, %v809
        %v1004 = vsel %vm1000, %v995, %v811
        %v1005 = vsel %vm1000, %v996, %v813
        %v1006 = vsel %vm1000, %v997, %v815
        %v1007 = vsel %vm1000, %v998, %v817
        %v1008 = vsel %vm1000, %v999, %v819
        %vm1009 = vcmask 457728
        %v1010 = vsel %vm1009, %v1001, %v837
        %v1011 = vsel %vm1009, %v1002, %v839
        %v1012 = vsel %vm1009, %v1003, %v841
        %v1013 = vsel %vm1009, %v1004, %v843
        %v1014 = vsel %vm1009, %v1005, %v845
        %v1015 = vsel %vm1009, %v1006, %v847
        %v1016 = vsel %vm1009, %v1007, %v849
        %v1017 = vsel %vm1009, %v1008, %v851
        %vm1018 = vcmask 490496
        %v1019 = vsel %vm1018, %v1010, %v869
        %v1020 = vsel %vm1018, %v1011, %v871
        %v1021 = vsel %vm1018, %v1012, %v873
        %v1022 = vsel %vm1018, %v1013, %v875
        %v1023 = vsel %vm1018, %v1014, %v877
        %v1024 = vsel %vm1018, %v1015, %v879
        %v1025 = vsel %vm1018, %v1016, %v881
        %v1026 = vsel %vm1018, %v1017, %v883
        %1035 = vrot.lane.b32.xlu0 %v329, 4
        %v1036 = vpop.permute.xlu0 %1035
        %1037 = vrot.lane.b32.xlu0 %v330, 4
        %v1038 = vpop.permute.xlu0 %1037
        %1039 = vrot.lane.b32.xlu0 %v331, 4
        %v1040 = vpop.permute.xlu0 %1039
        %1041 = vrot.lane.b32.xlu0 %v332, 4
        %v1042 = vpop.permute.xlu0 %1041
        %1043 = vrot.lane.b32.xlu0 %v333, 4
        %v1044 = vpop.permute.xlu0 %1043
        %1045 = vrot.lane.b32.xlu0 %v334, 4
        %v1046 = vpop.permute.xlu0 %1045
        %1047 = vrot.lane.b32.xlu0 %v335, 4
        %v1048 = vpop.permute.xlu0 %1047
        %1049 = vrot.lane.b32.xlu0 %v336, 4
        %v1050 = vpop.permute.xlu0 %1049
        %1067 = vrot.lane.b32.xlu0 %v338, 8
        %v1068 = vpop.permute.xlu0 %1067
        %1069 = vrot.lane.b32.xlu0 %v339, 8
        %v1070 = vpop.permute.xlu0 %1069
        %1071 = vrot.lane.b32.xlu0 %v340, 8
        %v1072 = vpop.permute.xlu0 %1071
        %1073 = vrot.lane.b32.xlu0 %v341, 8
        %v1074 = vpop.permute.xlu0 %1073
        %1075 = vrot.lane.b32.xlu0 %v342, 8
        %v1076 = vpop.permute.xlu0 %1075
        %1077 = vrot.lane.b32.xlu0 %v343, 8
        %v1078 = vpop.permute.xlu0 %1077
        %1079 = vrot.lane.b32.xlu0 %v344, 8
        %v1080 = vpop.permute.xlu0 %1079
        %1081 = vrot.lane.b32.xlu0 %v345, 8
        %v1082 = vpop.permute.xlu0 %1081
        %1099 = vrot.lane.b32.xlu0 %v346, 12
        %v1100 = vpop.permute.xlu0 %1099
        %1101 = vrot.lane.b32.xlu0 %v347, 12
        %v1102 = vpop.permute.xlu0 %1101
        %1103 = vrot.lane.b32.xlu0 %v348, 12
        %v1104 = vpop.permute.xlu0 %1103
        %1105 = vrot.lane.b32.xlu0 %v349, 12
        %v1106 = vpop.permute.xlu0 %1105
        %1107 = vrot.lane.b32.xlu0 %v350, 12
        %v1108 = vpop.permute.xlu0 %1107
        %1109 = vrot.lane.b32.xlu0 %v351, 12
        %v1110 = vpop.permute.xlu0 %1109
        %1111 = vrot.lane.b32.xlu0 %v352, 12
        %v1112 = vpop.permute.xlu0 %1111
        %1113 = vrot.lane.b32.xlu0 %v353, 12
        %v1114 = vpop.permute.xlu0 %1113
        %1131 = vrot.lane.b32.xlu0 %v354, 16
        %v1132 = vpop.permute.xlu0 %1131
        %1133 = vrot.lane.b32.xlu0 %v355, 16
        %v1134 = vpop.permute.xlu0 %1133
        %1135 = vrot.lane.b32.xlu0 %v356, 16
        %v1136 = vpop.permute.xlu0 %1135
        %1137 = vrot.lane.b32.xlu0 %v357, 16
        %v1138 = vpop.permute.xlu0 %1137
        %1139 = vrot.lane.b32.xlu0 %v358, 16
        %v1140 = vpop.permute.xlu0 %1139
        %1141 = vrot.lane.b32.xlu0 %v359, 16
        %v1142 = vpop.permute.xlu0 %1141
        %1143 = vrot.lane.b32.xlu0 %v360, 16
        %v1144 = vpop.permute.xlu0 %1143
        %1145 = vrot.lane.b32.xlu0 %v361, 16
        %v1146 = vpop.permute.xlu0 %1145
        %1163 = vrot.lane.b32.xlu0 %v363, 20
        %v1164 = vpop.permute.xlu0 %1163
        %1165 = vrot.lane.b32.xlu0 %v364, 20
        %v1166 = vpop.permute.xlu0 %1165
        %1167 = vrot.lane.b32.xlu0 %v365, 20
        %v1168 = vpop.permute.xlu0 %1167
        %1169 = vrot.lane.b32.xlu0 %v366, 20
        %v1170 = vpop.permute.xlu0 %1169
        %1171 = vrot.lane.b32.xlu0 %v367, 20
        %v1172 = vpop.permute.xlu0 %1171
        %1173 = vrot.lane.b32.xlu0 %v368, 20
        %v1174 = vpop.permute.xlu0 %1173
        %1175 = vrot.lane.b32.xlu0 %v369, 20
        %v1176 = vpop.permute.xlu0 %1175
        %1177 = vrot.lane.b32.xlu0 %v370, 20
        %v1178 = vpop.permute.xlu0 %1177
        %1195 = vrot.lane.b32.xlu0 %v371, 24
        %v1196 = vpop.permute.xlu0 %1195
        %1197 = vrot.lane.b32.xlu0 %v372, 24
        %v1198 = vpop.permute.xlu0 %1197
        %1199 = vrot.lane.b32.xlu0 %v373, 24
        %v1200 = vpop.permute.xlu0 %1199
        %1201 = vrot.lane.b32.xlu0 %v374, 24
        %v1202 = vpop.permute.xlu0 %1201
        %1203 = vrot.lane.b32.xlu0 %v375, 24
        %v1204 = vpop.permute.xlu0 %1203
        %1205 = vrot.lane.b32.xlu0 %v376, 24
        %v1206 = vpop.permute.xlu0 %1205
        %1207 = vrot.lane.b32.xlu0 %v377, 24
        %v1208 = vpop.permute.xlu0 %1207
        %1209 = vrot.lane.b32.xlu0 %v378, 24
        %v1210 = vpop.permute.xlu0 %1209
        %1227 = vrot.lane.b32.xlu0 %v379, 28
        %v1228 = vpop.permute.xlu0 %1227
        %1229 = vrot.lane.b32.xlu0 %v380, 28
        %v1230 = vpop.permute.xlu0 %1229
        %1231 = vrot.lane.b32.xlu0 %v381, 28
        %v1232 = vpop.permute.xlu0 %1231
        %1233 = vrot.lane.b32.xlu0 %v382, 28
        %v1234 = vpop.permute.xlu0 %1233
        %1235 = vrot.lane.b32.xlu0 %v383, 28
        %v1236 = vpop.permute.xlu0 %1235
        %1237 = vrot.lane.b32.xlu0 %v384, 28
        %v1238 = vpop.permute.xlu0 %1237
        %1239 = vrot.lane.b32.xlu0 %v385, 28
        %v1240 = vpop.permute.xlu0 %1239
        %1241 = vrot.lane.b32.xlu0 %v386, 28
        %v1242 = vpop.permute.xlu0 %1241
        %1259 = vrot.lane.b32.xlu0 %v388, 32
        %v1260 = vpop.permute.xlu0 %1259
        %1261 = vrot.lane.b32.xlu0 %v389, 32
        %v1262 = vpop.permute.xlu0 %1261
        %1263 = vrot.lane.b32.xlu0 %v390, 32
        %v1264 = vpop.permute.xlu0 %1263
        %1265 = vrot.lane.b32.xlu0 %v391, 32
        %v1266 = vpop.permute.xlu0 %1265
        %1267 = vrot.lane.b32.xlu0 %v392, 32
        %v1268 = vpop.permute.xlu0 %1267
        %1269 = vrot.lane.b32.xlu0 %v393, 32
        %v1270 = vpop.permute.xlu0 %1269
        %1271 = vrot.lane.b32.xlu0 %v394, 32
        %v1272 = vpop.permute.xlu0 %1271
        %1273 = vrot.lane.b32.xlu0 %v395, 32
        %v1274 = vpop.permute.xlu0 %1273
        %1291 = vrot.lane.b32.xlu0 %v396, 36
        %v1292 = vpop.permute.xlu0 %1291
        %1293 = vrot.lane.b32.xlu0 %v397, 36
        %v1294 = vpop.permute.xlu0 %1293
        %1295 = vrot.lane.b32.xlu0 %v398, 36
        %v1296 = vpop.permute.xlu0 %1295
        %1297 = vrot.lane.b32.xlu0 %v399, 36
        %v1298 = vpop.permute.xlu0 %1297
        %1299 = vrot.lane.b32.xlu0 %v400, 36
        %v1300 = vpop.permute.xlu0 %1299
        %1301 = vrot.lane.b32.xlu0 %v401, 36
        %v1302 = vpop.permute.xlu0 %1301
        %1303 = vrot.lane.b32.xlu0 %v402, 36
        %v1304 = vpop.permute.xlu0 %1303
        %1305 = vrot.lane.b32.xlu0 %v403, 36
        %v1306 = vpop.permute.xlu0 %1305
        %1323 = vrot.lane.b32.xlu0 %v404, 40
        %v1324 = vpop.permute.xlu0 %1323
        %1325 = vrot.lane.b32.xlu0 %v405, 40
        %v1326 = vpop.permute.xlu0 %1325
        %1327 = vrot.lane.b32.xlu0 %v406, 40
        %v1328 = vpop.permute.xlu0 %1327
        %1329 = vrot.lane.b32.xlu0 %v407, 40
        %v1330 = vpop.permute.xlu0 %1329
        %1331 = vrot.lane.b32.xlu0 %v408, 40
        %v1332 = vpop.permute.xlu0 %1331
        %1333 = vrot.lane.b32.xlu0 %v409, 40
        %v1334 = vpop.permute.xlu0 %1333
        %1335 = vrot.lane.b32.xlu0 %v410, 40
        %v1336 = vpop.permute.xlu0 %1335
        %1337 = vrot.lane.b32.xlu0 %v411, 40
        %v1338 = vpop.permute.xlu0 %1337
        %v1347 = vsel %vm892, %v321, %v1036
        %v1348 = vsel %vm892, %v322, %v1038
        %v1349 = vsel %vm892, %v323, %v1040
        %v1350 = vsel %vm892, %v324, %v1042
        %v1351 = vsel %vm892, %v325, %v1044
        %v1352 = vsel %vm892, %v326, %v1046
        %v1353 = vsel %vm892, %v327, %v1048
        %v1354 = vsel %vm892, %v328, %v1050
        %v1355 = vsel %vm901, %v1347, %v1068
        %v1356 = vsel %vm901, %v1348, %v1070
        %v1357 = vsel %vm901, %v1349, %v1072
        %v1358 = vsel %vm901, %v1350, %v1074
        %v1359 = vsel %vm901, %v1351, %v1076
        %v1360 = vsel %vm901, %v1352, %v1078
        %v1361 = vsel %vm901, %v1353, %v1080
        %v1362 = vsel %vm901, %v1354, %v1082
        %v1363 = vsel %vm910, %v1355, %v1100
        %v1364 = vsel %vm910, %v1356, %v1102
        %v1365 = vsel %vm910, %v1357, %v1104
        %v1366 = vsel %vm910, %v1358, %v1106
        %v1367 = vsel %vm910, %v1359, %v1108
        %v1368 = vsel %vm910, %v1360, %v1110
        %v1369 = vsel %vm910, %v1361, %v1112
        %v1370 = vsel %vm910, %v1362, %v1114
        %v1371 = vsel %vm919, %v1363, %v1132
        %v1372 = vsel %vm919, %v1364, %v1134
        %v1373 = vsel %vm919, %v1365, %v1136
        %v1374 = vsel %vm919, %v1366, %v1138
        %v1375 = vsel %vm919, %v1367, %v1140
        %v1376 = vsel %vm919, %v1368, %v1142
        %v1377 = vsel %vm919, %v1369, %v1144
        %v1378 = vsel %vm919, %v1370, %v1146
        %v1379 = vsel %vm928, %v1371, %v1164
        %v1380 = vsel %vm928, %v1372, %v1166
        %v1381 = vsel %vm928, %v1373, %v1168
        %v1382 = vsel %vm928, %v1374, %v1170
        %v1383 = vsel %vm928, %v1375, %v1172
        %v1384 = vsel %vm928, %v1376, %v1174
        %v1385 = vsel %vm928, %v1377, %v1176
        %v1386 = vsel %vm928, %v1378, %v1178
        %v1387 = vsel %vm937, %v1379, %v1196
        %v1388 = vsel %vm937, %v1380, %v1198
        %v1389 = vsel %vm937, %v1381, %v1200
        %v1390 = vsel %vm937, %v1382, %v1202
        %v1391 = vsel %vm937, %v1383, %v1204
        %v1392 = vsel %vm937, %v1384, %v1206
        %v1393 = vsel %vm937, %v1385, %v1208
        %v1394 = vsel %vm937, %v1386, %v1210
        %v1395 = vsel %vm946, %v1387, %v1228
        %v1396 = vsel %vm946, %v1388, %v1230
        %v1397 = vsel %vm946, %v1389, %v1232
        %v1398 = vsel %vm946, %v1390, %v1234
        %v1399 = vsel %vm946, %v1391, %v1236
        %v1400 = vsel %vm946, %v1392, %v1238
        %v1401 = vsel %vm946, %v1393, %v1240
        %v1402 = vsel %vm946, %v1394, %v1242
        %v1403 = vsel %vm955, %v1395, %v1260
        %v1404 = vsel %vm955, %v1396, %v1262
        %v1405 = vsel %vm955, %v1397, %v1264
        %v1406 = vsel %vm955, %v1398, %v1266
        %v1407 = vsel %vm955, %v1399, %v1268
        %v1408 = vsel %vm955, %v1400, %v1270
        %v1409 = vsel %vm955, %v1401, %v1272
        %v1410 = vsel %vm955, %v1402, %v1274
        %v1411 = vsel %vm964, %v1403, %v1292
        %v1412 = vsel %vm964, %v1404, %v1294
        %v1413 = vsel %vm964, %v1405, %v1296
        %v1414 = vsel %vm964, %v1406, %v1298
        %v1415 = vsel %vm964, %v1407, %v1300
        %v1416 = vsel %vm964, %v1408, %v1302
        %v1417 = vsel %vm964, %v1409, %v1304
        %v1418 = vsel %vm964, %v1410, %v1306
        %v1419 = vsel %vm973, %v1411, %v1324
        %v1420 = vsel %vm973, %v1412, %v1326
        %v1421 = vsel %vm973, %v1413, %v1328
        %v1422 = vsel %vm973, %v1414, %v1330
        %v1423 = vsel %vm973, %v1415, %v1332
        %v1424 = vsel %vm973, %v1416, %v1334
        %v1425 = vsel %vm973, %v1417, %v1336
        %v1426 = vsel %vm973, %v1418, %v1338
        %1435 = vrot.lane.b32.xlu0 %v1419, 64
        %v1436 = vpop.permute.xlu0 %1435
        %1437 = vrot.lane.b32.xlu0 %v1420, 64
        %v1438 = vpop.permute.xlu0 %1437
        %1439 = vrot.lane.b32.xlu0 %v1421, 64
        %v1440 = vpop.permute.xlu0 %1439
        %1441 = vrot.lane.b32.xlu0 %v1422, 64
        %v1442 = vpop.permute.xlu0 %1441
        %1443 = vrot.lane.b32.xlu0 %v1423, 64
        %v1444 = vpop.permute.xlu0 %1443
        %1445 = vrot.lane.b32.xlu0 %v1424, 64
        %v1446 = vpop.permute.xlu0 %1445
        %1447 = vrot.lane.b32.xlu0 %v1425, 64
        %v1448 = vpop.permute.xlu0 %1447
        %1449 = vrot.lane.b32.xlu0 %v1426, 64
        %v1450 = vpop.permute.xlu0 %1449
        %vm1459 = vcmask 523264
        %v1460 = vsel %vm1459, %v1019, %v1436
        %v1461 = vsel %vm1459, %v1020, %v1438
        %v1462 = vsel %vm1459, %v1021, %v1440
        %v1463 = vsel %vm1459, %v1022, %v1442
        %v1464 = vsel %vm1459, %v1023, %v1444
        %v1465 = vsel %vm1459, %v1024, %v1446
        %v1466 = vsel %vm1459, %v1025, %v1448
        %v1467 = vsel %vm1459, %v1026, %v1450
        %vm1468 = vcmask 883712
        %v1470 = vsel %vm1468, %v1460, 0
        %v1473 = vsel %vm1468, %v1461, 0
        %v1476 = vsel %vm1468, %v1462, 0
        %v1479 = vsel %vm1468, %v1463, 0
        %v1482 = vsel %vm1468, %v1464, 0
        %v1485 = vsel %vm1468, %v1465, 0
        %v1488 = vsel %vm1468, %v1466, 0
        %v1491 = vsel %vm1468, %v1467, 0
        %vm1493 = vcmask 1043456
        %v1495 = vsel %vm1493, %v187, 0
        %1497 = vmatprep.subr.mxu0 0.0
        %1498 = vmatpush1.msra.mxu0 0.0
        %1499 = vmatprep.subr.mxu0 0.0
        %1500 = vmatpush1.msra.mxu0 0.0
        %1501 = vmatprep.subr.mxu0 0.0
        %1502 = vmatpush1.msra.mxu0 %v1495
        %1503 = vmatprep.subr.mxu0 0.0
        %1504 = vmatpush1.msra.mxu0 %v186
        %1505 = vmatprep.subr.mxu0 0.0
        %1506 = vmatpush1.msra.mxu0 %v185
        %1507 = vmatprep.subr.mxu0 0.0
        %1508 = vmatpush1.msra.mxu0 %v184
        %1509 = vmatprep.subr.mxu0 0.0
        %1510 = vmatpush1.msra.mxu0 %v183
        %1511 = vmatprep.subr.mxu0 0.0
        %1512 = vmatpush1.msra.mxu0 %v182
        %1513 = vmatprep.subr.mxu0 0.0
        %1514 = vmatpush1.msra.mxu0 %v181
        %1515 = vmatprep.subr.mxu0 0.0
        %1516 = vmatpush1.msra.mxu0 %v180
        %1517 = vmatprep.subr.mxu0 0.0
        %1518 = vmatpush1.msra.mxu0 %v179
        %1519 = vmatprep.subr.mxu0 0.0
        %1520 = vmatpush1.msra.mxu0 %v178
        %1521 = vmatprep.subr.mxu0 0.0
        %1522 = vmatpush1.msra.mxu0 %v177
        %1523 = vmatprep.subr.mxu0 0.0
        %1524 = vmatpush1.msra.mxu0 %v176
        %1525 = vmatprep.subr.mxu0 0.0
        %1526 = vmatpush1.msra.mxu0 %v175
        %1527 = vmatprep.subr.mxu0 0.0
        %1528 = vmatpush1.msra.mxu0 %v174
        %1529 = vmatprep.subr.mxu0 0.0
        %1530 = vmatpush2.msra.mxu0 0.0
        %1531 = vmatprep.subr.mxu0 0.0
        %1532 = vmatpush2.msra.mxu0 0.0
        %1533 = vmatprep.subr.mxu0 0.0
        %1534 = vmatpush2.msra.mxu0 0.0
        %1535 = vmatprep.subr.mxu0 0.0
        %1536 = vmatpush2.msra.mxu0 0.0
        %1537 = vmatprep.subr.mxu0 0.0
        %1538 = vmatpush2.msra.mxu0 0.0
        %1539 = vmatprep.subr.mxu0 0.0
        %1540 = vmatpush2.msra.mxu0 0.0
        %1541 = vmatprep.subr.mxu0 0.0
        %1542 = vmatpush2.msra.mxu0 0.0
        %1543 = vmatprep.subr.mxu0 0.0
        %1544 = vmatpush2.msra.mxu0 0.0
        %1545 = vmatprep.subr.mxu0 0.0
        %1546 = vmatpush2.msra.mxu0 0.0
        %1547 = vmatprep.subr.mxu0 0.0
        %1548 = vmatpush2.msra.mxu0 0.0
        %1549 = vmatprep.subr.mxu0 0.0
        %1550 = vmatpush2.msra.mxu0 0.0
        %1551 = vmatprep.subr.mxu0 0.0
        %1552 = vmatpush2.msra.mxu0 0.0
        %1553 = vmatprep.subr.mxu0 0.0
        %1554 = vmatpush2.msra.mxu0 0.0
        %1555 = vmatprep.subr.mxu0 0.0
        %1556 = vmatpush2.msra.mxu0 0.0
        %1557 = vmatprep.subr.mxu0 0.0
        %1558 = vmatpush2.msra.mxu0 0.0
        %1559 = vmatprep.subr.mxu0 0.0
        %1560 = vmatpush2.msra.mxu0 0.0
        %1561 = vmatprep.mubr.f32.mxu0 0.0
        %1562 = vmatmul.mubr.f32.gmra.mxu0 %v1470
        %v1563 = vpop.f32.mrf.mxu0
        %v1564 = vadd.f32 0.0, %v1563
        %v1565 = vpop.f32.mrf.mxu0
        %1566 = vmatprep.mubr.f32.mxu0 0.0
        %1567 = vmatmul.mubr.f32.gmra.mxu0 %v1473
        %v1568 = vpop.f32.mrf.mxu0
        %v1569 = vadd.f32 0.0, %v1568
        %v1570 = vpop.f32.mrf.mxu0
        %1571 = vmatprep.mubr.f32.mxu0 0.0
        %1572 = vmatmul.mubr.f32.gmra.mxu0 %v1476
        %v1573 = vpop.f32.mrf.mxu0
        %v1574 = vadd.f32 0.0, %v1573
        %v1575 = vpop.f32.mrf.mxu0
        %1576 = vmatprep.mubr.f32.mxu0 0.0
        %1577 = vmatmul.mubr.f32.gmra.mxu0 %v1479
        %v1578 = vpop.f32.mrf.mxu0
        %v1579 = vadd.f32 0.0, %v1578
        %v1580 = vpop.f32.mrf.mxu0
        %1581 = vmatprep.mubr.f32.mxu0 0.0
        %1582 = vmatmul.mubr.f32.gmra.mxu0 %v1482
        %v1583 = vpop.f32.mrf.mxu0
        %v1584 = vadd.f32 0.0, %v1583
        %v1585 = vpop.f32.mrf.mxu0
        %1586 = vmatprep.mubr.f32.mxu0 0.0
        %1587 = vmatmul.mubr.f32.gmra.mxu0 %v1485
        %v1588 = vpop.f32.mrf.mxu0
        %v1589 = vadd.f32 0.0, %v1588
        %v1590 = vpop.f32.mrf.mxu0
        %1591 = vmatprep.mubr.f32.mxu0 0.0
        %1592 = vmatmul.mubr.f32.gmra.mxu0 %v1488
        %v1593 = vpop.f32.mrf.mxu0
        %v1594 = vadd.f32 0.0, %v1593
        %v1595 = vpop.f32.mrf.mxu0
        %1596 = vmatprep.mubr.f32.mxu0 0.0
        %1597 = vmatmul.mubr.f32.gmra.mxu0 %v1491
        %v1598 = vpop.f32.mrf.mxu0
        %v1599 = vadd.f32 0.0, %v1598
        %v1600 = vpop.f32.mrf.mxu0
        %1601 = vdwg.mxu0
        %1602 = vst [vmem:[%s162] sm:$0xff] %v1564
        %1603 = vst [vmem:[%s162 + $0x8] sm:$0xff] %v1569
        %1604 = vst [vmem:[%s162 + $0x10] sm:$0xff] %v1574
        %1605 = vst [vmem:[%s162 + $0x18] sm:$0xff] %v1579
        %1606 = vst [vmem:[%s162 + $0x20] sm:$0xff] %v1584
        %1607 = vst [vmem:[%s162 + $0x28] sm:$0xff] %v1589
        %1608 = vst [vmem:[%s162 + $0x30] sm:$0xff] %v1594
        %1609 = vst [vmem:[%s162 + $0x38] sm:$0xff] %v1599
        %v1610 = vld [vmem:[%s262] sm:$0xff]
        %v1611 = vld [vmem:[%s262 + $0x10] sm:$0xff]
        %v1612 = vld [vmem:[%s262 + $0x20] sm:$0xff]
        %v1613 = vld [vmem:[%s262 + $0x30] sm:$0xff]
        %v1614 = vld [vmem:[%s262 + $0x40] sm:$0xff]
        %v1615 = vld [vmem:[%s262 + $0x50] sm:$0xff]
        %v1616 = vld [vmem:[%s262 + $0x60] sm:$0xff]
        %v1617 = vld [vmem:[%s262 + $0x70] sm:$0xff]
        %v1618 = vld [vmem:[%s262 + $0x1] sm:$0xff]
        %v1619 = vld [vmem:[%s262 + $0x11] sm:$0xff]
        %v1620 = vld [vmem:[%s262 + $0x21] sm:$0xff]
        %v1621 = vld [vmem:[%s262 + $0x31] sm:$0xff]
        %v1622 = vld [vmem:[%s262 + $0x41] sm:$0xff]
        %v1623 = vld [vmem:[%s262 + $0x51] sm:$0xff]
        %v1624 = vld [vmem:[%s262 + $0x61] sm:$0xff]
        %v1625 = vld [vmem:[%s262 + $0x71] sm:$0xff]
        %v1626 = vld [vmem:[%s262 + $0x2] sm:$0xff]
        %v1627 = vld [vmem:[%s262 + $0x12] sm:$0xff]
        %v1628 = vld [vmem:[%s262 + $0x22] sm:$0xff]
        %v1629 = vld [vmem:[%s262 + $0x32] sm:$0xff]
        %v1630 = vld [vmem:[%s262 + $0x42] sm:$0xff]
        %v1631 = vld [vmem:[%s262 + $0x52] sm:$0xff]
        %v1632 = vld [vmem:[%s262 + $0x62] sm:$0xff]
        %v1633 = vld [vmem:[%s262 + $0x72] sm:$0xff]
        %v1634 = vld [vmem:[%s287] sm:$0xff]
        %v1635 = vld [vmem:[%s287 + $0x10] sm:$0xff]
        %v1636 = vld [vmem:[%s287 + $0x20] sm:$0xff]
        %v1637 = vld [vmem:[%s287 + $0x30] sm:$0xff]
        %v1638 = vld [vmem:[%s287 + $0x40] sm:$0xff]
        %v1639 = vld [vmem:[%s287 + $0x50] sm:$0xff]
        %v1640 = vld [vmem:[%s287 + $0x60] sm:$0xff]
        %v1641 = vld [vmem:[%s287 + $0x70] sm:$0xff]
        %v1642 = vld [vmem:[%s287 + $0x1] sm:$0xff]
        %v1643 = vld [vmem:[%s287 + $0x11] sm:$0xff]
        %v1644 = vld [vmem:[%s287 + $0x21] sm:$0xff]
        %v1645 = vld [vmem:[%s287 + $0x31] sm:$0xff]
        %v1646 = vld [vmem:[%s287 + $0x41] sm:$0xff]
        %v1647 = vld [vmem:[%s287 + $0x51] sm:$0xff]
        %v1648 = vld [vmem:[%s287 + $0x61] sm:$0xff]
        %v1649 = vld [vmem:[%s287 + $0x71] sm:$0xff]
        %v1650 = vld [vmem:[%s287 + $0x2] sm:$0xff]
        %v1651 = vld [vmem:[%s287 + $0x12] sm:$0xff]
        %v1652 = vld [vmem:[%s287 + $0x22] sm:$0xff]
        %v1653 = vld [vmem:[%s287 + $0x32] sm:$0xff]
        %v1654 = vld [vmem:[%s287 + $0x42] sm:$0xff]
        %v1655 = vld [vmem:[%s287 + $0x52] sm:$0xff]
        %v1656 = vld [vmem:[%s287 + $0x62] sm:$0xff]
        %v1657 = vld [vmem:[%s287 + $0x72] sm:$0xff]
        %v1658 = vld [vmem:[%s312] sm:$0xff]
        %v1659 = vld [vmem:[%s312 + $0x10] sm:$0xff]
        %v1660 = vld [vmem:[%s312 + $0x20] sm:$0xff]
        %v1661 = vld [vmem:[%s312 + $0x30] sm:$0xff]
        %v1662 = vld [vmem:[%s312 + $0x40] sm:$0xff]
        %v1663 = vld [vmem:[%s312 + $0x50] sm:$0xff]
        %v1664 = vld [vmem:[%s312 + $0x60] sm:$0xff]
        %v1665 = vld [vmem:[%s312 + $0x70] sm:$0xff]
        %v1666 = vld [vmem:[%s312 + $0x1] sm:$0xff]
        %v1667 = vld [vmem:[%s312 + $0x11] sm:$0xff]
        %v1668 = vld [vmem:[%s312 + $0x21] sm:$0xff]
        %v1669 = vld [vmem:[%s312 + $0x31] sm:$0xff]
        %v1670 = vld [vmem:[%s312 + $0x41] sm:$0xff]
        %v1671 = vld [vmem:[%s312 + $0x51] sm:$0xff]
        %v1672 = vld [vmem:[%s312 + $0x61] sm:$0xff]
        %v1673 = vld [vmem:[%s312 + $0x71] sm:$0xff]
        %v1674 = vld [vmem:[%s312 + $0x2] sm:$0xff]
        %v1675 = vld [vmem:[%s312 + $0x12] sm:$0xff]
        %v1676 = vld [vmem:[%s312 + $0x22] sm:$0xff]
        %v1677 = vld [vmem:[%s312 + $0x32] sm:$0xff]
        %v1678 = vld [vmem:[%s312 + $0x42] sm:$0xff]
        %v1679 = vld [vmem:[%s312 + $0x52] sm:$0xff]
        %v1680 = vld [vmem:[%s312 + $0x62] sm:$0xff]
        %v1681 = vld [vmem:[%s312 + $0x72] sm:$0xff]
        %v1682 = vld [vmem:[%s337] sm:$0xff]
        %v1683 = vld [vmem:[%s337 + $0x10] sm:$0xff]
        %v1684 = vld [vmem:[%s337 + $0x20] sm:$0xff]
        %v1685 = vld [vmem:[%s337 + $0x30] sm:$0xff]
        %v1686 = vld [vmem:[%s337 + $0x40] sm:$0xff]
        %v1687 = vld [vmem:[%s337 + $0x50] sm:$0xff]
        %v1688 = vld [vmem:[%s337 + $0x60] sm:$0xff]
        %v1689 = vld [vmem:[%s337 + $0x70] sm:$0xff]
        %v1690 = vld [vmem:[%s337 + $0x1] sm:$0xff]
        %v1691 = vld [vmem:[%s337 + $0x11] sm:$0xff]
        %v1692 = vld [vmem:[%s337 + $0x21] sm:$0xff]
        %v1693 = vld [vmem:[%s337 + $0x31] sm:$0xff]
        %v1694 = vld [vmem:[%s337 + $0x41] sm:$0xff]
        %v1695 = vld [vmem:[%s337 + $0x51] sm:$0xff]
        %v1696 = vld [vmem:[%s337 + $0x61] sm:$0xff]
        %v1697 = vld [vmem:[%s337 + $0x71] sm:$0xff]
        %v1698 = vld [vmem:[%s337 + $0x2] sm:$0xff]
        %v1699 = vld [vmem:[%s337 + $0x12] sm:$0xff]
        %v1700 = vld [vmem:[%s337 + $0x22] sm:$0xff]
        %v1701 = vld [vmem:[%s337 + $0x32] sm:$0xff]
        %v1702 = vld [vmem:[%s337 + $0x42] sm:$0xff]
        %v1703 = vld [vmem:[%s337 + $0x52] sm:$0xff]
        %v1704 = vld [vmem:[%s337 + $0x62] sm:$0xff]
        %v1705 = vld [vmem:[%s337 + $0x72] sm:$0xff]
        %v1706 = vld [vmem:[%s362] sm:$0xff]
        %v1707 = vld [vmem:[%s362 + $0x10] sm:$0xff]
        %v1708 = vld [vmem:[%s362 + $0x20] sm:$0xff]
        %v1709 = vld [vmem:[%s362 + $0x30] sm:$0xff]
        %v1710 = vld [vmem:[%s362 + $0x40] sm:$0xff]
        %v1711 = vld [vmem:[%s362 + $0x50] sm:$0xff]
        %v1712 = vld [vmem:[%s362 + $0x60] sm:$0xff]
        %v1713 = vld [vmem:[%s362 + $0x70] sm:$0xff]
        %v1714 = vld [vmem:[%s362 + $0x1] sm:$0xff]
        %v1715 = vld [vmem:[%s362 + $0x11] sm:$0xff]
        %v1716 = vld [vmem:[%s362 + $0x21] sm:$0xff]
        %v1717 = vld [vmem:[%s362 + $0x31] sm:$0xff]
        %v1718 = vld [vmem:[%s362 + $0x41] sm:$0xff]
        %v1719 = vld [vmem:[%s362 + $0x51] sm:$0xff]
        %v1720 = vld [vmem:[%s362 + $0x61] sm:$0xff]
        %v1721 = vld [vmem:[%s362 + $0x71] sm:$0xff]
        %v1722 = vld [vmem:[%s362 + $0x2] sm:$0xff]
        %v1723 = vld [vmem:[%s362 + $0x12] sm:$0xff]
        %v1724 = vld [vmem:[%s362 + $0x22] sm:$0xff]
        %v1725 = vld [vmem:[%s362 + $0x32] sm:$0xff]
        %v1726 = vld [vmem:[%s362 + $0x42] sm:$0xff]
        %v1727 = vld [vmem:[%s362 + $0x52] sm:$0xff]
        %v1728 = vld [vmem:[%s362 + $0x62] sm:$0xff]
        %v1729 = vld [vmem:[%s362 + $0x72] sm:$0xff]
        %v1730 = vld [vmem:[%s387] sm:$0xff]
        %v1731 = vld [vmem:[%s387 + $0x10] sm:$0xff]
        %v1732 = vld [vmem:[%s387 + $0x20] sm:$0xff]
        %v1733 = vld [vmem:[%s387 + $0x30] sm:$0xff]
        %v1734 = vld [vmem:[%s387 + $0x40] sm:$0xff]
        %v1735 = vld [vmem:[%s387 + $0x50] sm:$0xff]
        %v1736 = vld [vmem:[%s387 + $0x60] sm:$0xff]
        %v1737 = vld [vmem:[%s387 + $0x70] sm:$0xff]
        %v1738 = vld [vmem:[%s387 + $0x1] sm:$0xff]
        %v1739 = vld [vmem:[%s387 + $0x11] sm:$0xff]
        %v1740 = vld [vmem:[%s387 + $0x21] sm:$0xff]
        %v1741 = vld [vmem:[%s387 + $0x31] sm:$0xff]
        %v1742 = vld [vmem:[%s387 + $0x41] sm:$0xff]
        %v1743 = vld [vmem:[%s387 + $0x51] sm:$0xff]
        %v1744 = vld [vmem:[%s387 + $0x61] sm:$0xff]
        %v1745 = vld [vmem:[%s387 + $0x71] sm:$0xff]
        %v1746 = vld [vmem:[%s387 + $0x2] sm:$0xff]
        %v1747 = vld [vmem:[%s387 + $0x12] sm:$0xff]
        %v1748 = vld [vmem:[%s387 + $0x22] sm:$0xff]
        %v1749 = vld [vmem:[%s387 + $0x32] sm:$0xff]
        %v1750 = vld [vmem:[%s387 + $0x42] sm:$0xff]
        %v1751 = vld [vmem:[%s387 + $0x52] sm:$0xff]
        %v1752 = vld [vmem:[%s387 + $0x62] sm:$0xff]
        %v1753 = vld [vmem:[%s387 + $0x72] sm:$0xff]
        %s1754 = scalar_lea.vmem %s169, 480
        %v1755 = vld [vmem:[%s1754] sm:$0xff]
        %v1756 = vld [vmem:[%s1754 + $0x10] sm:$0xff]
        %v1757 = vld [vmem:[%s1754 + $0x20] sm:$0xff]
        %v1758 = vld [vmem:[%s1754 + $0x30] sm:$0xff]
        %v1759 = vld [vmem:[%s1754 + $0x40] sm:$0xff]
        %v1760 = vld [vmem:[%s1754 + $0x50] sm:$0xff]
        %v1761 = vld [vmem:[%s1754 + $0x60] sm:$0xff]
        %v1762 = vld [vmem:[%s1754 + $0x70] sm:$0xff]
        %v1763 = vld [vmem:[%s1754 + $0x1] sm:$0xff]
        %v1764 = vld [vmem:[%s1754 + $0x11] sm:$0xff]
        %v1765 = vld [vmem:[%s1754 + $0x21] sm:$0xff]
        %v1766 = vld [vmem:[%s1754 + $0x31] sm:$0xff]
        %v1767 = vld [vmem:[%s1754 + $0x41] sm:$0xff]
        %v1768 = vld [vmem:[%s1754 + $0x51] sm:$0xff]
        %v1769 = vld [vmem:[%s1754 + $0x61] sm:$0xff]
        %v1770 = vld [vmem:[%s1754 + $0x71] sm:$0xff]
        %v1771 = vld [vmem:[%s1754 + $0x2] sm:$0xff]
        %v1772 = vld [vmem:[%s1754 + $0x12] sm:$0xff]
        %v1773 = vld [vmem:[%s1754 + $0x22] sm:$0xff]
        %v1774 = vld [vmem:[%s1754 + $0x32] sm:$0xff]
        %v1775 = vld [vmem:[%s1754 + $0x42] sm:$0xff]
        %v1776 = vld [vmem:[%s1754 + $0x52] sm:$0xff]
        %v1777 = vld [vmem:[%s1754 + $0x62] sm:$0xff]
        %v1778 = vld [vmem:[%s1754 + $0x72] sm:$0xff]
        %s1779 = scalar_lea.vmem %s169, 496
        %v1780 = vld [vmem:[%s1779] sm:$0xff]
        %v1781 = vld [vmem:[%s1779 + $0x10] sm:$0xff]
        %v1782 = vld [vmem:[%s1779 + $0x20] sm:$0xff]
        %v1783 = vld [vmem:[%s1779 + $0x30] sm:$0xff]
        %v1784 = vld [vmem:[%s1779 + $0x40] sm:$0xff]
        %v1785 = vld [vmem:[%s1779 + $0x50] sm:$0xff]
        %v1786 = vld [vmem:[%s1779 + $0x60] sm:$0xff]
        %v1787 = vld [vmem:[%s1779 + $0x70] sm:$0xff]
        %v1788 = vld [vmem:[%s1779 + $0x1] sm:$0xff]
        %v1789 = vld [vmem:[%s1779 + $0x11] sm:$0xff]
        %v1790 = vld [vmem:[%s1779 + $0x21] sm:$0xff]
        %v1791 = vld [vmem:[%s1779 + $0x31] sm:$0xff]
        %v1792 = vld [vmem:[%s1779 + $0x41] sm:$0xff]
        %v1793 = vld [vmem:[%s1779 + $0x51] sm:$0xff]
        %v1794 = vld [vmem:[%s1779 + $0x61] sm:$0xff]
        %v1795 = vld [vmem:[%s1779 + $0x71] sm:$0xff]
        %v1796 = vld [vmem:[%s1779 + $0x2] sm:$0xff]
        %v1797 = vld [vmem:[%s1779 + $0x12] sm:$0xff]
        %v1798 = vld [vmem:[%s1779 + $0x22] sm:$0xff]
        %v1799 = vld [vmem:[%s1779 + $0x32] sm:$0xff]
        %v1800 = vld [vmem:[%s1779 + $0x42] sm:$0xff]
        %v1801 = vld [vmem:[%s1779 + $0x52] sm:$0xff]
        %v1802 = vld [vmem:[%s1779 + $0x62] sm:$0xff]
        %v1803 = vld [vmem:[%s1779 + $0x72] sm:$0xff]
        %s1804 = scalar_lea.vmem %s169, 512
        %v1805 = vld [vmem:[%s1804] sm:$0xff]
        %v1806 = vld [vmem:[%s1804 + $0x10] sm:$0xff]
        %v1807 = vld [vmem:[%s1804 + $0x20] sm:$0xff]
        %v1808 = vld [vmem:[%s1804 + $0x30] sm:$0xff]
        %v1809 = vld [vmem:[%s1804 + $0x40] sm:$0xff]
        %v1810 = vld [vmem:[%s1804 + $0x50] sm:$0xff]
        %v1811 = vld [vmem:[%s1804 + $0x60] sm:$0xff]
        %v1812 = vld [vmem:[%s1804 + $0x70] sm:$0xff]
        %v1813 = vld [vmem:[%s1804 + $0x1] sm:$0xff]
        %v1814 = vld [vmem:[%s1804 + $0x11] sm:$0xff]
        %v1815 = vld [vmem:[%s1804 + $0x21] sm:$0xff]
        %v1816 = vld [vmem:[%s1804 + $0x31] sm:$0xff]
        %v1817 = vld [vmem:[%s1804 + $0x41] sm:$0xff]
        %v1818 = vld [vmem:[%s1804 + $0x51] sm:$0xff]
        %v1819 = vld [vmem:[%s1804 + $0x61] sm:$0xff]
        %v1820 = vld [vmem:[%s1804 + $0x71] sm:$0xff]
        %v1821 = vld [vmem:[%s1804 + $0x2] sm:$0xff]
        %v1822 = vld [vmem:[%s1804 + $0x12] sm:$0xff]
        %v1823 = vld [vmem:[%s1804 + $0x22] sm:$0xff]
        %v1824 = vld [vmem:[%s1804 + $0x32] sm:$0xff]
        %v1825 = vld [vmem:[%s1804 + $0x42] sm:$0xff]
        %v1826 = vld [vmem:[%s1804 + $0x52] sm:$0xff]
        %v1827 = vld [vmem:[%s1804 + $0x62] sm:$0xff]
        %v1828 = vld [vmem:[%s1804 + $0x72] sm:$0xff]
        %1837 = vrot.lane.b32.xlu0 %v1618, 4
        %v1838 = vpop.permute.xlu0 %1837
        %1839 = vrot.lane.b32.xlu0 %v1619, 4
        %v1840 = vpop.permute.xlu0 %1839
        %1841 = vrot.lane.b32.xlu0 %v1620, 4
        %v1842 = vpop.permute.xlu0 %1841
        %1843 = vrot.lane.b32.xlu0 %v1621, 4
        %v1844 = vpop.permute.xlu0 %1843
        %1845 = vrot.lane.b32.xlu0 %v1622, 4
        %v1846 = vpop.permute.xlu0 %1845
        %1847 = vrot.lane.b32.xlu0 %v1623, 4
        %v1848 = vpop.permute.xlu0 %1847
        %1849 = vrot.lane.b32.xlu0 %v1624, 4
        %v1850 = vpop.permute.xlu0 %1849
        %1851 = vrot.lane.b32.xlu0 %v1625, 4
        %v1852 = vpop.permute.xlu0 %1851
        %1869 = vrot.lane.b32.xlu0 %v1626, 8
        %v1870 = vpop.permute.xlu0 %1869
        %1871 = vrot.lane.b32.xlu0 %v1627, 8
        %v1872 = vpop.permute.xlu0 %1871
        %1873 = vrot.lane.b32.xlu0 %v1628, 8
        %v1874 = vpop.permute.xlu0 %1873
        %1875 = vrot.lane.b32.xlu0 %v1629, 8
        %v1876 = vpop.permute.xlu0 %1875
        %1877 = vrot.lane.b32.xlu0 %v1630, 8
        %v1878 = vpop.permute.xlu0 %1877
        %1879 = vrot.lane.b32.xlu0 %v1631, 8
        %v1880 = vpop.permute.xlu0 %1879
        %1881 = vrot.lane.b32.xlu0 %v1632, 8
        %v1882 = vpop.permute.xlu0 %1881
        %1883 = vrot.lane.b32.xlu0 %v1633, 8
        %v1884 = vpop.permute.xlu0 %1883
        %1901 = vrot.lane.b32.xlu0 %v1634, 12
        %v1902 = vpop.permute.xlu0 %1901
        %1903 = vrot.lane.b32.xlu0 %v1635, 12
        %v1904 = vpop.permute.xlu0 %1903
        %1905 = vrot.lane.b32.xlu0 %v1636, 12
        %v1906 = vpop.permute.xlu0 %1905
        %1907 = vrot.lane.b32.xlu0 %v1637, 12
        %v1908 = vpop.permute.xlu0 %1907
        %1909 = vrot.lane.b32.xlu0 %v1638, 12
        %v1910 = vpop.permute.xlu0 %1909
        %1911 = vrot.lane.b32.xlu0 %v1639, 12
        %v1912 = vpop.permute.xlu0 %1911
        %1913 = vrot.lane.b32.xlu0 %v1640, 12
        %v1914 = vpop.permute.xlu0 %1913
        %1915 = vrot.lane.b32.xlu0 %v1641, 12
        %v1916 = vpop.permute.xlu0 %1915
        %1933 = vrot.lane.b32.xlu0 %v1642, 16
        %v1934 = vpop.permute.xlu0 %1933
        %1935 = vrot.lane.b32.xlu0 %v1643, 16
        %v1936 = vpop.permute.xlu0 %1935
        %1937 = vrot.lane.b32.xlu0 %v1644, 16
        %v1938 = vpop.permute.xlu0 %1937
        %1939 = vrot.lane.b32.xlu0 %v1645, 16
        %v1940 = vpop.permute.xlu0 %1939
        %1941 = vrot.lane.b32.xlu0 %v1646, 16
        %v1942 = vpop.permute.xlu0 %1941
        %1943 = vrot.lane.b32.xlu0 %v1647, 16
        %v1944 = vpop.permute.xlu0 %1943
        %1945 = vrot.lane.b32.xlu0 %v1648, 16
        %v1946 = vpop.permute.xlu0 %1945
        %1947 = vrot.lane.b32.xlu0 %v1649, 16
        %v1948 = vpop.permute.xlu0 %1947
        %1965 = vrot.lane.b32.xlu0 %v1650, 20
        %v1966 = vpop.permute.xlu0 %1965
        %1967 = vrot.lane.b32.xlu0 %v1651, 20
        %v1968 = vpop.permute.xlu0 %1967
        %1969 = vrot.lane.b32.xlu0 %v1652, 20
        %v1970 = vpop.permute.xlu0 %1969
        %1971 = vrot.lane.b32.xlu0 %v1653, 20
        %v1972 = vpop.permute.xlu0 %1971
        %1973 = vrot.lane.b32.xlu0 %v1654, 20
        %v1974 = vpop.permute.xlu0 %1973
        %1975 = vrot.lane.b32.xlu0 %v1655, 20
        %v1976 = vpop.permute.xlu0 %1975
        %1977 = vrot.lane.b32.xlu0 %v1656, 20
        %v1978 = vpop.permute.xlu0 %1977
        %1979 = vrot.lane.b32.xlu0 %v1657, 20
        %v1980 = vpop.permute.xlu0 %1979
        %1997 = vrot.lane.b32.xlu0 %v1658, 24
        %v1998 = vpop.permute.xlu0 %1997
        %1999 = vrot.lane.b32.xlu0 %v1659, 24
        %v2000 = vpop.permute.xlu0 %1999
        %2001 = vrot.lane.b32.xlu0 %v1660, 24
        %v2002 = vpop.permute.xlu0 %2001
        %2003 = vrot.lane.b32.xlu0 %v1661, 24
        %v2004 = vpop.permute.xlu0 %2003
        %2005 = vrot.lane.b32.xlu0 %v1662, 24
        %v2006 = vpop.permute.xlu0 %2005
        %2007 = vrot.lane.b32.xlu0 %v1663, 24
        %v2008 = vpop.permute.xlu0 %2007
        %2009 = vrot.lane.b32.xlu0 %v1664, 24
        %v2010 = vpop.permute.xlu0 %2009
        %2011 = vrot.lane.b32.xlu0 %v1665, 24
        %v2012 = vpop.permute.xlu0 %2011
        %2029 = vrot.lane.b32.xlu0 %v1666, 28
        %v2030 = vpop.permute.xlu0 %2029
        %2031 = vrot.lane.b32.xlu0 %v1667, 28
        %v2032 = vpop.permute.xlu0 %2031
        %2033 = vrot.lane.b32.xlu0 %v1668, 28
        %v2034 = vpop.permute.xlu0 %2033
        %2035 = vrot.lane.b32.xlu0 %v1669, 28
        %v2036 = vpop.permute.xlu0 %2035
        %2037 = vrot.lane.b32.xlu0 %v1670, 28
        %v2038 = vpop.permute.xlu0 %2037
        %2039 = vrot.lane.b32.xlu0 %v1671, 28
        %v2040 = vpop.permute.xlu0 %2039
        %2041 = vrot.lane.b32.xlu0 %v1672, 28
        %v2042 = vpop.permute.xlu0 %2041
        %2043 = vrot.lane.b32.xlu0 %v1673, 28
        %v2044 = vpop.permute.xlu0 %2043
        %2061 = vrot.lane.b32.xlu0 %v1674, 32
        %v2062 = vpop.permute.xlu0 %2061
        %2063 = vrot.lane.b32.xlu0 %v1675, 32
        %v2064 = vpop.permute.xlu0 %2063
        %2065 = vrot.lane.b32.xlu0 %v1676, 32
        %v2066 = vpop.permute.xlu0 %2065
        %2067 = vrot.lane.b32.xlu0 %v1677, 32
        %v2068 = vpop.permute.xlu0 %2067
        %2069 = vrot.lane.b32.xlu0 %v1678, 32
        %v2070 = vpop.permute.xlu0 %2069
        %2071 = vrot.lane.b32.xlu0 %v1679, 32
        %v2072 = vpop.permute.xlu0 %2071
        %2073 = vrot.lane.b32.xlu0 %v1680, 32
        %v2074 = vpop.permute.xlu0 %2073
        %2075 = vrot.lane.b32.xlu0 %v1681, 32
        %v2076 = vpop.permute.xlu0 %2075
        %2093 = vrot.lane.b32.xlu0 %v1682, 36
        %v2094 = vpop.permute.xlu0 %2093
        %2095 = vrot.lane.b32.xlu0 %v1683, 36
        %v2096 = vpop.permute.xlu0 %2095
        %2097 = vrot.lane.b32.xlu0 %v1684, 36
        %v2098 = vpop.permute.xlu0 %2097
        %2099 = vrot.lane.b32.xlu0 %v1685, 36
        %v2100 = vpop.permute.xlu0 %2099
        %2101 = vrot.lane.b32.xlu0 %v1686, 36
        %v2102 = vpop.permute.xlu0 %2101
        %2103 = vrot.lane.b32.xlu0 %v1687, 36
        %v2104 = vpop.permute.xlu0 %2103
        %2105 = vrot.lane.b32.xlu0 %v1688, 36
        %v2106 = vpop.permute.xlu0 %2105
        %2107 = vrot.lane.b32.xlu0 %v1689, 36
        %v2108 = vpop.permute.xlu0 %2107
        %2125 = vrot.lane.b32.xlu0 %v1690, 40
        %v2126 = vpop.permute.xlu0 %2125
        %2127 = vrot.lane.b32.xlu0 %v1691, 40
        %v2128 = vpop.permute.xlu0 %2127
        %2129 = vrot.lane.b32.xlu0 %v1692, 40
        %v2130 = vpop.permute.xlu0 %2129
        %2131 = vrot.lane.b32.xlu0 %v1693, 40
        %v2132 = vpop.permute.xlu0 %2131
        %2133 = vrot.lane.b32.xlu0 %v1694, 40
        %v2134 = vpop.permute.xlu0 %2133
        %2135 = vrot.lane.b32.xlu0 %v1695, 40
        %v2136 = vpop.permute.xlu0 %2135
        %2137 = vrot.lane.b32.xlu0 %v1696, 40
        %v2138 = vpop.permute.xlu0 %2137
        %2139 = vrot.lane.b32.xlu0 %v1697, 40
        %v2140 = vpop.permute.xlu0 %2139
        %2157 = vrot.lane.b32.xlu0 %v1698, 44
        %v2158 = vpop.permute.xlu0 %2157
        %2159 = vrot.lane.b32.xlu0 %v1699, 44
        %v2160 = vpop.permute.xlu0 %2159
        %2161 = vrot.lane.b32.xlu0 %v1700, 44
        %v2162 = vpop.permute.xlu0 %2161
        %2163 = vrot.lane.b32.xlu0 %v1701, 44
        %v2164 = vpop.permute.xlu0 %2163
        %2165 = vrot.lane.b32.xlu0 %v1702, 44
        %v2166 = vpop.permute.xlu0 %2165
        %2167 = vrot.lane.b32.xlu0 %v1703, 44
        %v2168 = vpop.permute.xlu0 %2167
        %2169 = vrot.lane.b32.xlu0 %v1704, 44
        %v2170 = vpop.permute.xlu0 %2169
        %2171 = vrot.lane.b32.xlu0 %v1705, 44
        %v2172 = vpop.permute.xlu0 %2171
        %2189 = vrot.lane.b32.xlu0 %v1706, 48
        %v2190 = vpop.permute.xlu0 %2189
        %2191 = vrot.lane.b32.xlu0 %v1707, 48
        %v2192 = vpop.permute.xlu0 %2191
        %2193 = vrot.lane.b32.xlu0 %v1708, 48
        %v2194 = vpop.permute.xlu0 %2193
        %2195 = vrot.lane.b32.xlu0 %v1709, 48
        %v2196 = vpop.permute.xlu0 %2195
        %2197 = vrot.lane.b32.xlu0 %v1710, 48
        %v2198 = vpop.permute.xlu0 %2197
        %2199 = vrot.lane.b32.xlu0 %v1711, 48
        %v2200 = vpop.permute.xlu0 %2199
        %2201 = vrot.lane.b32.xlu0 %v1712, 48
        %v2202 = vpop.permute.xlu0 %2201
        %2203 = vrot.lane.b32.xlu0 %v1713, 48
        %v2204 = vpop.permute.xlu0 %2203
        %2221 = vrot.lane.b32.xlu0 %v1714, 52
        %v2222 = vpop.permute.xlu0 %2221
        %2223 = vrot.lane.b32.xlu0 %v1715, 52
        %v2224 = vpop.permute.xlu0 %2223
        %2225 = vrot.lane.b32.xlu0 %v1716, 52
        %v2226 = vpop.permute.xlu0 %2225
        %2227 = vrot.lane.b32.xlu0 %v1717, 52
        %v2228 = vpop.permute.xlu0 %2227
        %2229 = vrot.lane.b32.xlu0 %v1718, 52
        %v2230 = vpop.permute.xlu0 %2229
        %2231 = vrot.lane.b32.xlu0 %v1719, 52
        %v2232 = vpop.permute.xlu0 %2231
        %2233 = vrot.lane.b32.xlu0 %v1720, 52
        %v2234 = vpop.permute.xlu0 %2233
        %2235 = vrot.lane.b32.xlu0 %v1721, 52
        %v2236 = vpop.permute.xlu0 %2235
        %2253 = vrot.lane.b32.xlu0 %v1722, 56
        %v2254 = vpop.permute.xlu0 %2253
        %2255 = vrot.lane.b32.xlu0 %v1723, 56
        %v2256 = vpop.permute.xlu0 %2255
        %2257 = vrot.lane.b32.xlu0 %v1724, 56
        %v2258 = vpop.permute.xlu0 %2257
        %2259 = vrot.lane.b32.xlu0 %v1725, 56
        %v2260 = vpop.permute.xlu0 %2259
        %2261 = vrot.lane.b32.xlu0 %v1726, 56
        %v2262 = vpop.permute.xlu0 %2261
        %2263 = vrot.lane.b32.xlu0 %v1727, 56
        %v2264 = vpop.permute.xlu0 %2263
        %2265 = vrot.lane.b32.xlu0 %v1728, 56
        %v2266 = vpop.permute.xlu0 %2265
        %2267 = vrot.lane.b32.xlu0 %v1729, 56
        %v2268 = vpop.permute.xlu0 %2267
        %2285 = vrot.lane.b32.xlu0 %v1730, 60
        %v2286 = vpop.permute.xlu0 %2285
        %2287 = vrot.lane.b32.xlu0 %v1731, 60
        %v2288 = vpop.permute.xlu0 %2287
        %2289 = vrot.lane.b32.xlu0 %v1732, 60
        %v2290 = vpop.permute.xlu0 %2289
        %2291 = vrot.lane.b32.xlu0 %v1733, 60
        %v2292 = vpop.permute.xlu0 %2291
        %2293 = vrot.lane.b32.xlu0 %v1734, 60
        %v2294 = vpop.permute.xlu0 %2293
        %2295 = vrot.lane.b32.xlu0 %v1735, 60
        %v2296 = vpop.permute.xlu0 %2295
        %2297 = vrot.lane.b32.xlu0 %v1736, 60
        %v2298 = vpop.permute.xlu0 %2297
        %2299 = vrot.lane.b32.xlu0 %v1737, 60
        %v2300 = vpop.permute.xlu0 %2299
        %v2309 = vsel %vm892, %v1610, %v1838
        %v2310 = vsel %vm892, %v1611, %v1840
        %v2311 = vsel %vm892, %v1612, %v1842
        %v2312 = vsel %vm892, %v1613, %v1844
        %v2313 = vsel %vm892, %v1614, %v1846
        %v2314 = vsel %vm892, %v1615, %v1848
        %v2315 = vsel %vm892, %v1616, %v1850
        %v2316 = vsel %vm892, %v1617, %v1852
        %v2317 = vsel %vm901, %v2309, %v1870
        %v2318 = vsel %vm901, %v2310, %v1872
        %v2319 = vsel %vm901, %v2311, %v1874
        %v2320 = vsel %vm901, %v2312, %v1876
        %v2321 = vsel %vm901, %v2313, %v1878
        %v2322 = vsel %vm901, %v2314, %v1880
        %v2323 = vsel %vm901, %v2315, %v1882
        %v2324 = vsel %vm901, %v2316, %v1884
        %v2325 = vsel %vm910, %v2317, %v1902
        %v2326 = vsel %vm910, %v2318, %v1904
        %v2327 = vsel %vm910, %v2319, %v1906
        %v2328 = vsel %vm910, %v2320, %v1908
        %v2329 = vsel %vm910, %v2321, %v1910
        %v2330 = vsel %vm910, %v2322, %v1912
        %v2331 = vsel %vm910, %v2323, %v1914
        %v2332 = vsel %vm910, %v2324, %v1916
        %v2333 = vsel %vm919, %v2325, %v1934
        %v2334 = vsel %vm919, %v2326, %v1936
        %v2335 = vsel %vm919, %v2327, %v1938
        %v2336 = vsel %vm919, %v2328, %v1940
        %v2337 = vsel %vm919, %v2329, %v1942
        %v2338 = vsel %vm919, %v2330, %v1944
        %v2339 = vsel %vm919, %v2331, %v1946
        %v2340 = vsel %vm919, %v2332, %v1948
        %v2341 = vsel %vm928, %v2333, %v1966
        %v2342 = vsel %vm928, %v2334, %v1968
        %v2343 = vsel %vm928, %v2335, %v1970
        %v2344 = vsel %vm928, %v2336, %v1972
        %v2345 = vsel %vm928, %v2337, %v1974
        %v2346 = vsel %vm928, %v2338, %v1976
        %v2347 = vsel %vm928, %v2339, %v1978
        %v2348 = vsel %vm928, %v2340, %v1980
        %v2349 = vsel %vm937, %v2341, %v1998
        %v2350 = vsel %vm937, %v2342, %v2000
        %v2351 = vsel %vm937, %v2343, %v2002
        %v2352 = vsel %vm937, %v2344, %v2004
        %v2353 = vsel %vm937, %v2345, %v2006
        %v2354 = vsel %vm937, %v2346, %v2008
        %v2355 = vsel %vm937, %v2347, %v2010
        %v2356 = vsel %vm937, %v2348, %v2012
        %v2357 = vsel %vm946, %v2349, %v2030
        %v2358 = vsel %vm946, %v2350, %v2032
        %v2359 = vsel %vm946, %v2351, %v2034
        %v2360 = vsel %vm946, %v2352, %v2036
        %v2361 = vsel %vm946, %v2353, %v2038
        %v2362 = vsel %vm946, %v2354, %v2040
        %v2363 = vsel %vm946, %v2355, %v2042
        %v2364 = vsel %vm946, %v2356, %v2044
        %v2365 = vsel %vm955, %v2357, %v2062
        %v2366 = vsel %vm955, %v2358, %v2064
        %v2367 = vsel %vm955, %v2359, %v2066
        %v2368 = vsel %vm955, %v2360, %v2068
        %v2369 = vsel %vm955, %v2361, %v2070
        %v2370 = vsel %vm955, %v2362, %v2072
        %v2371 = vsel %vm955, %v2363, %v2074
        %v2372 = vsel %vm955, %v2364, %v2076
        %v2373 = vsel %vm964, %v2365, %v2094
        %v2374 = vsel %vm964, %v2366, %v2096
        %v2375 = vsel %vm964, %v2367, %v2098
        %v2376 = vsel %vm964, %v2368, %v2100
        %v2377 = vsel %vm964, %v2369, %v2102
        %v2378 = vsel %vm964, %v2370, %v2104
        %v2379 = vsel %vm964, %v2371, %v2106
        %v2380 = vsel %vm964, %v2372, %v2108
        %v2381 = vsel %vm973, %v2373, %v2126
        %v2382 = vsel %vm973, %v2374, %v2128
        %v2383 = vsel %vm973, %v2375, %v2130
        %v2384 = vsel %vm973, %v2376, %v2132
        %v2385 = vsel %vm973, %v2377, %v2134
        %v2386 = vsel %vm973, %v2378, %v2136
        %v2387 = vsel %vm973, %v2379, %v2138
        %v2388 = vsel %vm973, %v2380, %v2140
        %v2389 = vsel %vm982, %v2381, %v2158
        %v2390 = vsel %vm982, %v2382, %v2160
        %v2391 = vsel %vm982, %v2383, %v2162
        %v2392 = vsel %vm982, %v2384, %v2164
        %v2393 = vsel %vm982, %v2385, %v2166
        %v2394 = vsel %vm982, %v2386, %v2168
        %v2395 = vsel %vm982, %v2387, %v2170
        %v2396 = vsel %vm982, %v2388, %v2172
        %v2397 = vsel %vm991, %v2389, %v2190
        %v2398 = vsel %vm991, %v2390, %v2192
        %v2399 = vsel %vm991, %v2391, %v2194
        %v2400 = vsel %vm991, %v2392, %v2196
        %v2401 = vsel %vm991, %v2393, %v2198
        %v2402 = vsel %vm991, %v2394, %v2200
        %v2403 = vsel %vm991, %v2395, %v2202
        %v2404 = vsel %vm991, %v2396, %v2204
        %v2405 = vsel %vm1000, %v2397, %v2222
        %v2406 = vsel %vm1000, %v2398, %v2224
        %v2407 = vsel %vm1000, %v2399, %v2226
        %v2408 = vsel %vm1000, %v2400, %v2228
        %v2409 = vsel %vm1000, %v2401, %v2230
        %v2410 = vsel %vm1000, %v2402, %v2232
        %v2411 = vsel %vm1000, %v2403, %v2234
        %v2412 = vsel %vm1000, %v2404, %v2236
        %v2413 = vsel %vm1009, %v2405, %v2254
        %v2414 = vsel %vm1009, %v2406, %v2256
        %v2415 = vsel %vm1009, %v2407, %v2258
        %v2416 = vsel %vm1009, %v2408, %v2260
        %v2417 = vsel %vm1009, %v2409, %v2262
        %v2418 = vsel %vm1009, %v2410, %v2264
        %v2419 = vsel %vm1009, %v2411, %v2266
        %v2420 = vsel %vm1009, %v2412, %v2268
        %v2421 = vsel %vm1018, %v2413, %v2286
        %v2422 = vsel %vm1018, %v2414, %v2288
        %v2423 = vsel %vm1018, %v2415, %v2290
        %v2424 = vsel %vm1018, %v2416, %v2292
        %v2425 = vsel %vm1018, %v2417, %v2294
        %v2426 = vsel %vm1018, %v2418, %v2296
        %v2427 = vsel %vm1018, %v2419, %v2298
        %v2428 = vsel %vm1018, %v2420, %v2300
        %2437 = vrot.lane.b32.xlu0 %v1746, 4
        %v2438 = vpop.permute.xlu0 %2437
        %2439 = vrot.lane.b32.xlu0 %v1747, 4
        %v2440 = vpop.permute.xlu0 %2439
        %2441 = vrot.lane.b32.xlu0 %v1748, 4
        %v2442 = vpop.permute.xlu0 %2441
        %2443 = vrot.lane.b32.xlu0 %v1749, 4
        %v2444 = vpop.permute.xlu0 %2443
        %2445 = vrot.lane.b32.xlu0 %v1750, 4
        %v2446 = vpop.permute.xlu0 %2445
        %2447 = vrot.lane.b32.xlu0 %v1751, 4
        %v2448 = vpop.permute.xlu0 %2447
        %2449 = vrot.lane.b32.xlu0 %v1752, 4
        %v2450 = vpop.permute.xlu0 %2449
        %2451 = vrot.lane.b32.xlu0 %v1753, 4
        %v2452 = vpop.permute.xlu0 %2451
        %2469 = vrot.lane.b32.xlu0 %v1755, 8
        %v2470 = vpop.permute.xlu0 %2469
        %2471 = vrot.lane.b32.xlu0 %v1756, 8
        %v2472 = vpop.permute.xlu0 %2471
        %2473 = vrot.lane.b32.xlu0 %v1757, 8
        %v2474 = vpop.permute.xlu0 %2473
        %2475 = vrot.lane.b32.xlu0 %v1758, 8
        %v2476 = vpop.permute.xlu0 %2475
        %2477 = vrot.lane.b32.xlu0 %v1759, 8
        %v2478 = vpop.permute.xlu0 %2477
        %2479 = vrot.lane.b32.xlu0 %v1760, 8
        %v2480 = vpop.permute.xlu0 %2479
        %2481 = vrot.lane.b32.xlu0 %v1761, 8
        %v2482 = vpop.permute.xlu0 %2481
        %2483 = vrot.lane.b32.xlu0 %v1762, 8
        %v2484 = vpop.permute.xlu0 %2483
        %2501 = vrot.lane.b32.xlu0 %v1763, 12
        %v2502 = vpop.permute.xlu0 %2501
        %2503 = vrot.lane.b32.xlu0 %v1764, 12
        %v2504 = vpop.permute.xlu0 %2503
        %2505 = vrot.lane.b32.xlu0 %v1765, 12
        %v2506 = vpop.permute.xlu0 %2505
        %2507 = vrot.lane.b32.xlu0 %v1766, 12
        %v2508 = vpop.permute.xlu0 %2507
        %2509 = vrot.lane.b32.xlu0 %v1767, 12
        %v2510 = vpop.permute.xlu0 %2509
        %2511 = vrot.lane.b32.xlu0 %v1768, 12
        %v2512 = vpop.permute.xlu0 %2511
        %2513 = vrot.lane.b32.xlu0 %v1769, 12
        %v2514 = vpop.permute.xlu0 %2513
        %2515 = vrot.lane.b32.xlu0 %v1770, 12
        %v2516 = vpop.permute.xlu0 %2515
        %2533 = vrot.lane.b32.xlu0 %v1771, 16
        %v2534 = vpop.permute.xlu0 %2533
        %2535 = vrot.lane.b32.xlu0 %v1772, 16
        %v2536 = vpop.permute.xlu0 %2535
        %2537 = vrot.lane.b32.xlu0 %v1773, 16
        %v2538 = vpop.permute.xlu0 %2537
        %2539 = vrot.lane.b32.xlu0 %v1774, 16
        %v2540 = vpop.permute.xlu0 %2539
        %2541 = vrot.lane.b32.xlu0 %v1775, 16
        %v2542 = vpop.permute.xlu0 %2541
        %2543 = vrot.lane.b32.xlu0 %v1776, 16
        %v2544 = vpop.permute.xlu0 %2543
        %2545 = vrot.lane.b32.xlu0 %v1777, 16
        %v2546 = vpop.permute.xlu0 %2545
        %2547 = vrot.lane.b32.xlu0 %v1778, 16
        %v2548 = vpop.permute.xlu0 %2547
        %2565 = vrot.lane.b32.xlu0 %v1780, 20
        %v2566 = vpop.permute.xlu0 %2565
        %2567 = vrot.lane.b32.xlu0 %v1781, 20
        %v2568 = vpop.permute.xlu0 %2567
        %2569 = vrot.lane.b32.xlu0 %v1782, 20
        %v2570 = vpop.permute.xlu0 %2569
        %2571 = vrot.lane.b32.xlu0 %v1783, 20
        %v2572 = vpop.permute.xlu0 %2571
        %2573 = vrot.lane.b32.xlu0 %v1784, 20
        %v2574 = vpop.permute.xlu0 %2573
        %2575 = vrot.lane.b32.xlu0 %v1785, 20
        %v2576 = vpop.permute.xlu0 %2575
        %2577 = vrot.lane.b32.xlu0 %v1786, 20
        %v2578 = vpop.permute.xlu0 %2577
        %2579 = vrot.lane.b32.xlu0 %v1787, 20
        %v2580 = vpop.permute.xlu0 %2579
        %2597 = vrot.lane.b32.xlu0 %v1788, 24
        %v2598 = vpop.permute.xlu0 %2597
        %2599 = vrot.lane.b32.xlu0 %v1789, 24
        %v2600 = vpop.permute.xlu0 %2599
        %2601 = vrot.lane.b32.xlu0 %v1790, 24
        %v2602 = vpop.permute.xlu0 %2601
        %2603 = vrot.lane.b32.xlu0 %v1791, 24
        %v2604 = vpop.permute.xlu0 %2603
        %2605 = vrot.lane.b32.xlu0 %v1792, 24
        %v2606 = vpop.permute.xlu0 %2605
        %2607 = vrot.lane.b32.xlu0 %v1793, 24
        %v2608 = vpop.permute.xlu0 %2607
        %2609 = vrot.lane.b32.xlu0 %v1794, 24
        %v2610 = vpop.permute.xlu0 %2609
        %2611 = vrot.lane.b32.xlu0 %v1795, 24
        %v2612 = vpop.permute.xlu0 %2611
        %2629 = vrot.lane.b32.xlu0 %v1796, 28
        %v2630 = vpop.permute.xlu0 %2629
        %2631 = vrot.lane.b32.xlu0 %v1797, 28
        %v2632 = vpop.permute.xlu0 %2631
        %2633 = vrot.lane.b32.xlu0 %v1798, 28
        %v2634 = vpop.permute.xlu0 %2633
        %2635 = vrot.lane.b32.xlu0 %v1799, 28
        %v2636 = vpop.permute.xlu0 %2635
        %2637 = vrot.lane.b32.xlu0 %v1800, 28
        %v2638 = vpop.permute.xlu0 %2637
        %2639 = vrot.lane.b32.xlu0 %v1801, 28
        %v2640 = vpop.permute.xlu0 %2639
        %2641 = vrot.lane.b32.xlu0 %v1802, 28
        %v2642 = vpop.permute.xlu0 %2641
        %2643 = vrot.lane.b32.xlu0 %v1803, 28
        %v2644 = vpop.permute.xlu0 %2643
        %2661 = vrot.lane.b32.xlu0 %v1805, 32
        %v2662 = vpop.permute.xlu0 %2661
        %2663 = vrot.lane.b32.xlu0 %v1806, 32
        %v2664 = vpop.permute.xlu0 %2663
        %2665 = vrot.lane.b32.xlu0 %v1807, 32
        %v2666 = vpop.permute.xlu0 %2665
        %2667 = vrot.lane.b32.xlu0 %v1808, 32
        %v2668 = vpop.permute.xlu0 %2667
        %2669 = vrot.lane.b32.xlu0 %v1809, 32
        %v2670 = vpop.permute.xlu0 %2669
        %2671 = vrot.lane.b32.xlu0 %v1810, 32
        %v2672 = vpop.permute.xlu0 %2671
        %2673 = vrot.lane.b32.xlu0 %v1811, 32
        %v2674 = vpop.permute.xlu0 %2673
        %2675 = vrot.lane.b32.xlu0 %v1812, 32
        %v2676 = vpop.permute.xlu0 %2675
        %2693 = vrot.lane.b32.xlu0 %v1813, 36
        %v2694 = vpop.permute.xlu0 %2693
        %2695 = vrot.lane.b32.xlu0 %v1814, 36
        %v2696 = vpop.permute.xlu0 %2695
        %2697 = vrot.lane.b32.xlu0 %v1815, 36
        %v2698 = vpop.permute.xlu0 %2697
        %2699 = vrot.lane.b32.xlu0 %v1816, 36
        %v2700 = vpop.permute.xlu0 %2699
        %2701 = vrot.lane.b32.xlu0 %v1817, 36
        %v2702 = vpop.permute.xlu0 %2701
        %2703 = vrot.lane.b32.xlu0 %v1818, 36
        %v2704 = vpop.permute.xlu0 %2703
        %2705 = vrot.lane.b32.xlu0 %v1819, 36
        %v2706 = vpop.permute.xlu0 %2705
        %2707 = vrot.lane.b32.xlu0 %v1820, 36
        %v2708 = vpop.permute.xlu0 %2707
        %2725 = vrot.lane.b32.xlu0 %v1821, 40
        %v2726 = vpop.permute.xlu0 %2725
        %2727 = vrot.lane.b32.xlu0 %v1822, 40
        %v2728 = vpop.permute.xlu0 %2727
        %2729 = vrot.lane.b32.xlu0 %v1823, 40
        %v2730 = vpop.permute.xlu0 %2729
        %2731 = vrot.lane.b32.xlu0 %v1824, 40
        %v2732 = vpop.permute.xlu0 %2731
        %2733 = vrot.lane.b32.xlu0 %v1825, 40
        %v2734 = vpop.permute.xlu0 %2733
        %2735 = vrot.lane.b32.xlu0 %v1826, 40
        %v2736 = vpop.permute.xlu0 %2735
        %2737 = vrot.lane.b32.xlu0 %v1827, 40
        %v2738 = vpop.permute.xlu0 %2737
        %2739 = vrot.lane.b32.xlu0 %v1828, 40
        %v2740 = vpop.permute.xlu0 %2739
        %v2749 = vsel %vm892, %v1738, %v2438
        %v2750 = vsel %vm892, %v1739, %v2440
        %v2751 = vsel %vm892, %v1740, %v2442
        %v2752 = vsel %vm892, %v1741, %v2444
        %v2753 = vsel %vm892, %v1742, %v2446
        %v2754 = vsel %vm892, %v1743, %v2448
        %v2755 = vsel %vm892, %v1744, %v2450
        %v2756 = vsel %vm892, %v1745, %v2452
        %v2757 = vsel %vm901, %v2749, %v2470
        %v2758 = vsel %vm901, %v2750, %v2472
        %v2759 = vsel %vm901, %v2751, %v2474
        %v2760 = vsel %vm901, %v2752, %v2476
        %v2761 = vsel %vm901, %v2753, %v2478
        %v2762 = vsel %vm901, %v2754, %v2480
        %v2763 = vsel %vm901, %v2755, %v2482
        %v2764 = vsel %vm901, %v2756, %v2484
        %v2765 = vsel %vm910, %v2757, %v2502
        %v2766 = vsel %vm910, %v2758, %v2504
        %v2767 = vsel %vm910, %v2759, %v2506
        %v2768 = vsel %vm910, %v2760, %v2508
        %v2769 = vsel %vm910, %v2761, %v2510
        %v2770 = vsel %vm910, %v2762, %v2512
        %v2771 = vsel %vm910, %v2763, %v2514
        %v2772 = vsel %vm910, %v2764, %v2516
        %v2773 = vsel %vm919, %v2765, %v2534
        %v2774 = vsel %vm919, %v2766, %v2536
        %v2775 = vsel %vm919, %v2767, %v2538
        %v2776 = vsel %vm919, %v2768, %v2540
        %v2777 = vsel %vm919, %v2769, %v2542
        %v2778 = vsel %vm919, %v2770, %v2544
        %v2779 = vsel %vm919, %v2771, %v2546
        %v2780 = vsel %vm919, %v2772, %v2548
        %v2781 = vsel %vm928, %v2773, %v2566
        %v2782 = vsel %vm928, %v2774, %v2568
        %v2783 = vsel %vm928, %v2775, %v2570
        %v2784 = vsel %vm928, %v2776, %v2572
        %v2785 = vsel %vm928, %v2777, %v2574
        %v2786 = vsel %vm928, %v2778, %v2576
        %v2787 = vsel %vm928, %v2779, %v2578
        %v2788 = vsel %vm928, %v2780, %v2580
        %v2789 = vsel %vm937, %v2781, %v2598
        %v2790 = vsel %vm937, %v2782, %v2600
        %v2791 = vsel %vm937, %v2783, %v2602
        %v2792 = vsel %vm937, %v2784, %v2604
        %v2793 = vsel %vm937, %v2785, %v2606
        %v2794 = vsel %vm937, %v2786, %v2608
        %v2795 = vsel %vm937, %v2787, %v2610
        %v2796 = vsel %vm937, %v2788, %v2612
        %v2797 = vsel %vm946, %v2789, %v2630
        %v2798 = vsel %vm946, %v2790, %v2632
        %v2799 = vsel %vm946, %v2791, %v2634
        %v2800 = vsel %vm946, %v2792, %v2636
        %v2801 = vsel %vm946, %v2793, %v2638
        %v2802 = vsel %vm946, %v2794, %v2640
        %v2803 = vsel %vm946, %v2795, %v2642
        %v2804 = vsel %vm946, %v2796, %v2644
        %v2805 = vsel %vm955, %v2797, %v2662
        %v2806 = vsel %vm955, %v2798, %v2664
        %v2807 = vsel %vm955, %v2799, %v2666
        %v2808 = vsel %vm955, %v2800, %v2668
        %v2809 = vsel %vm955, %v2801, %v2670
        %v2810 = vsel %vm955, %v2802, %v2672
        %v2811 = vsel %vm955, %v2803, %v2674
        %v2812 = vsel %vm955, %v2804, %v2676
        %v2813 = vsel %vm964, %v2805, %v2694
        %v2814 = vsel %vm964, %v2806, %v2696
        %v2815 = vsel %vm964, %v2807, %v2698
        %v2816 = vsel %vm964, %v2808, %v2700
        %v2817 = vsel %vm964, %v2809, %v2702
        %v2818 = vsel %vm964, %v2810, %v2704
        %v2819 = vsel %vm964, %v2811, %v2706
        %v2820 = vsel %vm964, %v2812, %v2708
        %v2821 = vsel %vm973, %v2813, %v2726
        %v2822 = vsel %vm973, %v2814, %v2728
        %v2823 = vsel %vm973, %v2815, %v2730
        %v2824 = vsel %vm973, %v2816, %v2732
        %v2825 = vsel %vm973, %v2817, %v2734
        %v2826 = vsel %vm973, %v2818, %v2736
        %v2827 = vsel %vm973, %v2819, %v2738
        %v2828 = vsel %vm973, %v2820, %v2740
        %2837 = vrot.lane.b32.xlu0 %v2821, 64
        %v2838 = vpop.permute.xlu0 %2837
        %2839 = vrot.lane.b32.xlu0 %v2822, 64
        %v2840 = vpop.permute.xlu0 %2839
        %2841 = vrot.lane.b32.xlu0 %v2823, 64
        %v2842 = vpop.permute.xlu0 %2841
        %2843 = vrot.lane.b32.xlu0 %v2824, 64
        %v2844 = vpop.permute.xlu0 %2843
        %2845 = vrot.lane.b32.xlu0 %v2825, 64
        %v2846 = vpop.permute.xlu0 %2845
        %2847 = vrot.lane.b32.xlu0 %v2826, 64
        %v2848 = vpop.permute.xlu0 %2847
        %2849 = vrot.lane.b32.xlu0 %v2827, 64
        %v2850 = vpop.permute.xlu0 %2849
        %2851 = vrot.lane.b32.xlu0 %v2828, 64
        %v2852 = vpop.permute.xlu0 %2851
        %v2861 = vsel %vm1459, %v2421, %v2838
        %v2862 = vsel %vm1459, %v2422, %v2840
        %v2863 = vsel %vm1459, %v2423, %v2842
        %v2864 = vsel %vm1459, %v2424, %v2844
        %v2865 = vsel %vm1459, %v2425, %v2846
        %v2866 = vsel %vm1459, %v2426, %v2848
        %v2867 = vsel %vm1459, %v2427, %v2850
        %v2868 = vsel %vm1459, %v2428, %v2852
        %v2870 = vsel %vm1468, %v2861, 0
        %v2873 = vsel %vm1468, %v2862, 0
        %v2876 = vsel %vm1468, %v2863, 0
        %v2879 = vsel %vm1468, %v2864, 0
        %v2882 = vsel %vm1468, %v2865, 0
        %v2885 = vsel %vm1468, %v2866, 0
        %v2888 = vsel %vm1468, %v2867, 0
        %v2891 = vsel %vm1468, %v2868, 0
        %2893 = vmatprep.subr.mxu0 0.0
        %2894 = vmatpush1.msra.mxu0 0.0
        %2895 = vmatprep.subr.mxu0 0.0
        %2896 = vmatpush1.msra.mxu0 0.0
        %2897 = vmatprep.subr.mxu0 0.0
        %2898 = vmatpush1.msra.mxu0 %v1495
        %2899 = vmatprep.subr.mxu0 0.0
        %2900 = vmatpush1.msra.mxu0 %v186
        %2901 = vmatprep.subr.mxu0 0.0
        %2902 = vmatpush1.msra.mxu0 %v185
        %2903 = vmatprep.subr.mxu0 0.0
        %2904 = vmatpush1.msra.mxu0 %v184
        %2905 = vmatprep.subr.mxu0 0.0
        %2906 = vmatpush1.msra.mxu0 %v183
        %2907 = vmatprep.subr.mxu0 0.0
        %2908 = vmatpush1.msra.mxu0 %v182
        %2909 = vmatprep.subr.mxu0 0.0
        %2910 = vmatpush1.msra.mxu0 %v181
        %2911 = vmatprep.subr.mxu0 0.0
        %2912 = vmatpush1.msra.mxu0 %v180
        %2913 = vmatprep.subr.mxu0 0.0
        %2914 = vmatpush1.msra.mxu0 %v179
        %2915 = vmatprep.subr.mxu0 0.0
        %2916 = vmatpush1.msra.mxu0 %v178
        %2917 = vmatprep.subr.mxu0 0.0
        %2918 = vmatpush1.msra.mxu0 %v177
        %2919 = vmatprep.subr.mxu0 0.0
        %2920 = vmatpush1.msra.mxu0 %v176
        %2921 = vmatprep.subr.mxu0 0.0
        %2922 = vmatpush1.msra.mxu0 %v175
        %2923 = vmatprep.subr.mxu0 0.0
        %2924 = vmatpush1.msra.mxu0 %v174
        %2925 = vmatprep.subr.mxu0 0.0
        %2926 = vmatpush2.msra.mxu0 0.0
        %2927 = vmatprep.subr.mxu0 0.0
        %2928 = vmatpush2.msra.mxu0 0.0
        %2929 = vmatprep.subr.mxu0 0.0
        %2930 = vmatpush2.msra.mxu0 0.0
        %2931 = vmatprep.subr.mxu0 0.0
        %2932 = vmatpush2.msra.mxu0 0.0
        %2933 = vmatprep.subr.mxu0 0.0
        %2934 = vmatpush2.msra.mxu0 0.0
        %2935 = vmatprep.subr.mxu0 0.0
        %2936 = vmatpush2.msra.mxu0 0.0
        %2937 = vmatprep.subr.mxu0 0.0
        %2938 = vmatpush2.msra.mxu0 0.0
        %2939 = vmatprep.subr.mxu0 0.0
        %2940 = vmatpush2.msra.mxu0 0.0
        %2941 = vmatprep.subr.mxu0 0.0
        %2942 = vmatpush2.msra.mxu0 0.0
        %2943 = vmatprep.subr.mxu0 0.0
        %2944 = vmatpush2.msra.mxu0 0.0
        %2945 = vmatprep.subr.mxu0 0.0
        %2946 = vmatpush2.msra.mxu0 0.0
        %2947 = vmatprep.subr.mxu0 0.0
        %2948 = vmatpush2.msra.mxu0 0.0
        %2949 = vmatprep.subr.mxu0 0.0
        %2950 = vmatpush2.msra.mxu0 0.0
        %2951 = vmatprep.subr.mxu0 0.0
        %2952 = vmatpush2.msra.mxu0 0.0
        %2953 = vmatprep.subr.mxu0 0.0
        %2954 = vmatpush2.msra.mxu0 0.0
        %2955 = vmatprep.subr.mxu0 0.0
        %2956 = vmatpush2.msra.mxu0 0.0
        %2957 = vmatprep.mubr.f32.mxu0 0.0
        %2958 = vmatmul.mubr.f32.gmra.mxu0 %v2870
        %v2959 = vpop.f32.mrf.mxu0
        %v2960 = vadd.f32 0.0, %v2959
        %v2961 = vpop.f32.mrf.mxu0
        %2962 = vmatprep.mubr.f32.mxu0 0.0
        %2963 = vmatmul.mubr.f32.gmra.mxu0 %v2873
        %v2964 = vpop.f32.mrf.mxu0
        %v2965 = vadd.f32 0.0, %v2964
        %v2966 = vpop.f32.mrf.mxu0
        %2967 = vmatprep.mubr.f32.mxu0 0.0
        %2968 = vmatmul.mubr.f32.gmra.mxu0 %v2876
        %v2969 = vpop.f32.mrf.mxu0
        %v2970 = vadd.f32 0.0, %v2969
        %v2971 = vpop.f32.mrf.mxu0
        %2972 = vmatprep.mubr.f32.mxu0 0.0
        %2973 = vmatmul.mubr.f32.gmra.mxu0 %v2879
        %v2974 = vpop.f32.mrf.mxu0
        %v2975 = vadd.f32 0.0, %v2974
        %v2976 = vpop.f32.mrf.mxu0
        %2977 = vmatprep.mubr.f32.mxu0 0.0
        %2978 = vmatmul.mubr.f32.gmra.mxu0 %v2882
        %v2979 = vpop.f32.mrf.mxu0
        %v2980 = vadd.f32 0.0, %v2979
        %v2981 = vpop.f32.mrf.mxu0
        %2982 = vmatprep.mubr.f32.mxu0 0.0
        %2983 = vmatmul.mubr.f32.gmra.mxu0 %v2885
        %v2984 = vpop.f32.mrf.mxu0
        %v2985 = vadd.f32 0.0, %v2984
        %v2986 = vpop.f32.mrf.mxu0
        %2987 = vmatprep.mubr.f32.mxu0 0.0
        %2988 = vmatmul.mubr.f32.gmra.mxu0 %v2888
        %v2989 = vpop.f32.mrf.mxu0
        %v2990 = vadd.f32 0.0, %v2989
        %v2991 = vpop.f32.mrf.mxu0
        %2992 = vmatprep.mubr.f32.mxu0 0.0
        %2993 = vmatmul.mubr.f32.gmra.mxu0 %v2891
        %v2994 = vpop.f32.mrf.mxu0
        %v2995 = vadd.f32 0.0, %v2994
        %v2996 = vpop.f32.mrf.mxu0
        %2997 = vdwg.mxu0
        %s2998 = scalar_lea.vmem %s162, 64 [#allocation2]
        %2999 = vst [vmem:[%s2998] sm:$0xff] %v2960
        %3000 = vst [vmem:[%s2998 + $0x8] sm:$0xff] %v2965
        %3001 = vst [vmem:[%s2998 + $0x10] sm:$0xff] %v2970
        %3002 = vst [vmem:[%s2998 + $0x18] sm:$0xff] %v2975
        %3003 = vst [vmem:[%s2998 + $0x20] sm:$0xff] %v2980
        %3004 = vst [vmem:[%s2998 + $0x28] sm:$0xff] %v2985
        %3005 = vst [vmem:[%s2998 + $0x30] sm:$0xff] %v2990
        %3006 = vst [vmem:[%s2998 + $0x38] sm:$0xff] %v2995
        %v3007 = vld [vmem:[%s337] sm:$0xff]
        %v3008 = vld [vmem:[%s337 + $0x10] sm:$0xff]
        %v3009 = vld [vmem:[%s337 + $0x20] sm:$0xff]
        %v3010 = vld [vmem:[%s337 + $0x30] sm:$0xff]
        %v3011 = vld [vmem:[%s337 + $0x40] sm:$0xff]
        %v3012 = vld [vmem:[%s337 + $0x50] sm:$0xff]
        %v3013 = vld [vmem:[%s337 + $0x60] sm:$0xff]
        %v3014 = vld [vmem:[%s337 + $0x70] sm:$0xff]
        %v3015 = vld [vmem:[%s337 + $0x1] sm:$0xff]
        %v3016 = vld [vmem:[%s337 + $0x11] sm:$0xff]
        %v3017 = vld [vmem:[%s337 + $0x21] sm:$0xff]
        %v3018 = vld [vmem:[%s337 + $0x31] sm:$0xff]
        %v3019 = vld [vmem:[%s337 + $0x41] sm:$0xff]
        %v3020 = vld [vmem:[%s337 + $0x51] sm:$0xff]
        %v3021 = vld [vmem:[%s337 + $0x61] sm:$0xff]
        %v3022 = vld [vmem:[%s337 + $0x71] sm:$0xff]
        %v3023 = vld [vmem:[%s337 + $0x2] sm:$0xff]
        %v3024 = vld [vmem:[%s337 + $0x12] sm:$0xff]
        %v3025 = vld [vmem:[%s337 + $0x22] sm:$0xff]
        %v3026 = vld [vmem:[%s337 + $0x32] sm:$0xff]
        %v3027 = vld [vmem:[%s337 + $0x42] sm:$0xff]
        %v3028 = vld [vmem:[%s337 + $0x52] sm:$0xff]
        %v3029 = vld [vmem:[%s337 + $0x62] sm:$0xff]
        %v3030 = vld [vmem:[%s337 + $0x72] sm:$0xff]
        %v3031 = vld [vmem:[%s362] sm:$0xff]
        %v3032 = vld [vmem:[%s362 + $0x10] sm:$0xff]
        %v3033 = vld [vmem:[%s362 + $0x20] sm:$0xff]
        %v3034 = vld [vmem:[%s362 + $0x30] sm:$0xff]
        %v3035 = vld [vmem:[%s362 + $0x40] sm:$0xff]
        %v3036 = vld [vmem:[%s362 + $0x50] sm:$0xff]
        %v3037 = vld [vmem:[%s362 + $0x60] sm:$0xff]
        %v3038 = vld [vmem:[%s362 + $0x70] sm:$0xff]
        %v3039 = vld [vmem:[%s362 + $0x1] sm:$0xff]
        %v3040 = vld [vmem:[%s362 + $0x11] sm:$0xff]
        %v3041 = vld [vmem:[%s362 + $0x21] sm:$0xff]
        %v3042 = vld [vmem:[%s362 + $0x31] sm:$0xff]
        %v3043 = vld [vmem:[%s362 + $0x41] sm:$0xff]
        %v3044 = vld [vmem:[%s362 + $0x51] sm:$0xff]
        %v3045 = vld [vmem:[%s362 + $0x61] sm:$0xff]
        %v3046 = vld [vmem:[%s362 + $0x71] sm:$0xff]
        %v3047 = vld [vmem:[%s362 + $0x2] sm:$0xff]
        %v3048 = vld [vmem:[%s362 + $0x12] sm:$0xff]
        %v3049 = vld [vmem:[%s362 + $0x22] sm:$0xff]
        %v3050 = vld [vmem:[%s362 + $0x32] sm:$0xff]
        %v3051 = vld [vmem:[%s362 + $0x42] sm:$0xff]
        %v3052 = vld [vmem:[%s362 + $0x52] sm:$0xff]
        %v3053 = vld [vmem:[%s362 + $0x62] sm:$0xff]
        %v3054 = vld [vmem:[%s362 + $0x72] sm:$0xff]
        %v3055 = vld [vmem:[%s387] sm:$0xff]
        %v3056 = vld [vmem:[%s387 + $0x10] sm:$0xff]
        %v3057 = vld [vmem:[%s387 + $0x20] sm:$0xff]
        %v3058 = vld [vmem:[%s387 + $0x30] sm:$0xff]
        %v3059 = vld [vmem:[%s387 + $0x40] sm:$0xff]
        %v3060 = vld [vmem:[%s387 + $0x50] sm:$0xff]
        %v3061 = vld [vmem:[%s387 + $0x60] sm:$0xff]
        %v3062 = vld [vmem:[%s387 + $0x70] sm:$0xff]
        %v3063 = vld [vmem:[%s387 + $0x1] sm:$0xff]
        %v3064 = vld [vmem:[%s387 + $0x11] sm:$0xff]
        %v3065 = vld [vmem:[%s387 + $0x21] sm:$0xff]
        %v3066 = vld [vmem:[%s387 + $0x31] sm:$0xff]
        %v3067 = vld [vmem:[%s387 + $0x41] sm:$0xff]
        %v3068 = vld [vmem:[%s387 + $0x51] sm:$0xff]
        %v3069 = vld [vmem:[%s387 + $0x61] sm:$0xff]
        %v3070 = vld [vmem:[%s387 + $0x71] sm:$0xff]
        %v3071 = vld [vmem:[%s387 + $0x2] sm:$0xff]
        %v3072 = vld [vmem:[%s387 + $0x12] sm:$0xff]
        %v3073 = vld [vmem:[%s387 + $0x22] sm:$0xff]
        %v3074 = vld [vmem:[%s387 + $0x32] sm:$0xff]
        %v3075 = vld [vmem:[%s387 + $0x42] sm:$0xff]
        %v3076 = vld [vmem:[%s387 + $0x52] sm:$0xff]
        %v3077 = vld [vmem:[%s387 + $0x62] sm:$0xff]
        %v3078 = vld [vmem:[%s387 + $0x72] sm:$0xff]
        %v3079 = vld [vmem:[%s1754] sm:$0xff]
        %v3080 = vld [vmem:[%s1754 + $0x10] sm:$0xff]
        %v3081 = vld [vmem:[%s1754 + $0x20] sm:$0xff]
        %v3082 = vld [vmem:[%s1754 + $0x30] sm:$0xff]
        %v3083 = vld [vmem:[%s1754 + $0x40] sm:$0xff]
        %v3084 = vld [vmem:[%s1754 + $0x50] sm:$0xff]
        %v3085 = vld [vmem:[%s1754 + $0x60] sm:$0xff]
        %v3086 = vld [vmem:[%s1754 + $0x70] sm:$0xff]
        %v3087 = vld [vmem:[%s1754 + $0x1] sm:$0xff]
        %v3088 = vld [vmem:[%s1754 + $0x11] sm:$0xff]
        %v3089 = vld [vmem:[%s1754 + $0x21] sm:$0xff]
        %v3090 = vld [vmem:[%s1754 + $0x31] sm:$0xff]
        %v3091 = vld [vmem:[%s1754 + $0x41] sm:$0xff]
        %v3092 = vld [vmem:[%s1754 + $0x51] sm:$0xff]
        %v3093 = vld [vmem:[%s1754 + $0x61] sm:$0xff]
        %v3094 = vld [vmem:[%s1754 + $0x71] sm:$0xff]
        %v3095 = vld [vmem:[%s1754 + $0x2] sm:$0xff]
        %v3096 = vld [vmem:[%s1754 + $0x12] sm:$0xff]
        %v3097 = vld [vmem:[%s1754 + $0x22] sm:$0xff]
        %v3098 = vld [vmem:[%s1754 + $0x32] sm:$0xff]
        %v3099 = vld [vmem:[%s1754 + $0x42] sm:$0xff]
        %v3100 = vld [vmem:[%s1754 + $0x52] sm:$0xff]
        %v3101 = vld [vmem:[%s1754 + $0x62] sm:$0xff]
        %v3102 = vld [vmem:[%s1754 + $0x72] sm:$0xff]
        %v3103 = vld [vmem:[%s1779] sm:$0xff]
        %v3104 = vld [vmem:[%s1779 + $0x10] sm:$0xff]
        %v3105 = vld [vmem:[%s1779 + $0x20] sm:$0xff]
        %v3106 = vld [vmem:[%s1779 + $0x30] sm:$0xff]
        %v3107 = vld [vmem:[%s1779 + $0x40] sm:$0xff]
        %v3108 = vld [vmem:[%s1779 + $0x50] sm:$0xff]
        %v3109 = vld [vmem:[%s1779 + $0x60] sm:$0xff]
        %v3110 = vld [vmem:[%s1779 + $0x70] sm:$0xff]
        %v3111 = vld [vmem:[%s1779 + $0x1] sm:$0xff]
        %v3112 = vld [vmem:[%s1779 + $0x11] sm:$0xff]
        %v3113 = vld [vmem:[%s1779 + $0x21] sm:$0xff]
        %v3114 = vld [vmem:[%s1779 + $0x31] sm:$0xff]
        %v3115 = vld [vmem:[%s1779 + $0x41] sm:$0xff]
        %v3116 = vld [vmem:[%s1779 + $0x51] sm:$0xff]
        %v3117 = vld [vmem:[%s1779 + $0x61] sm:$0xff]
        %v3118 = vld [vmem:[%s1779 + $0x71] sm:$0xff]
        %v3119 = vld [vmem:[%s1779 + $0x2] sm:$0xff]
        %v3120 = vld [vmem:[%s1779 + $0x12] sm:$0xff]
        %v3121 = vld [vmem:[%s1779 + $0x22] sm:$0xff]
        %v3122 = vld [vmem:[%s1779 + $0x32] sm:$0xff]
        %v3123 = vld [vmem:[%s1779 + $0x42] sm:$0xff]
        %v3124 = vld [vmem:[%s1779 + $0x52] sm:$0xff]
        %v3125 = vld [vmem:[%s1779 + $0x62] sm:$0xff]
        %v3126 = vld [vmem:[%s1779 + $0x72] sm:$0xff]
        %v3127 = vld [vmem:[%s1804] sm:$0xff]
        %v3128 = vld [vmem:[%s1804 + $0x10] sm:$0xff]
        %v3129 = vld [vmem:[%s1804 + $0x20] sm:$0xff]
        %v3130 = vld [vmem:[%s1804 + $0x30] sm:$0xff]
        %v3131 = vld [vmem:[%s1804 + $0x40] sm:$0xff]
        %v3132 = vld [vmem:[%s1804 + $0x50] sm:$0xff]
        %v3133 = vld [vmem:[%s1804 + $0x60] sm:$0xff]
        %v3134 = vld [vmem:[%s1804 + $0x70] sm:$0xff]
        %v3135 = vld [vmem:[%s1804 + $0x1] sm:$0xff]
        %v3136 = vld [vmem:[%s1804 + $0x11] sm:$0xff]
        %v3137 = vld [vmem:[%s1804 + $0x21] sm:$0xff]
        %v3138 = vld [vmem:[%s1804 + $0x31] sm:$0xff]
        %v3139 = vld [vmem:[%s1804 + $0x41] sm:$0xff]
        %v3140 = vld [vmem:[%s1804 + $0x51] sm:$0xff]
        %v3141 = vld [vmem:[%s1804 + $0x61] sm:$0xff]
        %v3142 = vld [vmem:[%s1804 + $0x71] sm:$0xff]
        %v3143 = vld [vmem:[%s1804 + $0x2] sm:$0xff]
        %v3144 = vld [vmem:[%s1804 + $0x12] sm:$0xff]
        %v3145 = vld [vmem:[%s1804 + $0x22] sm:$0xff]
        %v3146 = vld [vmem:[%s1804 + $0x32] sm:$0xff]
        %v3147 = vld [vmem:[%s1804 + $0x42] sm:$0xff]
        %v3148 = vld [vmem:[%s1804 + $0x52] sm:$0xff]
        %v3149 = vld [vmem:[%s1804 + $0x62] sm:$0xff]
        %v3150 = vld [vmem:[%s1804 + $0x72] sm:$0xff]
        %s3151 = scalar_lea.vmem %s169, 640
        %v3152 = vld [vmem:[%s3151] sm:$0xff]
        %v3153 = vld [vmem:[%s3151 + $0x10] sm:$0xff]
        %v3154 = vld [vmem:[%s3151 + $0x20] sm:$0xff]
        %v3155 = vld [vmem:[%s3151 + $0x30] sm:$0xff]
        %v3156 = vld [vmem:[%s3151 + $0x40] sm:$0xff]
        %v3157 = vld [vmem:[%s3151 + $0x50] sm:$0xff]
        %v3158 = vld [vmem:[%s3151 + $0x60] sm:$0xff]
        %v3159 = vld [vmem:[%s3151 + $0x70] sm:$0xff]
        %v3160 = vld [vmem:[%s3151 + $0x1] sm:$0xff]
        %v3161 = vld [vmem:[%s3151 + $0x11] sm:$0xff]
        %v3162 = vld [vmem:[%s3151 + $0x21] sm:$0xff]
        %v3163 = vld [vmem:[%s3151 + $0x31] sm:$0xff]
        %v3164 = vld [vmem:[%s3151 + $0x41] sm:$0xff]
        %v3165 = vld [vmem:[%s3151 + $0x51] sm:$0xff]
        %v3166 = vld [vmem:[%s3151 + $0x61] sm:$0xff]
        %v3167 = vld [vmem:[%s3151 + $0x71] sm:$0xff]
        %v3168 = vld [vmem:[%s3151 + $0x2] sm:$0xff]
        %v3169 = vld [vmem:[%s3151 + $0x12] sm:$0xff]
        %v3170 = vld [vmem:[%s3151 + $0x22] sm:$0xff]
        %v3171 = vld [vmem:[%s3151 + $0x32] sm:$0xff]
        %v3172 = vld [vmem:[%s3151 + $0x42] sm:$0xff]
        %v3173 = vld [vmem:[%s3151 + $0x52] sm:$0xff]
        %v3174 = vld [vmem:[%s3151 + $0x62] sm:$0xff]
        %v3175 = vld [vmem:[%s3151 + $0x72] sm:$0xff]
        %s3176 = scalar_lea.vmem %s169, 656
        %v3177 = vld [vmem:[%s3176] sm:$0xff]
        %v3178 = vld [vmem:[%s3176 + $0x10] sm:$0xff]
        %v3179 = vld [vmem:[%s3176 + $0x20] sm:$0xff]
        %v3180 = vld [vmem:[%s3176 + $0x30] sm:$0xff]
        %v3181 = vld [vmem:[%s3176 + $0x40] sm:$0xff]
        %v3182 = vld [vmem:[%s3176 + $0x50] sm:$0xff]
        %v3183 = vld [vmem:[%s3176 + $0x60] sm:$0xff]
        %v3184 = vld [vmem:[%s3176 + $0x70] sm:$0xff]
        %v3185 = vld [vmem:[%s3176 + $0x1] sm:$0xff]
        %v3186 = vld [vmem:[%s3176 + $0x11] sm:$0xff]
        %v3187 = vld [vmem:[%s3176 + $0x21] sm:$0xff]
        %v3188 = vld [vmem:[%s3176 + $0x31] sm:$0xff]
        %v3189 = vld [vmem:[%s3176 + $0x41] sm:$0xff]
        %v3190 = vld [vmem:[%s3176 + $0x51] sm:$0xff]
        %v3191 = vld [vmem:[%s3176 + $0x61] sm:$0xff]
        %v3192 = vld [vmem:[%s3176 + $0x71] sm:$0xff]
        %v3193 = vld [vmem:[%s3176 + $0x2] sm:$0xff]
        %v3194 = vld [vmem:[%s3176 + $0x12] sm:$0xff]
        %v3195 = vld [vmem:[%s3176 + $0x22] sm:$0xff]
        %v3196 = vld [vmem:[%s3176 + $0x32] sm:$0xff]
        %v3197 = vld [vmem:[%s3176 + $0x42] sm:$0xff]
        %v3198 = vld [vmem:[%s3176 + $0x52] sm:$0xff]
        %v3199 = vld [vmem:[%s3176 + $0x62] sm:$0xff]
        %v3200 = vld [vmem:[%s3176 + $0x72] sm:$0xff]
        %s3201 = scalar_lea.vmem %s169, 672
        %v3202 = vld [vmem:[%s3201] sm:$0xff]
        %v3203 = vld [vmem:[%s3201 + $0x10] sm:$0xff]
        %v3204 = vld [vmem:[%s3201 + $0x20] sm:$0xff]
        %v3205 = vld [vmem:[%s3201 + $0x30] sm:$0xff]
        %v3206 = vld [vmem:[%s3201 + $0x40] sm:$0xff]
        %v3207 = vld [vmem:[%s3201 + $0x50] sm:$0xff]
        %v3208 = vld [vmem:[%s3201 + $0x60] sm:$0xff]
        %v3209 = vld [vmem:[%s3201 + $0x70] sm:$0xff]
        %v3210 = vld [vmem:[%s3201 + $0x1] sm:$0xff]
        %v3211 = vld [vmem:[%s3201 + $0x11] sm:$0xff]
        %v3212 = vld [vmem:[%s3201 + $0x21] sm:$0xff]
        %v3213 = vld [vmem:[%s3201 + $0x31] sm:$0xff]
        %v3214 = vld [vmem:[%s3201 + $0x41] sm:$0xff]
        %v3215 = vld [vmem:[%s3201 + $0x51] sm:$0xff]
        %v3216 = vld [vmem:[%s3201 + $0x61] sm:$0xff]
        %v3217 = vld [vmem:[%s3201 + $0x71] sm:$0xff]
        %v3218 = vld [vmem:[%s3201 + $0x2] sm:$0xff]
        %v3219 = vld [vmem:[%s3201 + $0x12] sm:$0xff]
        %v3220 = vld [vmem:[%s3201 + $0x22] sm:$0xff]
        %v3221 = vld [vmem:[%s3201 + $0x32] sm:$0xff]
        %v3222 = vld [vmem:[%s3201 + $0x42] sm:$0xff]
        %v3223 = vld [vmem:[%s3201 + $0x52] sm:$0xff]
        %v3224 = vld [vmem:[%s3201 + $0x62] sm:$0xff]
        %v3225 = vld [vmem:[%s3201 + $0x72] sm:$0xff]
        %3234 = vrot.lane.b32.xlu0 %v3015, 4
        %v3235 = vpop.permute.xlu0 %3234
        %3236 = vrot.lane.b32.xlu0 %v3016, 4
        %v3237 = vpop.permute.xlu0 %3236
        %3238 = vrot.lane.b32.xlu0 %v3017, 4
        %v3239 = vpop.permute.xlu0 %3238
        %3240 = vrot.lane.b32.xlu0 %v3018, 4
        %v3241 = vpop.permute.xlu0 %3240
        %3242 = vrot.lane.b32.xlu0 %v3019, 4
        %v3243 = vpop.permute.xlu0 %3242
        %3244 = vrot.lane.b32.xlu0 %v3020, 4
        %v3245 = vpop.permute.xlu0 %3244
        %3246 = vrot.lane.b32.xlu0 %v3021, 4
        %v3247 = vpop.permute.xlu0 %3246
        %3248 = vrot.lane.b32.xlu0 %v3022, 4
        %v3249 = vpop.permute.xlu0 %3248
        %3266 = vrot.lane.b32.xlu0 %v3023, 8
        %v3267 = vpop.permute.xlu0 %3266
        %3268 = vrot.lane.b32.xlu0 %v3024, 8
        %v3269 = vpop.permute.xlu0 %3268
        %3270 = vrot.lane.b32.xlu0 %v3025, 8
        %v3271 = vpop.permute.xlu0 %3270
        %3272 = vrot.lane.b32.xlu0 %v3026, 8
        %v3273 = vpop.permute.xlu0 %3272
        %3274 = vrot.lane.b32.xlu0 %v3027, 8
        %v3275 = vpop.permute.xlu0 %3274
        %3276 = vrot.lane.b32.xlu0 %v3028, 8
        %v3277 = vpop.permute.xlu0 %3276
        %3278 = vrot.lane.b32.xlu0 %v3029, 8
        %v3279 = vpop.permute.xlu0 %3278
        %3280 = vrot.lane.b32.xlu0 %v3030, 8
        %v3281 = vpop.permute.xlu0 %3280
        %3298 = vrot.lane.b32.xlu0 %v3031, 12
        %v3299 = vpop.permute.xlu0 %3298
        %3300 = vrot.lane.b32.xlu0 %v3032, 12
        %v3301 = vpop.permute.xlu0 %3300
        %3302 = vrot.lane.b32.xlu0 %v3033, 12
        %v3303 = vpop.permute.xlu0 %3302
        %3304 = vrot.lane.b32.xlu0 %v3034, 12
        %v3305 = vpop.permute.xlu0 %3304
        %3306 = vrot.lane.b32.xlu0 %v3035, 12
        %v3307 = vpop.permute.xlu0 %3306
        %3308 = vrot.lane.b32.xlu0 %v3036, 12
        %v3309 = vpop.permute.xlu0 %3308
        %3310 = vrot.lane.b32.xlu0 %v3037, 12
        %v3311 = vpop.permute.xlu0 %3310
        %3312 = vrot.lane.b32.xlu0 %v3038, 12
        %v3313 = vpop.permute.xlu0 %3312
        %3330 = vrot.lane.b32.xlu0 %v3039, 16
        %v3331 = vpop.permute.xlu0 %3330
        %3332 = vrot.lane.b32.xlu0 %v3040, 16
        %v3333 = vpop.permute.xlu0 %3332
        %3334 = vrot.lane.b32.xlu0 %v3041, 16
        %v3335 = vpop.permute.xlu0 %3334
        %3336 = vrot.lane.b32.xlu0 %v3042, 16
        %v3337 = vpop.permute.xlu0 %3336
        %3338 = vrot.lane.b32.xlu0 %v3043, 16
        %v3339 = vpop.permute.xlu0 %3338
        %3340 = vrot.lane.b32.xlu0 %v3044, 16
        %v3341 = vpop.permute.xlu0 %3340
        %3342 = vrot.lane.b32.xlu0 %v3045, 16
        %v3343 = vpop.permute.xlu0 %3342
        %3344 = vrot.lane.b32.xlu0 %v3046, 16
        %v3345 = vpop.permute.xlu0 %3344
        %3362 = vrot.lane.b32.xlu0 %v3047, 20
        %v3363 = vpop.permute.xlu0 %3362
        %3364 = vrot.lane.b32.xlu0 %v3048, 20
        %v3365 = vpop.permute.xlu0 %3364
        %3366 = vrot.lane.b32.xlu0 %v3049, 20
        %v3367 = vpop.permute.xlu0 %3366
        %3368 = vrot.lane.b32.xlu0 %v3050, 20
        %v3369 = vpop.permute.xlu0 %3368
        %3370 = vrot.lane.b32.xlu0 %v3051, 20
        %v3371 = vpop.permute.xlu0 %3370
        %3372 = vrot.lane.b32.xlu0 %v3052, 20
        %v3373 = vpop.permute.xlu0 %3372
        %3374 = vrot.lane.b32.xlu0 %v3053, 20
        %v3375 = vpop.permute.xlu0 %3374
        %3376 = vrot.lane.b32.xlu0 %v3054, 20
        %v3377 = vpop.permute.xlu0 %3376
        %3394 = vrot.lane.b32.xlu0 %v3055, 24
        %v3395 = vpop.permute.xlu0 %3394
        %3396 = vrot.lane.b32.xlu0 %v3056, 24
        %v3397 = vpop.permute.xlu0 %3396
        %3398 = vrot.lane.b32.xlu0 %v3057, 24
        %v3399 = vpop.permute.xlu0 %3398
        %3400 = vrot.lane.b32.xlu0 %v3058, 24
        %v3401 = vpop.permute.xlu0 %3400
        %3402 = vrot.lane.b32.xlu0 %v3059, 24
        %v3403 = vpop.permute.xlu0 %3402
        %3404 = vrot.lane.b32.xlu0 %v3060, 24
        %v3405 = vpop.permute.xlu0 %3404
        %3406 = vrot.lane.b32.xlu0 %v3061, 24
        %v3407 = vpop.permute.xlu0 %3406
        %3408 = vrot.lane.b32.xlu0 %v3062, 24
        %v3409 = vpop.permute.xlu0 %3408
        %3426 = vrot.lane.b32.xlu0 %v3063, 28
        %v3427 = vpop.permute.xlu0 %3426
        %3428 = vrot.lane.b32.xlu0 %v3064, 28
        %v3429 = vpop.permute.xlu0 %3428
        %3430 = vrot.lane.b32.xlu0 %v3065, 28
        %v3431 = vpop.permute.xlu0 %3430
        %3432 = vrot.lane.b32.xlu0 %v3066, 28
        %v3433 = vpop.permute.xlu0 %3432
        %3434 = vrot.lane.b32.xlu0 %v3067, 28
        %v3435 = vpop.permute.xlu0 %3434
        %3436 = vrot.lane.b32.xlu0 %v3068, 28
        %v3437 = vpop.permute.xlu0 %3436
        %3438 = vrot.lane.b32.xlu0 %v3069, 28
        %v3439 = vpop.permute.xlu0 %3438
        %3440 = vrot.lane.b32.xlu0 %v3070, 28
        %v3441 = vpop.permute.xlu0 %3440
        %3458 = vrot.lane.b32.xlu0 %v3071, 32
        %v3459 = vpop.permute.xlu0 %3458
        %3460 = vrot.lane.b32.xlu0 %v3072, 32
        %v3461 = vpop.permute.xlu0 %3460
        %3462 = vrot.lane.b32.xlu0 %v3073, 32
        %v3463 = vpop.permute.xlu0 %3462
        %3464 = vrot.lane.b32.xlu0 %v3074, 32
        %v3465 = vpop.permute.xlu0 %3464
        %3466 = vrot.lane.b32.xlu0 %v3075, 32
        %v3467 = vpop.permute.xlu0 %3466
        %3468 = vrot.lane.b32.xlu0 %v3076, 32
        %v3469 = vpop.permute.xlu0 %3468
        %3470 = vrot.lane.b32.xlu0 %v3077, 32
        %v3471 = vpop.permute.xlu0 %3470
        %3472 = vrot.lane.b32.xlu0 %v3078, 32
        %v3473 = vpop.permute.xlu0 %3472
        %3490 = vrot.lane.b32.xlu0 %v3079, 36
        %v3491 = vpop.permute.xlu0 %3490
        %3492 = vrot.lane.b32.xlu0 %v3080, 36
        %v3493 = vpop.permute.xlu0 %3492
        %3494 = vrot.lane.b32.xlu0 %v3081, 36
        %v3495 = vpop.permute.xlu0 %3494
        %3496 = vrot.lane.b32.xlu0 %v3082, 36
        %v3497 = vpop.permute.xlu0 %3496
        %3498 = vrot.lane.b32.xlu0 %v3083, 36
        %v3499 = vpop.permute.xlu0 %3498
        %3500 = vrot.lane.b32.xlu0 %v3084, 36
        %v3501 = vpop.permute.xlu0 %3500
        %3502 = vrot.lane.b32.xlu0 %v3085, 36
        %v3503 = vpop.permute.xlu0 %3502
        %3504 = vrot.lane.b32.xlu0 %v3086, 36
        %v3505 = vpop.permute.xlu0 %3504
        %3522 = vrot.lane.b32.xlu0 %v3087, 40
        %v3523 = vpop.permute.xlu0 %3522
        %3524 = vrot.lane.b32.xlu0 %v3088, 40
        %v3525 = vpop.permute.xlu0 %3524
        %3526 = vrot.lane.b32.xlu0 %v3089, 40
        %v3527 = vpop.permute.xlu0 %3526
        %3528 = vrot.lane.b32.xlu0 %v3090, 40
        %v3529 = vpop.permute.xlu0 %3528
        %3530 = vrot.lane.b32.xlu0 %v3091, 40
        %v3531 = vpop.permute.xlu0 %3530
        %3532 = vrot.lane.b32.xlu0 %v3092, 40
        %v3533 = vpop.permute.xlu0 %3532
        %3534 = vrot.lane.b32.xlu0 %v3093, 40
        %v3535 = vpop.permute.xlu0 %3534
        %3536 = vrot.lane.b32.xlu0 %v3094, 40
        %v3537 = vpop.permute.xlu0 %3536
        %3554 = vrot.lane.b32.xlu0 %v3095, 44
        %v3555 = vpop.permute.xlu0 %3554
        %3556 = vrot.lane.b32.xlu0 %v3096, 44
        %v3557 = vpop.permute.xlu0 %3556
        %3558 = vrot.lane.b32.xlu0 %v3097, 44
        %v3559 = vpop.permute.xlu0 %3558
        %3560 = vrot.lane.b32.xlu0 %v3098, 44
        %v3561 = vpop.permute.xlu0 %3560
        %3562 = vrot.lane.b32.xlu0 %v3099, 44
        %v3563 = vpop.permute.xlu0 %3562
        %3564 = vrot.lane.b32.xlu0 %v3100, 44
        %v3565 = vpop.permute.xlu0 %3564
        %3566 = vrot.lane.b32.xlu0 %v3101, 44
        %v3567 = vpop.permute.xlu0 %3566
        %3568 = vrot.lane.b32.xlu0 %v3102, 44
        %v3569 = vpop.permute.xlu0 %3568
        %3586 = vrot.lane.b32.xlu0 %v3103, 48
        %v3587 = vpop.permute.xlu0 %3586
        %3588 = vrot.lane.b32.xlu0 %v3104, 48
        %v3589 = vpop.permute.xlu0 %3588
        %3590 = vrot.lane.b32.xlu0 %v3105, 48
        %v3591 = vpop.permute.xlu0 %3590
        %3592 = vrot.lane.b32.xlu0 %v3106, 48
        %v3593 = vpop.permute.xlu0 %3592
        %3594 = vrot.lane.b32.xlu0 %v3107, 48
        %v3595 = vpop.permute.xlu0 %3594
        %3596 = vrot.lane.b32.xlu0 %v3108, 48
        %v3597 = vpop.permute.xlu0 %3596
        %3598 = vrot.lane.b32.xlu0 %v3109, 48
        %v3599 = vpop.permute.xlu0 %3598
        %3600 = vrot.lane.b32.xlu0 %v3110, 48
        %v3601 = vpop.permute.xlu0 %3600
        %3618 = vrot.lane.b32.xlu0 %v3111, 52
        %v3619 = vpop.permute.xlu0 %3618
        %3620 = vrot.lane.b32.xlu0 %v3112, 52
        %v3621 = vpop.permute.xlu0 %3620
        %3622 = vrot.lane.b32.xlu0 %v3113, 52
        %v3623 = vpop.permute.xlu0 %3622
        %3624 = vrot.lane.b32.xlu0 %v3114, 52
        %v3625 = vpop.permute.xlu0 %3624
        %3626 = vrot.lane.b32.xlu0 %v3115, 52
        %v3627 = vpop.permute.xlu0 %3626
        %3628 = vrot.lane.b32.xlu0 %v3116, 52
        %v3629 = vpop.permute.xlu0 %3628
        %3630 = vrot.lane.b32.xlu0 %v3117, 52
        %v3631 = vpop.permute.xlu0 %3630
        %3632 = vrot.lane.b32.xlu0 %v3118, 52
        %v3633 = vpop.permute.xlu0 %3632
        %3650 = vrot.lane.b32.xlu0 %v3119, 56
        %v3651 = vpop.permute.xlu0 %3650
        %3652 = vrot.lane.b32.xlu0 %v3120, 56
        %v3653 = vpop.permute.xlu0 %3652
        %3654 = vrot.lane.b32.xlu0 %v3121, 56
        %v3655 = vpop.permute.xlu0 %3654
        %3656 = vrot.lane.b32.xlu0 %v3122, 56
        %v3657 = vpop.permute.xlu0 %3656
        %3658 = vrot.lane.b32.xlu0 %v3123, 56
        %v3659 = vpop.permute.xlu0 %3658
        %3660 = vrot.lane.b32.xlu0 %v3124, 56
        %v3661 = vpop.permute.xlu0 %3660
        %3662 = vrot.lane.b32.xlu0 %v3125, 56
        %v3663 = vpop.permute.xlu0 %3662
        %3664 = vrot.lane.b32.xlu0 %v3126, 56
        %v3665 = vpop.permute.xlu0 %3664
        %3682 = vrot.lane.b32.xlu0 %v3127, 60
        %v3683 = vpop.permute.xlu0 %3682
        %3684 = vrot.lane.b32.xlu0 %v3128, 60
        %v3685 = vpop.permute.xlu0 %3684
        %3686 = vrot.lane.b32.xlu0 %v3129, 60
        %v3687 = vpop.permute.xlu0 %3686
        %3688 = vrot.lane.b32.xlu0 %v3130, 60
        %v3689 = vpop.permute.xlu0 %3688
        %3690 = vrot.lane.b32.xlu0 %v3131, 60
        %v3691 = vpop.permute.xlu0 %3690
        %3692 = vrot.lane.b32.xlu0 %v3132, 60
        %v3693 = vpop.permute.xlu0 %3692
        %3694 = vrot.lane.b32.xlu0 %v3133, 60
        %v3695 = vpop.permute.xlu0 %3694
        %3696 = vrot.lane.b32.xlu0 %v3134, 60
        %v3697 = vpop.permute.xlu0 %3696
        %v3706 = vsel %vm892, %v3007, %v3235
        %v3707 = vsel %vm892, %v3008, %v3237
        %v3708 = vsel %vm892, %v3009, %v3239
        %v3709 = vsel %vm892, %v3010, %v3241
        %v3710 = vsel %vm892, %v3011, %v3243
        %v3711 = vsel %vm892, %v3012, %v3245
        %v3712 = vsel %vm892, %v3013, %v3247
        %v3713 = vsel %vm892, %v3014, %v3249
        %v3714 = vsel %vm901, %v3706, %v3267
        %v3715 = vsel %vm901, %v3707, %v3269
        %v3716 = vsel %vm901, %v3708, %v3271
        %v3717 = vsel %vm901, %v3709, %v3273
        %v3718 = vsel %vm901, %v3710, %v3275
        %v3719 = vsel %vm901, %v3711, %v3277
        %v3720 = vsel %vm901, %v3712, %v3279
        %v3721 = vsel %vm901, %v3713, %v3281
        %v3722 = vsel %vm910, %v3714, %v3299
        %v3723 = vsel %vm910, %v3715, %v3301
        %v3724 = vsel %vm910, %v3716, %v3303
        %v3725 = vsel %vm910, %v3717, %v3305
        %v3726 = vsel %vm910, %v3718, %v3307
        %v3727 = vsel %vm910, %v3719, %v3309
        %v3728 = vsel %vm910, %v3720, %v3311
        %v3729 = vsel %vm910, %v3721, %v3313
        %v3730 = vsel %vm919, %v3722, %v3331
        %v3731 = vsel %vm919, %v3723, %v3333
        %v3732 = vsel %vm919, %v3724, %v3335
        %v3733 = vsel %vm919, %v3725, %v3337
        %v3734 = vsel %vm919, %v3726, %v3339
        %v3735 = vsel %vm919, %v3727, %v3341
        %v3736 = vsel %vm919, %v3728, %v3343
        %v3737 = vsel %vm919, %v3729, %v3345
        %v3738 = vsel %vm928, %v3730, %v3363
        %v3739 = vsel %vm928, %v3731, %v3365
        %v3740 = vsel %vm928, %v3732, %v3367
        %v3741 = vsel %vm928, %v3733, %v3369
        %v3742 = vsel %vm928, %v3734, %v3371
        %v3743 = vsel %vm928, %v3735, %v3373
        %v3744 = vsel %vm928, %v3736, %v3375
        %v3745 = vsel %vm928, %v3737, %v3377
        %v3746 = vsel %vm937, %v3738, %v3395
        %v3747 = vsel %vm937, %v3739, %v3397
        %v3748 = vsel %vm937, %v3740, %v3399
        %v3749 = vsel %vm937, %v3741, %v3401
        %v3750 = vsel %vm937, %v3742, %v3403
        %v3751 = vsel %vm937, %v3743, %v3405
        %v3752 = vsel %vm937, %v3744, %v3407
        %v3753 = vsel %vm937, %v3745, %v3409
        %v3754 = vsel %vm946, %v3746, %v3427
        %v3755 = vsel %vm946, %v3747, %v3429
        %v3756 = vsel %vm946, %v3748, %v3431
        %v3757 = vsel %vm946, %v3749, %v3433
        %v3758 = vsel %vm946, %v3750, %v3435
        %v3759 = vsel %vm946, %v3751, %v3437
        %v3760 = vsel %vm946, %v3752, %v3439
        %v3761 = vsel %vm946, %v3753, %v3441
        %v3762 = vsel %vm955, %v3754, %v3459
        %v3763 = vsel %vm955, %v3755, %v3461
        %v3764 = vsel %vm955, %v3756, %v3463
        %v3765 = vsel %vm955, %v3757, %v3465
        %v3766 = vsel %vm955, %v3758, %v3467
        %v3767 = vsel %vm955, %v3759, %v3469
        %v3768 = vsel %vm955, %v3760, %v3471
        %v3769 = vsel %vm955, %v3761, %v3473
        %v3770 = vsel %vm964, %v3762, %v3491
        %v3771 = vsel %vm964, %v3763, %v3493
        %v3772 = vsel %vm964, %v3764, %v3495
        %v3773 = vsel %vm964, %v3765, %v3497
        %v3774 = vsel %vm964, %v3766, %v3499
        %v3775 = vsel %vm964, %v3767, %v3501
        %v3776 = vsel %vm964, %v3768, %v3503
        %v3777 = vsel %vm964, %v3769, %v3505
        %v3778 = vsel %vm973, %v3770, %v3523
        %v3779 = vsel %vm973, %v3771, %v3525
        %v3780 = vsel %vm973, %v3772, %v3527
        %v3781 = vsel %vm973, %v3773, %v3529
        %v3782 = vsel %vm973, %v3774, %v3531
        %v3783 = vsel %vm973, %v3775, %v3533
        %v3784 = vsel %vm973, %v3776, %v3535
        %v3785 = vsel %vm973, %v3777, %v3537
        %v3786 = vsel %vm982, %v3778, %v3555
        %v3787 = vsel %vm982, %v3779, %v3557
        %v3788 = vsel %vm982, %v3780, %v3559
        %v3789 = vsel %vm982, %v3781, %v3561
        %v3790 = vsel %vm982, %v3782, %v3563
        %v3791 = vsel %vm982, %v3783, %v3565
        %v3792 = vsel %vm982, %v3784, %v3567
        %v3793 = vsel %vm982, %v3785, %v3569
        %v3794 = vsel %vm991, %v3786, %v3587
        %v3795 = vsel %vm991, %v3787, %v3589
        %v3796 = vsel %vm991, %v3788, %v3591
        %v3797 = vsel %vm991, %v3789, %v3593
        %v3798 = vsel %vm991, %v3790, %v3595
        %v3799 = vsel %vm991, %v3791, %v3597
        %v3800 = vsel %vm991, %v3792, %v3599
        %v3801 = vsel %vm991, %v3793, %v3601
        %v3802 = vsel %vm1000, %v3794, %v3619
        %v3803 = vsel %vm1000, %v3795, %v3621
        %v3804 = vsel %vm1000, %v3796, %v3623
        %v3805 = vsel %vm1000, %v3797, %v3625
        %v3806 = vsel %vm1000, %v3798, %v3627
        %v3807 = vsel %vm1000, %v3799, %v3629
        %v3808 = vsel %vm1000, %v3800, %v3631
        %v3809 = vsel %vm1000, %v3801, %v3633
        %v3810 = vsel %vm1009, %v3802, %v3651
        %v3811 = vsel %vm1009, %v3803, %v3653
        %v3812 = vsel %vm1009, %v3804, %v3655
        %v3813 = vsel %vm1009, %v3805, %v3657
        %v3814 = vsel %vm1009, %v3806, %v3659
        %v3815 = vsel %vm1009, %v3807, %v3661
        %v3816 = vsel %vm1009, %v3808, %v3663
        %v3817 = vsel %vm1009, %v3809, %v3665
        %v3818 = vsel %vm1018, %v3810, %v3683
        %v3819 = vsel %vm1018, %v3811, %v3685
        %v3820 = vsel %vm1018, %v3812, %v3687
        %v3821 = vsel %vm1018, %v3813, %v3689
        %v3822 = vsel %vm1018, %v3814, %v3691
        %v3823 = vsel %vm1018, %v3815, %v3693
        %v3824 = vsel %vm1018, %v3816, %v3695
        %v3825 = vsel %vm1018, %v3817, %v3697
        %3834 = vrot.lane.b32.xlu0 %v3143, 4
        %v3835 = vpop.permute.xlu0 %3834
        %3836 = vrot.lane.b32.xlu0 %v3144, 4
        %v3837 = vpop.permute.xlu0 %3836
        %3838 = vrot.lane.b32.xlu0 %v3145, 4
        %v3839 = vpop.permute.xlu0 %3838
        %3840 = vrot.lane.b32.xlu0 %v3146, 4
        %v3841 = vpop.permute.xlu0 %3840
        %3842 = vrot.lane.b32.xlu0 %v3147, 4
        %v3843 = vpop.permute.xlu0 %3842
        %3844 = vrot.lane.b32.xlu0 %v3148, 4
        %v3845 = vpop.permute.xlu0 %3844
        %3846 = vrot.lane.b32.xlu0 %v3149, 4
        %v3847 = vpop.permute.xlu0 %3846
        %3848 = vrot.lane.b32.xlu0 %v3150, 4
        %v3849 = vpop.permute.xlu0 %3848
        %3866 = vrot.lane.b32.xlu0 %v3152, 8
        %v3867 = vpop.permute.xlu0 %3866
        %3868 = vrot.lane.b32.xlu0 %v3153, 8
        %v3869 = vpop.permute.xlu0 %3868
        %3870 = vrot.lane.b32.xlu0 %v3154, 8
        %v3871 = vpop.permute.xlu0 %3870
        %3872 = vrot.lane.b32.xlu0 %v3155, 8
        %v3873 = vpop.permute.xlu0 %3872
        %3874 = vrot.lane.b32.xlu0 %v3156, 8
        %v3875 = vpop.permute.xlu0 %3874
        %3876 = vrot.lane.b32.xlu0 %v3157, 8
        %v3877 = vpop.permute.xlu0 %3876
        %3878 = vrot.lane.b32.xlu0 %v3158, 8
        %v3879 = vpop.permute.xlu0 %3878
        %3880 = vrot.lane.b32.xlu0 %v3159, 8
        %v3881 = vpop.permute.xlu0 %3880
        %3898 = vrot.lane.b32.xlu0 %v3160, 12
        %v3899 = vpop.permute.xlu0 %3898
        %3900 = vrot.lane.b32.xlu0 %v3161, 12
        %v3901 = vpop.permute.xlu0 %3900
        %3902 = vrot.lane.b32.xlu0 %v3162, 12
        %v3903 = vpop.permute.xlu0 %3902
        %3904 = vrot.lane.b32.xlu0 %v3163, 12
        %v3905 = vpop.permute.xlu0 %3904
        %3906 = vrot.lane.b32.xlu0 %v3164, 12
        %v3907 = vpop.permute.xlu0 %3906
        %3908 = vrot.lane.b32.xlu0 %v3165, 12
        %v3909 = vpop.permute.xlu0 %3908
        %3910 = vrot.lane.b32.xlu0 %v3166, 12
        %v3911 = vpop.permute.xlu0 %3910
        %3912 = vrot.lane.b32.xlu0 %v3167, 12
        %v3913 = vpop.permute.xlu0 %3912
        %3930 = vrot.lane.b32.xlu0 %v3168, 16
        %v3931 = vpop.permute.xlu0 %3930
        %3932 = vrot.lane.b32.xlu0 %v3169, 16
        %v3933 = vpop.permute.xlu0 %3932
        %3934 = vrot.lane.b32.xlu0 %v3170, 16
        %v3935 = vpop.permute.xlu0 %3934
        %3936 = vrot.lane.b32.xlu0 %v3171, 16
        %v3937 = vpop.permute.xlu0 %3936
        %3938 = vrot.lane.b32.xlu0 %v3172, 16
        %v3939 = vpop.permute.xlu0 %3938
        %3940 = vrot.lane.b32.xlu0 %v3173, 16
        %v3941 = vpop.permute.xlu0 %3940
        %3942 = vrot.lane.b32.xlu0 %v3174, 16
        %v3943 = vpop.permute.xlu0 %3942
        %3944 = vrot.lane.b32.xlu0 %v3175, 16
        %v3945 = vpop.permute.xlu0 %3944
        %3962 = vrot.lane.b32.xlu0 %v3177, 20
        %v3963 = vpop.permute.xlu0 %3962
        %3964 = vrot.lane.b32.xlu0 %v3178, 20
        %v3965 = vpop.permute.xlu0 %3964
        %3966 = vrot.lane.b32.xlu0 %v3179, 20
        %v3967 = vpop.permute.xlu0 %3966
        %3968 = vrot.lane.b32.xlu0 %v3180, 20
        %v3969 = vpop.permute.xlu0 %3968
        %3970 = vrot.lane.b32.xlu0 %v3181, 20
        %v3971 = vpop.permute.xlu0 %3970
        %3972 = vrot.lane.b32.xlu0 %v3182, 20
        %v3973 = vpop.permute.xlu0 %3972
        %3974 = vrot.lane.b32.xlu0 %v3183, 20
        %v3975 = vpop.permute.xlu0 %3974
        %3976 = vrot.lane.b32.xlu0 %v3184, 20
        %v3977 = vpop.permute.xlu0 %3976
        %3994 = vrot.lane.b32.xlu0 %v3185, 24
        %v3995 = vpop.permute.xlu0 %3994
        %3996 = vrot.lane.b32.xlu0 %v3186, 24
        %v3997 = vpop.permute.xlu0 %3996
        %3998 = vrot.lane.b32.xlu0 %v3187, 24
        %v3999 = vpop.permute.xlu0 %3998
        %4000 = vrot.lane.b32.xlu0 %v3188, 24
        %v4001 = vpop.permute.xlu0 %4000
        %4002 = vrot.lane.b32.xlu0 %v3189, 24
        %v4003 = vpop.permute.xlu0 %4002
        %4004 = vrot.lane.b32.xlu0 %v3190, 24
        %v4005 = vpop.permute.xlu0 %4004
        %4006 = vrot.lane.b32.xlu0 %v3191, 24
        %v4007 = vpop.permute.xlu0 %4006
        %4008 = vrot.lane.b32.xlu0 %v3192, 24
        %v4009 = vpop.permute.xlu0 %4008
        %4026 = vrot.lane.b32.xlu0 %v3193, 28
        %v4027 = vpop.permute.xlu0 %4026
        %4028 = vrot.lane.b32.xlu0 %v3194, 28
        %v4029 = vpop.permute.xlu0 %4028
        %4030 = vrot.lane.b32.xlu0 %v3195, 28
        %v4031 = vpop.permute.xlu0 %4030
        %4032 = vrot.lane.b32.xlu0 %v3196, 28
        %v4033 = vpop.permute.xlu0 %4032
        %4034 = vrot.lane.b32.xlu0 %v3197, 28
        %v4035 = vpop.permute.xlu0 %4034
        %4036 = vrot.lane.b32.xlu0 %v3198, 28
        %v4037 = vpop.permute.xlu0 %4036
        %4038 = vrot.lane.b32.xlu0 %v3199, 28
        %v4039 = vpop.permute.xlu0 %4038
        %4040 = vrot.lane.b32.xlu0 %v3200, 28
        %v4041 = vpop.permute.xlu0 %4040
        %4058 = vrot.lane.b32.xlu0 %v3202, 32
        %v4059 = vpop.permute.xlu0 %4058
        %4060 = vrot.lane.b32.xlu0 %v3203, 32
        %v4061 = vpop.permute.xlu0 %4060
        %4062 = vrot.lane.b32.xlu0 %v3204, 32
        %v4063 = vpop.permute.xlu0 %4062
        %4064 = vrot.lane.b32.xlu0 %v3205, 32
        %v4065 = vpop.permute.xlu0 %4064
        %4066 = vrot.lane.b32.xlu0 %v3206, 32
        %v4067 = vpop.permute.xlu0 %4066
        %4068 = vrot.lane.b32.xlu0 %v3207, 32
        %v4069 = vpop.permute.xlu0 %4068
        %4070 = vrot.lane.b32.xlu0 %v3208, 32
        %v4071 = vpop.permute.xlu0 %4070
        %4072 = vrot.lane.b32.xlu0 %v3209, 32
        %v4073 = vpop.permute.xlu0 %4072
        %4090 = vrot.lane.b32.xlu0 %v3210, 36
        %v4091 = vpop.permute.xlu0 %4090
        %4092 = vrot.lane.b32.xlu0 %v3211, 36
        %v4093 = vpop.permute.xlu0 %4092
        %4094 = vrot.lane.b32.xlu0 %v3212, 36
        %v4095 = vpop.permute.xlu0 %4094
        %4096 = vrot.lane.b32.xlu0 %v3213, 36
        %v4097 = vpop.permute.xlu0 %4096
        %4098 = vrot.lane.b32.xlu0 %v3214, 36
        %v4099 = vpop.permute.xlu0 %4098
        %4100 = vrot.lane.b32.xlu0 %v3215, 36
        %v4101 = vpop.permute.xlu0 %4100
        %4102 = vrot.lane.b32.xlu0 %v3216, 36
        %v4103 = vpop.permute.xlu0 %4102
        %4104 = vrot.lane.b32.xlu0 %v3217, 36
        %v4105 = vpop.permute.xlu0 %4104
        %4122 = vrot.lane.b32.xlu0 %v3218, 40
        %v4123 = vpop.permute.xlu0 %4122
        %4124 = vrot.lane.b32.xlu0 %v3219, 40
        %v4125 = vpop.permute.xlu0 %4124
        %4126 = vrot.lane.b32.xlu0 %v3220, 40
        %v4127 = vpop.permute.xlu0 %4126
        %4128 = vrot.lane.b32.xlu0 %v3221, 40
        %v4129 = vpop.permute.xlu0 %4128
        %4130 = vrot.lane.b32.xlu0 %v3222, 40
        %v4131 = vpop.permute.xlu0 %4130
        %4132 = vrot.lane.b32.xlu0 %v3223, 40
        %v4133 = vpop.permute.xlu0 %4132
        %4134 = vrot.lane.b32.xlu0 %v3224, 40
        %v4135 = vpop.permute.xlu0 %4134
        %4136 = vrot.lane.b32.xlu0 %v3225, 40
        %v4137 = vpop.permute.xlu0 %4136
        %v4146 = vsel %vm892, %v3135, %v3835
        %v4147 = vsel %vm892, %v3136, %v3837
        %v4148 = vsel %vm892, %v3137, %v3839
        %v4149 = vsel %vm892, %v3138, %v3841
        %v4150 = vsel %vm892, %v3139, %v3843
        %v4151 = vsel %vm892, %v3140, %v3845
        %v4152 = vsel %vm892, %v3141, %v3847
        %v4153 = vsel %vm892, %v3142, %v3849
        %v4154 = vsel %vm901, %v4146, %v3867
        %v4155 = vsel %vm901, %v4147, %v3869
        %v4156 = vsel %vm901, %v4148, %v3871
        %v4157 = vsel %vm901, %v4149, %v3873
        %v4158 = vsel %vm901, %v4150, %v3875
        %v4159 = vsel %vm901, %v4151, %v3877
        %v4160 = vsel %vm901, %v4152, %v3879
        %v4161 = vsel %vm901, %v4153, %v3881
        %v4162 = vsel %vm910, %v4154, %v3899
        %v4163 = vsel %vm910, %v4155, %v3901
        %v4164 = vsel %vm910, %v4156, %v3903
        %v4165 = vsel %vm910, %v4157, %v3905
        %v4166 = vsel %vm910, %v4158, %v3907
        %v4167 = vsel %vm910, %v4159, %v3909
        %v4168 = vsel %vm910, %v4160, %v3911
        %v4169 = vsel %vm910, %v4161, %v3913
        %v4170 = vsel %vm919, %v4162, %v3931
        %v4171 = vsel %vm919, %v4163, %v3933
        %v4172 = vsel %vm919, %v4164, %v3935
        %v4173 = vsel %vm919, %v4165, %v3937
        %v4174 = vsel %vm919, %v4166, %v3939
        %v4175 = vsel %vm919, %v4167, %v3941
        %v4176 = vsel %vm919, %v4168, %v3943
        %v4177 = vsel %vm919, %v4169, %v3945
        %v4178 = vsel %vm928, %v4170, %v3963
        %v4179 = vsel %vm928, %v4171, %v3965
        %v4180 = vsel %vm928, %v4172, %v3967
        %v4181 = vsel %vm928, %v4173, %v3969
        %v4182 = vsel %vm928, %v4174, %v3971
        %v4183 = vsel %vm928, %v4175, %v3973
        %v4184 = vsel %vm928, %v4176, %v3975
        %v4185 = vsel %vm928, %v4177, %v3977
        %v4186 = vsel %vm937, %v4178, %v3995
        %v4187 = vsel %vm937, %v4179, %v3997
        %v4188 = vsel %vm937, %v4180, %v3999
        %v4189 = vsel %vm937, %v4181, %v4001
        %v4190 = vsel %vm937, %v4182, %v4003
        %v4191 = vsel %vm937, %v4183, %v4005
        %v4192 = vsel %vm937, %v4184, %v4007
        %v4193 = vsel %vm937, %v4185, %v4009
        %v4194 = vsel %vm946, %v4186, %v4027
        %v4195 = vsel %vm946, %v4187, %v4029
        %v4196 = vsel %vm946, %v4188, %v4031
        %v4197 = vsel %vm946, %v4189, %v4033
        %v4198 = vsel %vm946, %v4190, %v4035
        %v4199 = vsel %vm946, %v4191, %v4037
        %v4200 = vsel %vm946, %v4192, %v4039
        %v4201 = vsel %vm946, %v4193, %v4041
        %v4202 = vsel %vm955, %v4194, %v4059
        %v4203 = vsel %vm955, %v4195, %v4061
        %v4204 = vsel %vm955, %v4196, %v4063
        %v4205 = vsel %vm955, %v4197, %v4065
        %v4206 = vsel %vm955, %v4198, %v4067
        %v4207 = vsel %vm955, %v4199, %v4069
        %v4208 = vsel %vm955, %v4200, %v4071
        %v4209 = vsel %vm955, %v4201, %v4073
        %v4210 = vsel %vm964, %v4202, %v4091
        %v4211 = vsel %vm964, %v4203, %v4093
        %v4212 = vsel %vm964, %v4204, %v4095
        %v4213 = vsel %vm964, %v4205, %v4097
        %v4214 = vsel %vm964, %v4206, %v4099
        %v4215 = vsel %vm964, %v4207, %v4101
        %v4216 = vsel %vm964, %v4208, %v4103
        %v4217 = vsel %vm964, %v4209, %v4105
        %v4218 = vsel %vm973, %v4210, %v4123
        %v4219 = vsel %vm973, %v4211, %v4125
        %v4220 = vsel %vm973, %v4212, %v4127
        %v4221 = vsel %vm973, %v4213, %v4129
        %v4222 = vsel %vm973, %v4214, %v4131
        %v4223 = vsel %vm973, %v4215, %v4133
        %v4224 = vsel %vm973, %v4216, %v4135
        %v4225 = vsel %vm973, %v4217, %v4137
        %4234 = vrot.lane.b32.xlu0 %v4218, 64
        %v4235 = vpop.permute.xlu0 %4234
        %4236 = vrot.lane.b32.xlu0 %v4219, 64
        %v4237 = vpop.permute.xlu0 %4236
        %4238 = vrot.lane.b32.xlu0 %v4220, 64
        %v4239 = vpop.permute.xlu0 %4238
        %4240 = vrot.lane.b32.xlu0 %v4221, 64
        %v4241 = vpop.permute.xlu0 %4240
        %4242 = vrot.lane.b32.xlu0 %v4222, 64
        %v4243 = vpop.permute.xlu0 %4242
        %4244 = vrot.lane.b32.xlu0 %v4223, 64
        %v4245 = vpop.permute.xlu0 %4244
        %4246 = vrot.lane.b32.xlu0 %v4224, 64
        %v4247 = vpop.permute.xlu0 %4246
        %4248 = vrot.lane.b32.xlu0 %v4225, 64
        %v4249 = vpop.permute.xlu0 %4248
        %v4258 = vsel %vm1459, %v3818, %v4235
        %v4259 = vsel %vm1459, %v3819, %v4237
        %v4260 = vsel %vm1459, %v3820, %v4239
        %v4261 = vsel %vm1459, %v3821, %v4241
        %v4262 = vsel %vm1459, %v3822, %v4243
        %v4263 = vsel %vm1459, %v3823, %v4245
        %v4264 = vsel %vm1459, %v3824, %v4247
        %v4265 = vsel %vm1459, %v3825, %v4249
        %v4267 = vsel %vm1468, %v4258, 0
        %v4270 = vsel %vm1468, %v4259, 0
        %v4273 = vsel %vm1468, %v4260, 0
        %v4276 = vsel %vm1468, %v4261, 0
        %v4279 = vsel %vm1468, %v4262, 0
        %v4282 = vsel %vm1468, %v4263, 0
        %v4285 = vsel %vm1468, %v4264, 0
        %v4288 = vsel %vm1468, %v4265, 0
        %4290 = vmatprep.subr.mxu0 0.0
        %4291 = vmatpush1.msra.mxu0 0.0
        %4292 = vmatprep.subr.mxu0 0.0
        %4293 = vmatpush1.msra.mxu0 0.0
        %4294 = vmatprep.subr.mxu0 0.0
        %4295 = vmatpush1.msra.mxu0 %v1495
        %4296 = vmatprep.subr.mxu0 0.0
        %4297 = vmatpush1.msra.mxu0 %v186
        %4298 = vmatprep.subr.mxu0 0.0
        %4299 = vmatpush1.msra.mxu0 %v185
        %4300 = vmatprep.subr.mxu0 0.0
        %4301 = vmatpush1.msra.mxu0 %v184
        %4302 = vmatprep.subr.mxu0 0.0
        %4303 = vmatpush1.msra.mxu0 %v183
        %4304 = vmatprep.subr.mxu0 0.0
        %4305 = vmatpush1.msra.mxu0 %v182
        %4306 = vmatprep.subr.mxu0 0.0
        %4307 = vmatpush1.msra.mxu0 %v181
        %4308 = vmatprep.subr.mxu0 0.0
        %4309 = vmatpush1.msra.mxu0 %v180
        %4310 = vmatprep.subr.mxu0 0.0
        %4311 = vmatpush1.msra.mxu0 %v179
        %4312 = vmatprep.subr.mxu0 0.0
        %4313 = vmatpush1.msra.mxu0 %v178
        %4314 = vmatprep.subr.mxu0 0.0
        %4315 = vmatpush1.msra.mxu0 %v177
        %4316 = vmatprep.subr.mxu0 0.0
        %4317 = vmatpush1.msra.mxu0 %v176
        %4318 = vmatprep.subr.mxu0 0.0
        %4319 = vmatpush1.msra.mxu0 %v175
        %4320 = vmatprep.subr.mxu0 0.0
        %4321 = vmatpush1.msra.mxu0 %v174
        %4322 = vmatprep.subr.mxu0 0.0
        %4323 = vmatpush2.msra.mxu0 0.0
        %4324 = vmatprep.subr.mxu0 0.0
        %4325 = vmatpush2.msra.mxu0 0.0
        %4326 = vmatprep.subr.mxu0 0.0
        %4327 = vmatpush2.msra.mxu0 0.0
        %4328 = vmatprep.subr.mxu0 0.0
        %4329 = vmatpush2.msra.mxu0 0.0
        %4330 = vmatprep.subr.mxu0 0.0
        %4331 = vmatpush2.msra.mxu0 0.0
        %4332 = vmatprep.subr.mxu0 0.0
        %4333 = vmatpush2.msra.mxu0 0.0
        %4334 = vmatprep.subr.mxu0 0.0
        %4335 = vmatpush2.msra.mxu0 0.0
        %4336 = vmatprep.subr.mxu0 0.0
        %4337 = vmatpush2.msra.mxu0 0.0
        %4338 = vmatprep.subr.mxu0 0.0
        %4339 = vmatpush2.msra.mxu0 0.0
        %4340 = vmatprep.subr.mxu0 0.0
        %4341 = vmatpush2.msra.mxu0 0.0
        %4342 = vmatprep.subr.mxu0 0.0
        %4343 = vmatpush2.msra.mxu0 0.0
        %4344 = vmatprep.subr.mxu0 0.0
        %4345 = vmatpush2.msra.mxu0 0.0
        %4346 = vmatprep.subr.mxu0 0.0
        %4347 = vmatpush2.msra.mxu0 0.0
        %4348 = vmatprep.subr.mxu0 0.0
        %4349 = vmatpush2.msra.mxu0 0.0
        %4350 = vmatprep.subr.mxu0 0.0
        %4351 = vmatpush2.msra.mxu0 0.0
        %4352 = vmatprep.subr.mxu0 0.0
        %4353 = vmatpush2.msra.mxu0 0.0
        %4354 = vmatprep.mubr.f32.mxu0 0.0
        %4355 = vmatmul.mubr.f32.gmra.mxu0 %v4267
        %v4356 = vpop.f32.mrf.mxu0
        %v4357 = vadd.f32 0.0, %v4356
        %v4358 = vpop.f32.mrf.mxu0
        %4359 = vmatprep.mubr.f32.mxu0 0.0
        %4360 = vmatmul.mubr.f32.gmra.mxu0 %v4270
        %v4361 = vpop.f32.mrf.mxu0
        %v4362 = vadd.f32 0.0, %v4361
        %v4363 = vpop.f32.mrf.mxu0
        %4364 = vmatprep.mubr.f32.mxu0 0.0
        %4365 = vmatmul.mubr.f32.gmra.mxu0 %v4273
        %v4366 = vpop.f32.mrf.mxu0
        %v4367 = vadd.f32 0.0, %v4366
        %v4368 = vpop.f32.mrf.mxu0
        %4369 = vmatprep.mubr.f32.mxu0 0.0
        %4370 = vmatmul.mubr.f32.gmra.mxu0 %v4276
        %v4371 = vpop.f32.mrf.mxu0
        %v4372 = vadd.f32 0.0, %v4371
        %v4373 = vpop.f32.mrf.mxu0
        %4374 = vmatprep.mubr.f32.mxu0 0.0
        %4375 = vmatmul.mubr.f32.gmra.mxu0 %v4279
        %v4376 = vpop.f32.mrf.mxu0
        %v4377 = vadd.f32 0.0, %v4376
        %v4378 = vpop.f32.mrf.mxu0
        %4379 = vmatprep.mubr.f32.mxu0 0.0
        %4380 = vmatmul.mubr.f32.gmra.mxu0 %v4282
        %v4381 = vpop.f32.mrf.mxu0
        %v4382 = vadd.f32 0.0, %v4381
        %v4383 = vpop.f32.mrf.mxu0
        %4384 = vmatprep.mubr.f32.mxu0 0.0
        %4385 = vmatmul.mubr.f32.gmra.mxu0 %v4285
        %v4386 = vpop.f32.mrf.mxu0
        %v4387 = vadd.f32 0.0, %v4386
        %v4388 = vpop.f32.mrf.mxu0
        %4389 = vmatprep.mubr.f32.mxu0 0.0
        %4390 = vmatmul.mubr.f32.gmra.mxu0 %v4288
        %v4391 = vpop.f32.mrf.mxu0
        %v4392 = vadd.f32 0.0, %v4391
        %v4393 = vpop.f32.mrf.mxu0
        %4394 = vdwg.mxu0
        %s4395 = scalar_lea.vmem %s162, 128 [#allocation2]
        %4396 = vst [vmem:[%s4395] sm:$0xff] %v4357
        %4397 = vst [vmem:[%s4395 + $0x8] sm:$0xff] %v4362
        %4398 = vst [vmem:[%s4395 + $0x10] sm:$0xff] %v4367
        %4399 = vst [vmem:[%s4395 + $0x18] sm:$0xff] %v4372
        %4400 = vst [vmem:[%s4395 + $0x20] sm:$0xff] %v4377
        %4401 = vst [vmem:[%s4395 + $0x28] sm:$0xff] %v4382
        %4402 = vst [vmem:[%s4395 + $0x30] sm:$0xff] %v4387
        %4403 = vst [vmem:[%s4395 + $0x38] sm:$0xff] %v4392
        %v4404 = vld [vmem:[%s1754] sm:$0xff]
        %v4405 = vld [vmem:[%s1754 + $0x10] sm:$0xff]
        %v4406 = vld [vmem:[%s1754 + $0x20] sm:$0xff]
        %v4407 = vld [vmem:[%s1754 + $0x30] sm:$0xff]
        %v4408 = vld [vmem:[%s1754 + $0x40] sm:$0xff]
        %v4409 = vld [vmem:[%s1754 + $0x50] sm:$0xff]
        %v4410 = vld [vmem:[%s1754 + $0x60] sm:$0xff]
        %v4411 = vld [vmem:[%s1754 + $0x70] sm:$0xff]
        %v4412 = vld [vmem:[%s1754 + $0x1] sm:$0xff]
        %v4413 = vld [vmem:[%s1754 + $0x11] sm:$0xff]
        %v4414 = vld [vmem:[%s1754 + $0x21] sm:$0xff]
        %v4415 = vld [vmem:[%s1754 + $0x31] sm:$0xff]
        %v4416 = vld [vmem:[%s1754 + $0x41] sm:$0xff]
        %v4417 = vld [vmem:[%s1754 + $0x51] sm:$0xff]
        %v4418 = vld [vmem:[%s1754 + $0x61] sm:$0xff]
        %v4419 = vld [vmem:[%s1754 + $0x71] sm:$0xff]
        %v4420 = vld [vmem:[%s1754 + $0x2] sm:$0xff]
        %v4421 = vld [vmem:[%s1754 + $0x12] sm:$0xff]
        %v4422 = vld [vmem:[%s1754 + $0x22] sm:$0xff]
        %v4423 = vld [vmem:[%s1754 + $0x32] sm:$0xff]
        %v4424 = vld [vmem:[%s1754 + $0x42] sm:$0xff]
        %v4425 = vld [vmem:[%s1754 + $0x52] sm:$0xff]
        %v4426 = vld [vmem:[%s1754 + $0x62] sm:$0xff]
        %v4427 = vld [vmem:[%s1754 + $0x72] sm:$0xff]
        %v4428 = vld [vmem:[%s1779] sm:$0xff]
        %v4429 = vld [vmem:[%s1779 + $0x10] sm:$0xff]
        %v4430 = vld [vmem:[%s1779 + $0x20] sm:$0xff]
        %v4431 = vld [vmem:[%s1779 + $0x30] sm:$0xff]
        %v4432 = vld [vmem:[%s1779 + $0x40] sm:$0xff]
        %v4433 = vld [vmem:[%s1779 + $0x50] sm:$0xff]
        %v4434 = vld [vmem:[%s1779 + $0x60] sm:$0xff]
        %v4435 = vld [vmem:[%s1779 + $0x70] sm:$0xff]
        %v4436 = vld [vmem:[%s1779 + $0x1] sm:$0xff]
        %v4437 = vld [vmem:[%s1779 + $0x11] sm:$0xff]
        %v4438 = vld [vmem:[%s1779 + $0x21] sm:$0xff]
        %v4439 = vld [vmem:[%s1779 + $0x31] sm:$0xff]
        %v4440 = vld [vmem:[%s1779 + $0x41] sm:$0xff]
        %v4441 = vld [vmem:[%s1779 + $0x51] sm:$0xff]
        %v4442 = vld [vmem:[%s1779 + $0x61] sm:$0xff]
        %v4443 = vld [vmem:[%s1779 + $0x71] sm:$0xff]
        %v4444 = vld [vmem:[%s1779 + $0x2] sm:$0xff]
        %v4445 = vld [vmem:[%s1779 + $0x12] sm:$0xff]
        %v4446 = vld [vmem:[%s1779 + $0x22] sm:$0xff]
        %v4447 = vld [vmem:[%s1779 + $0x32] sm:$0xff]
        %v4448 = vld [vmem:[%s1779 + $0x42] sm:$0xff]
        %v4449 = vld [vmem:[%s1779 + $0x52] sm:$0xff]
        %v4450 = vld [vmem:[%s1779 + $0x62] sm:$0xff]
        %v4451 = vld [vmem:[%s1779 + $0x72] sm:$0xff]
        %v4452 = vld [vmem:[%s1804] sm:$0xff]
        %v4453 = vld [vmem:[%s1804 + $0x10] sm:$0xff]
        %v4454 = vld [vmem:[%s1804 + $0x20] sm:$0xff]
        %v4455 = vld [vmem:[%s1804 + $0x30] sm:$0xff]
        %v4456 = vld [vmem:[%s1804 + $0x40] sm:$0xff]
        %v4457 = vld [vmem:[%s1804 + $0x50] sm:$0xff]
        %v4458 = vld [vmem:[%s1804 + $0x60] sm:$0xff]
        %v4459 = vld [vmem:[%s1804 + $0x70] sm:$0xff]
        %v4460 = vld [vmem:[%s1804 + $0x1] sm:$0xff]
        %v4461 = vld [vmem:[%s1804 + $0x11] sm:$0xff]
        %v4462 = vld [vmem:[%s1804 + $0x21] sm:$0xff]
        %v4463 = vld [vmem:[%s1804 + $0x31] sm:$0xff]
        %v4464 = vld [vmem:[%s1804 + $0x41] sm:$0xff]
        %v4465 = vld [vmem:[%s1804 + $0x51] sm:$0xff]
        %v4466 = vld [vmem:[%s1804 + $0x61] sm:$0xff]
        %v4467 = vld [vmem:[%s1804 + $0x71] sm:$0xff]
        %v4468 = vld [vmem:[%s1804 + $0x2] sm:$0xff]
        %v4469 = vld [vmem:[%s1804 + $0x12] sm:$0xff]
        %v4470 = vld [vmem:[%s1804 + $0x22] sm:$0xff]
        %v4471 = vld [vmem:[%s1804 + $0x32] sm:$0xff]
        %v4472 = vld [vmem:[%s1804 + $0x42] sm:$0xff]
        %v4473 = vld [vmem:[%s1804 + $0x52] sm:$0xff]
        %v4474 = vld [vmem:[%s1804 + $0x62] sm:$0xff]
        %v4475 = vld [vmem:[%s1804 + $0x72] sm:$0xff]
        %v4476 = vld [vmem:[%s3151] sm:$0xff]
        %v4477 = vld [vmem:[%s3151 + $0x10] sm:$0xff]
        %v4478 = vld [vmem:[%s3151 + $0x20] sm:$0xff]
        %v4479 = vld [vmem:[%s3151 + $0x30] sm:$0xff]
        %v4480 = vld [vmem:[%s3151 + $0x40] sm:$0xff]
        %v4481 = vld [vmem:[%s3151 + $0x50] sm:$0xff]
        %v4482 = vld [vmem:[%s3151 + $0x60] sm:$0xff]
        %v4483 = vld [vmem:[%s3151 + $0x70] sm:$0xff]
        %v4484 = vld [vmem:[%s3151 + $0x1] sm:$0xff]
        %v4485 = vld [vmem:[%s3151 + $0x11] sm:$0xff]
        %v4486 = vld [vmem:[%s3151 + $0x21] sm:$0xff]
        %v4487 = vld [vmem:[%s3151 + $0x31] sm:$0xff]
        %v4488 = vld [vmem:[%s3151 + $0x41] sm:$0xff]
        %v4489 = vld [vmem:[%s3151 + $0x51] sm:$0xff]
        %v4490 = vld [vmem:[%s3151 + $0x61] sm:$0xff]
        %v4491 = vld [vmem:[%s3151 + $0x71] sm:$0xff]
        %v4492 = vld [vmem:[%s3151 + $0x2] sm:$0xff]
        %v4493 = vld [vmem:[%s3151 + $0x12] sm:$0xff]
        %v4494 = vld [vmem:[%s3151 + $0x22] sm:$0xff]
        %v4495 = vld [vmem:[%s3151 + $0x32] sm:$0xff]
        %v4496 = vld [vmem:[%s3151 + $0x42] sm:$0xff]
        %v4497 = vld [vmem:[%s3151 + $0x52] sm:$0xff]
        %v4498 = vld [vmem:[%s3151 + $0x62] sm:$0xff]
        %v4499 = vld [vmem:[%s3151 + $0x72] sm:$0xff]
        %v4500 = vld [vmem:[%s3176] sm:$0xff]
        %v4501 = vld [vmem:[%s3176 + $0x10] sm:$0xff]
        %v4502 = vld [vmem:[%s3176 + $0x20] sm:$0xff]
        %v4503 = vld [vmem:[%s3176 + $0x30] sm:$0xff]
        %v4504 = vld [vmem:[%s3176 + $0x40] sm:$0xff]
        %v4505 = vld [vmem:[%s3176 + $0x50] sm:$0xff]
        %v4506 = vld [vmem:[%s3176 + $0x60] sm:$0xff]
        %v4507 = vld [vmem:[%s3176 + $0x70] sm:$0xff]
        %v4508 = vld [vmem:[%s3176 + $0x1] sm:$0xff]
        %v4509 = vld [vmem:[%s3176 + $0x11] sm:$0xff]
        %v4510 = vld [vmem:[%s3176 + $0x21] sm:$0xff]
        %v4511 = vld [vmem:[%s3176 + $0x31] sm:$0xff]
        %v4512 = vld [vmem:[%s3176 + $0x41] sm:$0xff]
        %v4513 = vld [vmem:[%s3176 + $0x51] sm:$0xff]
        %v4514 = vld [vmem:[%s3176 + $0x61] sm:$0xff]
        %v4515 = vld [vmem:[%s3176 + $0x71] sm:$0xff]
        %v4516 = vld [vmem:[%s3176 + $0x2] sm:$0xff]
        %v4517 = vld [vmem:[%s3176 + $0x12] sm:$0xff]
        %v4518 = vld [vmem:[%s3176 + $0x22] sm:$0xff]
        %v4519 = vld [vmem:[%s3176 + $0x32] sm:$0xff]
        %v4520 = vld [vmem:[%s3176 + $0x42] sm:$0xff]
        %v4521 = vld [vmem:[%s3176 + $0x52] sm:$0xff]
        %v4522 = vld [vmem:[%s3176 + $0x62] sm:$0xff]
        %v4523 = vld [vmem:[%s3176 + $0x72] sm:$0xff]
        %v4524 = vld [vmem:[%s3201] sm:$0xff]
        %v4525 = vld [vmem:[%s3201 + $0x10] sm:$0xff]
        %v4526 = vld [vmem:[%s3201 + $0x20] sm:$0xff]
        %v4527 = vld [vmem:[%s3201 + $0x30] sm:$0xff]
        %v4528 = vld [vmem:[%s3201 + $0x40] sm:$0xff]
        %v4529 = vld [vmem:[%s3201 + $0x50] sm:$0xff]
        %v4530 = vld [vmem:[%s3201 + $0x60] sm:$0xff]
        %v4531 = vld [vmem:[%s3201 + $0x70] sm:$0xff]
        %v4532 = vld [vmem:[%s3201 + $0x1] sm:$0xff]
        %v4533 = vld [vmem:[%s3201 + $0x11] sm:$0xff]
        %v4534 = vld [vmem:[%s3201 + $0x21] sm:$0xff]
        %v4535 = vld [vmem:[%s3201 + $0x31] sm:$0xff]
        %v4536 = vld [vmem:[%s3201 + $0x41] sm:$0xff]
        %v4537 = vld [vmem:[%s3201 + $0x51] sm:$0xff]
        %v4538 = vld [vmem:[%s3201 + $0x61] sm:$0xff]
        %v4539 = vld [vmem:[%s3201 + $0x71] sm:$0xff]
        %v4540 = vld [vmem:[%s3201 + $0x2] sm:$0xff]
        %v4541 = vld [vmem:[%s3201 + $0x12] sm:$0xff]
        %v4542 = vld [vmem:[%s3201 + $0x22] sm:$0xff]
        %v4543 = vld [vmem:[%s3201 + $0x32] sm:$0xff]
        %v4544 = vld [vmem:[%s3201 + $0x42] sm:$0xff]
        %v4545 = vld [vmem:[%s3201 + $0x52] sm:$0xff]
        %v4546 = vld [vmem:[%s3201 + $0x62] sm:$0xff]
        %v4547 = vld [vmem:[%s3201 + $0x72] sm:$0xff]
        %s4548 = scalar_lea.vmem %s169, 800
        %v4549 = vld [vmem:[%s4548] sm:$0xff]
        %v4550 = vld [vmem:[%s4548 + $0x10] sm:$0xff]
        %v4551 = vld [vmem:[%s4548 + $0x20] sm:$0xff]
        %v4552 = vld [vmem:[%s4548 + $0x30] sm:$0xff]
        %v4553 = vld [vmem:[%s4548 + $0x40] sm:$0xff]
        %v4554 = vld [vmem:[%s4548 + $0x50] sm:$0xff]
        %v4555 = vld [vmem:[%s4548 + $0x60] sm:$0xff]
        %v4556 = vld [vmem:[%s4548 + $0x70] sm:$0xff]
        %v4557 = vld [vmem:[%s4548 + $0x1] sm:$0xff]
        %v4558 = vld [vmem:[%s4548 + $0x11] sm:$0xff]
        %v4559 = vld [vmem:[%s4548 + $0x21] sm:$0xff]
        %v4560 = vld [vmem:[%s4548 + $0x31] sm:$0xff]
        %v4561 = vld [vmem:[%s4548 + $0x41] sm:$0xff]
        %v4562 = vld [vmem:[%s4548 + $0x51] sm:$0xff]
        %v4563 = vld [vmem:[%s4548 + $0x61] sm:$0xff]
        %v4564 = vld [vmem:[%s4548 + $0x71] sm:$0xff]
        %v4565 = vld [vmem:[%s4548 + $0x2] sm:$0xff]
        %v4566 = vld [vmem:[%s4548 + $0x12] sm:$0xff]
        %v4567 = vld [vmem:[%s4548 + $0x22] sm:$0xff]
        %v4568 = vld [vmem:[%s4548 + $0x32] sm:$0xff]
        %v4569 = vld [vmem:[%s4548 + $0x42] sm:$0xff]
        %v4570 = vld [vmem:[%s4548 + $0x52] sm:$0xff]
        %v4571 = vld [vmem:[%s4548 + $0x62] sm:$0xff]
        %v4572 = vld [vmem:[%s4548 + $0x72] sm:$0xff]
        %s4573 = scalar_lea.vmem %s169, 816
        %v4574 = vld [vmem:[%s4573] sm:$0xff]
        %v4575 = vld [vmem:[%s4573 + $0x10] sm:$0xff]
        %v4576 = vld [vmem:[%s4573 + $0x20] sm:$0xff]
        %v4577 = vld [vmem:[%s4573 + $0x30] sm:$0xff]
        %v4578 = vld [vmem:[%s4573 + $0x40] sm:$0xff]
        %v4579 = vld [vmem:[%s4573 + $0x50] sm:$0xff]
        %v4580 = vld [vmem:[%s4573 + $0x60] sm:$0xff]
        %v4581 = vld [vmem:[%s4573 + $0x70] sm:$0xff]
        %v4582 = vld [vmem:[%s4573 + $0x1] sm:$0xff]
        %v4583 = vld [vmem:[%s4573 + $0x11] sm:$0xff]
        %v4584 = vld [vmem:[%s4573 + $0x21] sm:$0xff]
        %v4585 = vld [vmem:[%s4573 + $0x31] sm:$0xff]
        %v4586 = vld [vmem:[%s4573 + $0x41] sm:$0xff]
        %v4587 = vld [vmem:[%s4573 + $0x51] sm:$0xff]
        %v4588 = vld [vmem:[%s4573 + $0x61] sm:$0xff]
        %v4589 = vld [vmem:[%s4573 + $0x71] sm:$0xff]
        %v4590 = vld [vmem:[%s4573 + $0x2] sm:$0xff]
        %v4591 = vld [vmem:[%s4573 + $0x12] sm:$0xff]
        %v4592 = vld [vmem:[%s4573 + $0x22] sm:$0xff]
        %v4593 = vld [vmem:[%s4573 + $0x32] sm:$0xff]
        %v4594 = vld [vmem:[%s4573 + $0x42] sm:$0xff]
        %v4595 = vld [vmem:[%s4573 + $0x52] sm:$0xff]
        %v4596 = vld [vmem:[%s4573 + $0x62] sm:$0xff]
        %v4597 = vld [vmem:[%s4573 + $0x72] sm:$0xff]
        %s4598 = scalar_lea.vmem %s169, 832
        %v4599 = vld [vmem:[%s4598] sm:$0xff]
        %v4600 = vld [vmem:[%s4598 + $0x10] sm:$0xff]
        %v4601 = vld [vmem:[%s4598 + $0x20] sm:$0xff]
        %v4602 = vld [vmem:[%s4598 + $0x30] sm:$0xff]
        %v4603 = vld [vmem:[%s4598 + $0x40] sm:$0xff]
        %v4604 = vld [vmem:[%s4598 + $0x50] sm:$0xff]
        %v4605 = vld [vmem:[%s4598 + $0x60] sm:$0xff]
        %v4606 = vld [vmem:[%s4598 + $0x70] sm:$0xff]
        %v4607 = vld [vmem:[%s4598 + $0x1] sm:$0xff]
        %v4608 = vld [vmem:[%s4598 + $0x11] sm:$0xff]
        %v4609 = vld [vmem:[%s4598 + $0x21] sm:$0xff]
        %v4610 = vld [vmem:[%s4598 + $0x31] sm:$0xff]
        %v4611 = vld [vmem:[%s4598 + $0x41] sm:$0xff]
        %v4612 = vld [vmem:[%s4598 + $0x51] sm:$0xff]
        %v4613 = vld [vmem:[%s4598 + $0x61] sm:$0xff]
        %v4614 = vld [vmem:[%s4598 + $0x71] sm:$0xff]
        %v4615 = vld [vmem:[%s4598 + $0x2] sm:$0xff]
        %v4616 = vld [vmem:[%s4598 + $0x12] sm:$0xff]
        %v4617 = vld [vmem:[%s4598 + $0x22] sm:$0xff]
        %v4618 = vld [vmem:[%s4598 + $0x32] sm:$0xff]
        %v4619 = vld [vmem:[%s4598 + $0x42] sm:$0xff]
        %v4620 = vld [vmem:[%s4598 + $0x52] sm:$0xff]
        %v4621 = vld [vmem:[%s4598 + $0x62] sm:$0xff]
        %v4622 = vld [vmem:[%s4598 + $0x72] sm:$0xff]
        %4631 = vrot.lane.b32.xlu0 %v4412, 4
        %v4632 = vpop.permute.xlu0 %4631
        %4633 = vrot.lane.b32.xlu0 %v4413, 4
        %v4634 = vpop.permute.xlu0 %4633
        %4635 = vrot.lane.b32.xlu0 %v4414, 4
        %v4636 = vpop.permute.xlu0 %4635
        %4637 = vrot.lane.b32.xlu0 %v4415, 4
        %v4638 = vpop.permute.xlu0 %4637
        %4639 = vrot.lane.b32.xlu0 %v4416, 4
        %v4640 = vpop.permute.xlu0 %4639
        %4641 = vrot.lane.b32.xlu0 %v4417, 4
        %v4642 = vpop.permute.xlu0 %4641
        %4643 = vrot.lane.b32.xlu0 %v4418, 4
        %v4644 = vpop.permute.xlu0 %4643
        %4645 = vrot.lane.b32.xlu0 %v4419, 4
        %v4646 = vpop.permute.xlu0 %4645
        %4663 = vrot.lane.b32.xlu0 %v4420, 8
        %v4664 = vpop.permute.xlu0 %4663
        %4665 = vrot.lane.b32.xlu0 %v4421, 8
        %v4666 = vpop.permute.xlu0 %4665
        %4667 = vrot.lane.b32.xlu0 %v4422, 8
        %v4668 = vpop.permute.xlu0 %4667
        %4669 = vrot.lane.b32.xlu0 %v4423, 8
        %v4670 = vpop.permute.xlu0 %4669
        %4671 = vrot.lane.b32.xlu0 %v4424, 8
        %v4672 = vpop.permute.xlu0 %4671
        %4673 = vrot.lane.b32.xlu0 %v4425, 8
        %v4674 = vpop.permute.xlu0 %4673
        %4675 = vrot.lane.b32.xlu0 %v4426, 8
        %v4676 = vpop.permute.xlu0 %4675
        %4677 = vrot.lane.b32.xlu0 %v4427, 8
        %v4678 = vpop.permute.xlu0 %4677
        %4695 = vrot.lane.b32.xlu0 %v4428, 12
        %v4696 = vpop.permute.xlu0 %4695
        %4697 = vrot.lane.b32.xlu0 %v4429, 12
        %v4698 = vpop.permute.xlu0 %4697
        %4699 = vrot.lane.b32.xlu0 %v4430, 12
        %v4700 = vpop.permute.xlu0 %4699
        %4701 = vrot.lane.b32.xlu0 %v4431, 12
        %v4702 = vpop.permute.xlu0 %4701
        %4703 = vrot.lane.b32.xlu0 %v4432, 12
        %v4704 = vpop.permute.xlu0 %4703
        %4705 = vrot.lane.b32.xlu0 %v4433, 12
        %v4706 = vpop.permute.xlu0 %4705
        %4707 = vrot.lane.b32.xlu0 %v4434, 12
        %v4708 = vpop.permute.xlu0 %4707
        %4709 = vrot.lane.b32.xlu0 %v4435, 12
        %v4710 = vpop.permute.xlu0 %4709
        %4727 = vrot.lane.b32.xlu0 %v4436, 16
        %v4728 = vpop.permute.xlu0 %4727
        %4729 = vrot.lane.b32.xlu0 %v4437, 16
        %v4730 = vpop.permute.xlu0 %4729
        %4731 = vrot.lane.b32.xlu0 %v4438, 16
        %v4732 = vpop.permute.xlu0 %4731
        %4733 = vrot.lane.b32.xlu0 %v4439, 16
        %v4734 = vpop.permute.xlu0 %4733
        %4735 = vrot.lane.b32.xlu0 %v4440, 16
        %v4736 = vpop.permute.xlu0 %4735
        %4737 = vrot.lane.b32.xlu0 %v4441, 16
        %v4738 = vpop.permute.xlu0 %4737
        %4739 = vrot.lane.b32.xlu0 %v4442, 16
        %v4740 = vpop.permute.xlu0 %4739
        %4741 = vrot.lane.b32.xlu0 %v4443, 16
        %v4742 = vpop.permute.xlu0 %4741
        %4759 = vrot.lane.b32.xlu0 %v4444, 20
        %v4760 = vpop.permute.xlu0 %4759
        %4761 = vrot.lane.b32.xlu0 %v4445, 20
        %v4762 = vpop.permute.xlu0 %4761
        %4763 = vrot.lane.b32.xlu0 %v4446, 20
        %v4764 = vpop.permute.xlu0 %4763
        %4765 = vrot.lane.b32.xlu0 %v4447, 20
        %v4766 = vpop.permute.xlu0 %4765
        %4767 = vrot.lane.b32.xlu0 %v4448, 20
        %v4768 = vpop.permute.xlu0 %4767
        %4769 = vrot.lane.b32.xlu0 %v4449, 20
        %v4770 = vpop.permute.xlu0 %4769
        %4771 = vrot.lane.b32.xlu0 %v4450, 20
        %v4772 = vpop.permute.xlu0 %4771
        %4773 = vrot.lane.b32.xlu0 %v4451, 20
        %v4774 = vpop.permute.xlu0 %4773
        %4791 = vrot.lane.b32.xlu0 %v4452, 24
        %v4792 = vpop.permute.xlu0 %4791
        %4793 = vrot.lane.b32.xlu0 %v4453, 24
        %v4794 = vpop.permute.xlu0 %4793
        %4795 = vrot.lane.b32.xlu0 %v4454, 24
        %v4796 = vpop.permute.xlu0 %4795
        %4797 = vrot.lane.b32.xlu0 %v4455, 24
        %v4798 = vpop.permute.xlu0 %4797
        %4799 = vrot.lane.b32.xlu0 %v4456, 24
        %v4800 = vpop.permute.xlu0 %4799
        %4801 = vrot.lane.b32.xlu0 %v4457, 24
        %v4802 = vpop.permute.xlu0 %4801
        %4803 = vrot.lane.b32.xlu0 %v4458, 24
        %v4804 = vpop.permute.xlu0 %4803
        %4805 = vrot.lane.b32.xlu0 %v4459, 24
        %v4806 = vpop.permute.xlu0 %4805
        %4823 = vrot.lane.b32.xlu0 %v4460, 28
        %v4824 = vpop.permute.xlu0 %4823
        %4825 = vrot.lane.b32.xlu0 %v4461, 28
        %v4826 = vpop.permute.xlu0 %4825
        %4827 = vrot.lane.b32.xlu0 %v4462, 28
        %v4828 = vpop.permute.xlu0 %4827
        %4829 = vrot.lane.b32.xlu0 %v4463, 28
        %v4830 = vpop.permute.xlu0 %4829
        %4831 = vrot.lane.b32.xlu0 %v4464, 28
        %v4832 = vpop.permute.xlu0 %4831
        %4833 = vrot.lane.b32.xlu0 %v4465, 28
        %v4834 = vpop.permute.xlu0 %4833
        %4835 = vrot.lane.b32.xlu0 %v4466, 28
        %v4836 = vpop.permute.xlu0 %4835
        %4837 = vrot.lane.b32.xlu0 %v4467, 28
        %v4838 = vpop.permute.xlu0 %4837
        %4855 = vrot.lane.b32.xlu0 %v4468, 32
        %v4856 = vpop.permute.xlu0 %4855
        %4857 = vrot.lane.b32.xlu0 %v4469, 32
        %v4858 = vpop.permute.xlu0 %4857
        %4859 = vrot.lane.b32.xlu0 %v4470, 32
        %v4860 = vpop.permute.xlu0 %4859
        %4861 = vrot.lane.b32.xlu0 %v4471, 32
        %v4862 = vpop.permute.xlu0 %4861
        %4863 = vrot.lane.b32.xlu0 %v4472, 32
        %v4864 = vpop.permute.xlu0 %4863
        %4865 = vrot.lane.b32.xlu0 %v4473, 32
        %v4866 = vpop.permute.xlu0 %4865
        %4867 = vrot.lane.b32.xlu0 %v4474, 32
        %v4868 = vpop.permute.xlu0 %4867
        %4869 = vrot.lane.b32.xlu0 %v4475, 32
        %v4870 = vpop.permute.xlu0 %4869
        %4887 = vrot.lane.b32.xlu0 %v4476, 36
        %v4888 = vpop.permute.xlu0 %4887
        %4889 = vrot.lane.b32.xlu0 %v4477, 36
        %v4890 = vpop.permute.xlu0 %4889
        %4891 = vrot.lane.b32.xlu0 %v4478, 36
        %v4892 = vpop.permute.xlu0 %4891
        %4893 = vrot.lane.b32.xlu0 %v4479, 36
        %v4894 = vpop.permute.xlu0 %4893
        %4895 = vrot.lane.b32.xlu0 %v4480, 36
        %v4896 = vpop.permute.xlu0 %4895
        %4897 = vrot.lane.b32.xlu0 %v4481, 36
        %v4898 = vpop.permute.xlu0 %4897
        %4899 = vrot.lane.b32.xlu0 %v4482, 36
        %v4900 = vpop.permute.xlu0 %4899
        %4901 = vrot.lane.b32.xlu0 %v4483, 36
        %v4902 = vpop.permute.xlu0 %4901
        %4919 = vrot.lane.b32.xlu0 %v4484, 40
        %v4920 = vpop.permute.xlu0 %4919
        %4921 = vrot.lane.b32.xlu0 %v4485, 40
        %v4922 = vpop.permute.xlu0 %4921
        %4923 = vrot.lane.b32.xlu0 %v4486, 40
        %v4924 = vpop.permute.xlu0 %4923
        %4925 = vrot.lane.b32.xlu0 %v4487, 40
        %v4926 = vpop.permute.xlu0 %4925
        %4927 = vrot.lane.b32.xlu0 %v4488, 40
        %v4928 = vpop.permute.xlu0 %4927
        %4929 = vrot.lane.b32.xlu0 %v4489, 40
        %v4930 = vpop.permute.xlu0 %4929
        %4931 = vrot.lane.b32.xlu0 %v4490, 40
        %v4932 = vpop.permute.xlu0 %4931
        %4933 = vrot.lane.b32.xlu0 %v4491, 40
        %v4934 = vpop.permute.xlu0 %4933
        %4951 = vrot.lane.b32.xlu0 %v4492, 44
        %v4952 = vpop.permute.xlu0 %4951
        %4953 = vrot.lane.b32.xlu0 %v4493, 44
        %v4954 = vpop.permute.xlu0 %4953
        %4955 = vrot.lane.b32.xlu0 %v4494, 44
        %v4956 = vpop.permute.xlu0 %4955
        %4957 = vrot.lane.b32.xlu0 %v4495, 44
        %v4958 = vpop.permute.xlu0 %4957
        %4959 = vrot.lane.b32.xlu0 %v4496, 44
        %v4960 = vpop.permute.xlu0 %4959
        %4961 = vrot.lane.b32.xlu0 %v4497, 44
        %v4962 = vpop.permute.xlu0 %4961
        %4963 = vrot.lane.b32.xlu0 %v4498, 44
        %v4964 = vpop.permute.xlu0 %4963
        %4965 = vrot.lane.b32.xlu0 %v4499, 44
        %v4966 = vpop.permute.xlu0 %4965
        %4983 = vrot.lane.b32.xlu0 %v4500, 48
        %v4984 = vpop.permute.xlu0 %4983
        %4985 = vrot.lane.b32.xlu0 %v4501, 48
        %v4986 = vpop.permute.xlu0 %4985
        %4987 = vrot.lane.b32.xlu0 %v4502, 48
        %v4988 = vpop.permute.xlu0 %4987
        %4989 = vrot.lane.b32.xlu0 %v4503, 48
        %v4990 = vpop.permute.xlu0 %4989
        %4991 = vrot.lane.b32.xlu0 %v4504, 48
        %v4992 = vpop.permute.xlu0 %4991
        %4993 = vrot.lane.b32.xlu0 %v4505, 48
        %v4994 = vpop.permute.xlu0 %4993
        %4995 = vrot.lane.b32.xlu0 %v4506, 48
        %v4996 = vpop.permute.xlu0 %4995
        %4997 = vrot.lane.b32.xlu0 %v4507, 48
        %v4998 = vpop.permute.xlu0 %4997
        %5015 = vrot.lane.b32.xlu0 %v4508, 52
        %v5016 = vpop.permute.xlu0 %5015
        %5017 = vrot.lane.b32.xlu0 %v4509, 52
        %v5018 = vpop.permute.xlu0 %5017
        %5019 = vrot.lane.b32.xlu0 %v4510, 52
        %v5020 = vpop.permute.xlu0 %5019
        %5021 = vrot.lane.b32.xlu0 %v4511, 52
        %v5022 = vpop.permute.xlu0 %5021
        %5023 = vrot.lane.b32.xlu0 %v4512, 52
        %v5024 = vpop.permute.xlu0 %5023
        %5025 = vrot.lane.b32.xlu0 %v4513, 52
        %v5026 = vpop.permute.xlu0 %5025
        %5027 = vrot.lane.b32.xlu0 %v4514, 52
        %v5028 = vpop.permute.xlu0 %5027
        %5029 = vrot.lane.b32.xlu0 %v4515, 52
        %v5030 = vpop.permute.xlu0 %5029
        %5047 = vrot.lane.b32.xlu0 %v4516, 56
        %v5048 = vpop.permute.xlu0 %5047
        %5049 = vrot.lane.b32.xlu0 %v4517, 56
        %v5050 = vpop.permute.xlu0 %5049
        %5051 = vrot.lane.b32.xlu0 %v4518, 56
        %v5052 = vpop.permute.xlu0 %5051
        %5053 = vrot.lane.b32.xlu0 %v4519, 56
        %v5054 = vpop.permute.xlu0 %5053
        %5055 = vrot.lane.b32.xlu0 %v4520, 56
        %v5056 = vpop.permute.xlu0 %5055
        %5057 = vrot.lane.b32.xlu0 %v4521, 56
        %v5058 = vpop.permute.xlu0 %5057
        %5059 = vrot.lane.b32.xlu0 %v4522, 56
        %v5060 = vpop.permute.xlu0 %5059
        %5061 = vrot.lane.b32.xlu0 %v4523, 56
        %v5062 = vpop.permute.xlu0 %5061
        %5079 = vrot.lane.b32.xlu0 %v4524, 60
        %v5080 = vpop.permute.xlu0 %5079
        %5081 = vrot.lane.b32.xlu0 %v4525, 60
        %v5082 = vpop.permute.xlu0 %5081
        %5083 = vrot.lane.b32.xlu0 %v4526, 60
        %v5084 = vpop.permute.xlu0 %5083
        %5085 = vrot.lane.b32.xlu0 %v4527, 60
        %v5086 = vpop.permute.xlu0 %5085
        %5087 = vrot.lane.b32.xlu0 %v4528, 60
        %v5088 = vpop.permute.xlu0 %5087
        %5089 = vrot.lane.b32.xlu0 %v4529, 60
        %v5090 = vpop.permute.xlu0 %5089
        %5091 = vrot.lane.b32.xlu0 %v4530, 60
        %v5092 = vpop.permute.xlu0 %5091
        %5093 = vrot.lane.b32.xlu0 %v4531, 60
        %v5094 = vpop.permute.xlu0 %5093
        %v5103 = vsel %vm892, %v4404, %v4632
        %v5104 = vsel %vm892, %v4405, %v4634
        %v5105 = vsel %vm892, %v4406, %v4636
        %v5106 = vsel %vm892, %v4407, %v4638
        %v5107 = vsel %vm892, %v4408, %v4640
        %v5108 = vsel %vm892, %v4409, %v4642
        %v5109 = vsel %vm892, %v4410, %v4644
        %v5110 = vsel %vm892, %v4411, %v4646
        %v5111 = vsel %vm901, %v5103, %v4664
        %v5112 = vsel %vm901, %v5104, %v4666
        %v5113 = vsel %vm901, %v5105, %v4668
        %v5114 = vsel %vm901, %v5106, %v4670
        %v5115 = vsel %vm901, %v5107, %v4672
        %v5116 = vsel %vm901, %v5108, %v4674
        %v5117 = vsel %vm901, %v5109, %v4676
        %v5118 = vsel %vm901, %v5110, %v4678
        %v5119 = vsel %vm910, %v5111, %v4696
        %v5120 = vsel %vm910, %v5112, %v4698
        %v5121 = vsel %vm910, %v5113, %v4700
        %v5122 = vsel %vm910, %v5114, %v4702
        %v5123 = vsel %vm910, %v5115, %v4704
        %v5124 = vsel %vm910, %v5116, %v4706
        %v5125 = vsel %vm910, %v5117, %v4708
        %v5126 = vsel %vm910, %v5118, %v4710
        %v5127 = vsel %vm919, %v5119, %v4728
        %v5128 = vsel %vm919, %v5120, %v4730
        %v5129 = vsel %vm919, %v5121, %v4732
        %v5130 = vsel %vm919, %v5122, %v4734
        %v5131 = vsel %vm919, %v5123, %v4736
        %v5132 = vsel %vm919, %v5124, %v4738
        %v5133 = vsel %vm919, %v5125, %v4740
        %v5134 = vsel %vm919, %v5126, %v4742
        %v5135 = vsel %vm928, %v5127, %v4760
        %v5136 = vsel %vm928, %v5128, %v4762
        %v5137 = vsel %vm928, %v5129, %v4764
        %v5138 = vsel %vm928, %v5130, %v4766
        %v5139 = vsel %vm928, %v5131, %v4768
        %v5140 = vsel %vm928, %v5132, %v4770
        %v5141 = vsel %vm928, %v5133, %v4772
        %v5142 = vsel %vm928, %v5134, %v4774
        %v5143 = vsel %vm937, %v5135, %v4792
        %v5144 = vsel %vm937, %v5136, %v4794
        %v5145 = vsel %vm937, %v5137, %v4796
        %v5146 = vsel %vm937, %v5138, %v4798
        %v5147 = vsel %vm937, %v5139, %v4800
        %v5148 = vsel %vm937, %v5140, %v4802
        %v5149 = vsel %vm937, %v5141, %v4804
        %v5150 = vsel %vm937, %v5142, %v4806
        %v5151 = vsel %vm946, %v5143, %v4824
        %v5152 = vsel %vm946, %v5144, %v4826
        %v5153 = vsel %vm946, %v5145, %v4828
        %v5154 = vsel %vm946, %v5146, %v4830
        %v5155 = vsel %vm946, %v5147, %v4832
        %v5156 = vsel %vm946, %v5148, %v4834
        %v5157 = vsel %vm946, %v5149, %v4836
        %v5158 = vsel %vm946, %v5150, %v4838
        %v5159 = vsel %vm955, %v5151, %v4856
        %v5160 = vsel %vm955, %v5152, %v4858
        %v5161 = vsel %vm955, %v5153, %v4860
        %v5162 = vsel %vm955, %v5154, %v4862
        %v5163 = vsel %vm955, %v5155, %v4864
        %v5164 = vsel %vm955, %v5156, %v4866
        %v5165 = vsel %vm955, %v5157, %v4868
        %v5166 = vsel %vm955, %v5158, %v4870
        %v5167 = vsel %vm964, %v5159, %v4888
        %v5168 = vsel %vm964, %v5160, %v4890
        %v5169 = vsel %vm964, %v5161, %v4892
        %v5170 = vsel %vm964, %v5162, %v4894
        %v5171 = vsel %vm964, %v5163, %v4896
        %v5172 = vsel %vm964, %v5164, %v4898
        %v5173 = vsel %vm964, %v5165, %v4900
        %v5174 = vsel %vm964, %v5166, %v4902
        %v5175 = vsel %vm973, %v5167, %v4920
        %v5176 = vsel %vm973, %v5168, %v4922
        %v5177 = vsel %vm973, %v5169, %v4924
        %v5178 = vsel %vm973, %v5170, %v4926
        %v5179 = vsel %vm973, %v5171, %v4928
        %v5180 = vsel %vm973, %v5172, %v4930
        %v5181 = vsel %vm973, %v5173, %v4932
        %v5182 = vsel %vm973, %v5174, %v4934
        %v5183 = vsel %vm982, %v5175, %v4952
        %v5184 = vsel %vm982, %v5176, %v4954
        %v5185 = vsel %vm982, %v5177, %v4956
        %v5186 = vsel %vm982, %v5178, %v4958
        %v5187 = vsel %vm982, %v5179, %v4960
        %v5188 = vsel %vm982, %v5180, %v4962
        %v5189 = vsel %vm982, %v5181, %v4964
        %v5190 = vsel %vm982, %v5182, %v4966
        %v5191 = vsel %vm991, %v5183, %v4984
        %v5192 = vsel %vm991, %v5184, %v4986
        %v5193 = vsel %vm991, %v5185, %v4988
        %v5194 = vsel %vm991, %v5186, %v4990
        %v5195 = vsel %vm991, %v5187, %v4992
        %v5196 = vsel %vm991, %v5188, %v4994
        %v5197 = vsel %vm991, %v5189, %v4996
        %v5198 = vsel %vm991, %v5190, %v4998
        %v5199 = vsel %vm1000, %v5191, %v5016
        %v5200 = vsel %vm1000, %v5192, %v5018
        %v5201 = vsel %vm1000, %v5193, %v5020
        %v5202 = vsel %vm1000, %v5194, %v5022
        %v5203 = vsel %vm1000, %v5195, %v5024
        %v5204 = vsel %vm1000, %v5196, %v5026
        %v5205 = vsel %vm1000, %v5197, %v5028
        %v5206 = vsel %vm1000, %v5198, %v5030
        %v5207 = vsel %vm1009, %v5199, %v5048
        %v5208 = vsel %vm1009, %v5200, %v5050
        %v5209 = vsel %vm1009, %v5201, %v5052
        %v5210 = vsel %vm1009, %v5202, %v5054
        %v5211 = vsel %vm1009, %v5203, %v5056
        %v5212 = vsel %vm1009, %v5204, %v5058
        %v5213 = vsel %vm1009, %v5205, %v5060
        %v5214 = vsel %vm1009, %v5206, %v5062
        %v5215 = vsel %vm1018, %v5207, %v5080
        %v5216 = vsel %vm1018, %v5208, %v5082
        %v5217 = vsel %vm1018, %v5209, %v5084
        %v5218 = vsel %vm1018, %v5210, %v5086
        %v5219 = vsel %vm1018, %v5211, %v5088
        %v5220 = vsel %vm1018, %v5212, %v5090
        %v5221 = vsel %vm1018, %v5213, %v5092
        %v5222 = vsel %vm1018, %v5214, %v5094
        %5231 = vrot.lane.b32.xlu0 %v4540, 4
        %v5232 = vpop.permute.xlu0 %5231
        %5233 = vrot.lane.b32.xlu0 %v4541, 4
        %v5234 = vpop.permute.xlu0 %5233
        %5235 = vrot.lane.b32.xlu0 %v4542, 4
        %v5236 = vpop.permute.xlu0 %5235
        %5237 = vrot.lane.b32.xlu0 %v4543, 4
        %v5238 = vpop.permute.xlu0 %5237
        %5239 = vrot.lane.b32.xlu0 %v4544, 4
        %v5240 = vpop.permute.xlu0 %5239
        %5241 = vrot.lane.b32.xlu0 %v4545, 4
        %v5242 = vpop.permute.xlu0 %5241
        %5243 = vrot.lane.b32.xlu0 %v4546, 4
        %v5244 = vpop.permute.xlu0 %5243
        %5245 = vrot.lane.b32.xlu0 %v4547, 4
        %v5246 = vpop.permute.xlu0 %5245
        %5263 = vrot.lane.b32.xlu0 %v4549, 8
        %v5264 = vpop.permute.xlu0 %5263
        %5265 = vrot.lane.b32.xlu0 %v4550, 8
        %v5266 = vpop.permute.xlu0 %5265
        %5267 = vrot.lane.b32.xlu0 %v4551, 8
        %v5268 = vpop.permute.xlu0 %5267
        %5269 = vrot.lane.b32.xlu0 %v4552, 8
        %v5270 = vpop.permute.xlu0 %5269
        %5271 = vrot.lane.b32.xlu0 %v4553, 8
        %v5272 = vpop.permute.xlu0 %5271
        %5273 = vrot.lane.b32.xlu0 %v4554, 8
        %v5274 = vpop.permute.xlu0 %5273
        %5275 = vrot.lane.b32.xlu0 %v4555, 8
        %v5276 = vpop.permute.xlu0 %5275
        %5277 = vrot.lane.b32.xlu0 %v4556, 8
        %v5278 = vpop.permute.xlu0 %5277
        %5295 = vrot.lane.b32.xlu0 %v4557, 12
        %v5296 = vpop.permute.xlu0 %5295
        %5297 = vrot.lane.b32.xlu0 %v4558, 12
        %v5298 = vpop.permute.xlu0 %5297
        %5299 = vrot.lane.b32.xlu0 %v4559, 12
        %v5300 = vpop.permute.xlu0 %5299
        %5301 = vrot.lane.b32.xlu0 %v4560, 12
        %v5302 = vpop.permute.xlu0 %5301
        %5303 = vrot.lane.b32.xlu0 %v4561, 12
        %v5304 = vpop.permute.xlu0 %5303
        %5305 = vrot.lane.b32.xlu0 %v4562, 12
        %v5306 = vpop.permute.xlu0 %5305
        %5307 = vrot.lane.b32.xlu0 %v4563, 12
        %v5308 = vpop.permute.xlu0 %5307
        %5309 = vrot.lane.b32.xlu0 %v4564, 12
        %v5310 = vpop.permute.xlu0 %5309
        %5327 = vrot.lane.b32.xlu0 %v4565, 16
        %v5328 = vpop.permute.xlu0 %5327
        %5329 = vrot.lane.b32.xlu0 %v4566, 16
        %v5330 = vpop.permute.xlu0 %5329
        %5331 = vrot.lane.b32.xlu0 %v4567, 16
        %v5332 = vpop.permute.xlu0 %5331
        %5333 = vrot.lane.b32.xlu0 %v4568, 16
        %v5334 = vpop.permute.xlu0 %5333
        %5335 = vrot.lane.b32.xlu0 %v4569, 16
        %v5336 = vpop.permute.xlu0 %5335
        %5337 = vrot.lane.b32.xlu0 %v4570, 16
        %v5338 = vpop.permute.xlu0 %5337
        %5339 = vrot.lane.b32.xlu0 %v4571, 16
        %v5340 = vpop.permute.xlu0 %5339
        %5341 = vrot.lane.b32.xlu0 %v4572, 16
        %v5342 = vpop.permute.xlu0 %5341
        %5359 = vrot.lane.b32.xlu0 %v4574, 20
        %v5360 = vpop.permute.xlu0 %5359
        %5361 = vrot.lane.b32.xlu0 %v4575, 20
        %v5362 = vpop.permute.xlu0 %5361
        %5363 = vrot.lane.b32.xlu0 %v4576, 20
        %v5364 = vpop.permute.xlu0 %5363
        %5365 = vrot.lane.b32.xlu0 %v4577, 20
        %v5366 = vpop.permute.xlu0 %5365
        %5367 = vrot.lane.b32.xlu0 %v4578, 20
        %v5368 = vpop.permute.xlu0 %5367
        %5369 = vrot.lane.b32.xlu0 %v4579, 20
        %v5370 = vpop.permute.xlu0 %5369
        %5371 = vrot.lane.b32.xlu0 %v4580, 20
        %v5372 = vpop.permute.xlu0 %5371
        %5373 = vrot.lane.b32.xlu0 %v4581, 20
        %v5374 = vpop.permute.xlu0 %5373
        %5391 = vrot.lane.b32.xlu0 %v4582, 24
        %v5392 = vpop.permute.xlu0 %5391
        %5393 = vrot.lane.b32.xlu0 %v4583, 24
        %v5394 = vpop.permute.xlu0 %5393
        %5395 = vrot.lane.b32.xlu0 %v4584, 24
        %v5396 = vpop.permute.xlu0 %5395
        %5397 = vrot.lane.b32.xlu0 %v4585, 24
        %v5398 = vpop.permute.xlu0 %5397
        %5399 = vrot.lane.b32.xlu0 %v4586, 24
        %v5400 = vpop.permute.xlu0 %5399
        %5401 = vrot.lane.b32.xlu0 %v4587, 24
        %v5402 = vpop.permute.xlu0 %5401
        %5403 = vrot.lane.b32.xlu0 %v4588, 24
        %v5404 = vpop.permute.xlu0 %5403
        %5405 = vrot.lane.b32.xlu0 %v4589, 24
        %v5406 = vpop.permute.xlu0 %5405
        %5423 = vrot.lane.b32.xlu0 %v4590, 28
        %v5424 = vpop.permute.xlu0 %5423
        %5425 = vrot.lane.b32.xlu0 %v4591, 28
        %v5426 = vpop.permute.xlu0 %5425
        %5427 = vrot.lane.b32.xlu0 %v4592, 28
        %v5428 = vpop.permute.xlu0 %5427
        %5429 = vrot.lane.b32.xlu0 %v4593, 28
        %v5430 = vpop.permute.xlu0 %5429
        %5431 = vrot.lane.b32.xlu0 %v4594, 28
        %v5432 = vpop.permute.xlu0 %5431
        %5433 = vrot.lane.b32.xlu0 %v4595, 28
        %v5434 = vpop.permute.xlu0 %5433
        %5435 = vrot.lane.b32.xlu0 %v4596, 28
        %v5436 = vpop.permute.xlu0 %5435
        %5437 = vrot.lane.b32.xlu0 %v4597, 28
        %v5438 = vpop.permute.xlu0 %5437
        %5455 = vrot.lane.b32.xlu0 %v4599, 32
        %v5456 = vpop.permute.xlu0 %5455
        %5457 = vrot.lane.b32.xlu0 %v4600, 32
        %v5458 = vpop.permute.xlu0 %5457
        %5459 = vrot.lane.b32.xlu0 %v4601, 32
        %v5460 = vpop.permute.xlu0 %5459
        %5461 = vrot.lane.b32.xlu0 %v4602, 32
        %v5462 = vpop.permute.xlu0 %5461
        %5463 = vrot.lane.b32.xlu0 %v4603, 32
        %v5464 = vpop.permute.xlu0 %5463
        %5465 = vrot.lane.b32.xlu0 %v4604, 32
        %v5466 = vpop.permute.xlu0 %5465
        %5467 = vrot.lane.b32.xlu0 %v4605, 32
        %v5468 = vpop.permute.xlu0 %5467
        %5469 = vrot.lane.b32.xlu0 %v4606, 32
        %v5470 = vpop.permute.xlu0 %5469
        %5487 = vrot.lane.b32.xlu0 %v4607, 36
        %v5488 = vpop.permute.xlu0 %5487
        %5489 = vrot.lane.b32.xlu0 %v4608, 36
        %v5490 = vpop.permute.xlu0 %5489
        %5491 = vrot.lane.b32.xlu0 %v4609, 36
        %v5492 = vpop.permute.xlu0 %5491
        %5493 = vrot.lane.b32.xlu0 %v4610, 36
        %v5494 = vpop.permute.xlu0 %5493
        %5495 = vrot.lane.b32.xlu0 %v4611, 36
        %v5496 = vpop.permute.xlu0 %5495
        %5497 = vrot.lane.b32.xlu0 %v4612, 36
        %v5498 = vpop.permute.xlu0 %5497
        %5499 = vrot.lane.b32.xlu0 %v4613, 36
        %v5500 = vpop.permute.xlu0 %5499
        %5501 = vrot.lane.b32.xlu0 %v4614, 36
        %v5502 = vpop.permute.xlu0 %5501
        %5519 = vrot.lane.b32.xlu0 %v4615, 40
        %v5520 = vpop.permute.xlu0 %5519
        %5521 = vrot.lane.b32.xlu0 %v4616, 40
        %v5522 = vpop.permute.xlu0 %5521
        %5523 = vrot.lane.b32.xlu0 %v4617, 40
        %v5524 = vpop.permute.xlu0 %5523
        %5525 = vrot.lane.b32.xlu0 %v4618, 40
        %v5526 = vpop.permute.xlu0 %5525
        %5527 = vrot.lane.b32.xlu0 %v4619, 40
        %v5528 = vpop.permute.xlu0 %5527
        %5529 = vrot.lane.b32.xlu0 %v4620, 40
        %v5530 = vpop.permute.xlu0 %5529
        %5531 = vrot.lane.b32.xlu0 %v4621, 40
        %v5532 = vpop.permute.xlu0 %5531
        %5533 = vrot.lane.b32.xlu0 %v4622, 40
        %v5534 = vpop.permute.xlu0 %5533
        %v5543 = vsel %vm892, %v4532, %v5232
        %v5544 = vsel %vm892, %v4533, %v5234
        %v5545 = vsel %vm892, %v4534, %v5236
        %v5546 = vsel %vm892, %v4535, %v5238
        %v5547 = vsel %vm892, %v4536, %v5240
        %v5548 = vsel %vm892, %v4537, %v5242
        %v5549 = vsel %vm892, %v4538, %v5244
        %v5550 = vsel %vm892, %v4539, %v5246
        %v5551 = vsel %vm901, %v5543, %v5264
        %v5552 = vsel %vm901, %v5544, %v5266
        %v5553 = vsel %vm901, %v5545, %v5268
        %v5554 = vsel %vm901, %v5546, %v5270
        %v5555 = vsel %vm901, %v5547, %v5272
        %v5556 = vsel %vm901, %v5548, %v5274
        %v5557 = vsel %vm901, %v5549, %v5276
        %v5558 = vsel %vm901, %v5550, %v5278
        %v5559 = vsel %vm910, %v5551, %v5296
        %v5560 = vsel %vm910, %v5552, %v5298
        %v5561 = vsel %vm910, %v5553, %v5300
        %v5562 = vsel %vm910, %v5554, %v5302
        %v5563 = vsel %vm910, %v5555, %v5304
        %v5564 = vsel %vm910, %v5556, %v5306
        %v5565 = vsel %vm910, %v5557, %v5308
        %v5566 = vsel %vm910, %v5558, %v5310
        %v5567 = vsel %vm919, %v5559, %v5328
        %v5568 = vsel %vm919, %v5560, %v5330
        %v5569 = vsel %vm919, %v5561, %v5332
        %v5570 = vsel %vm919, %v5562, %v5334
        %v5571 = vsel %vm919, %v5563, %v5336
        %v5572 = vsel %vm919, %v5564, %v5338
        %v5573 = vsel %vm919, %v5565, %v5340
        %v5574 = vsel %vm919, %v5566, %v5342
        %v5575 = vsel %vm928, %v5567, %v5360
        %v5576 = vsel %vm928, %v5568, %v5362
        %v5577 = vsel %vm928, %v5569, %v5364
        %v5578 = vsel %vm928, %v5570, %v5366
        %v5579 = vsel %vm928, %v5571, %v5368
        %v5580 = vsel %vm928, %v5572, %v5370
        %v5581 = vsel %vm928, %v5573, %v5372
        %v5582 = vsel %vm928, %v5574, %v5374
        %v5583 = vsel %vm937, %v5575, %v5392
        %v5584 = vsel %vm937, %v5576, %v5394
        %v5585 = vsel %vm937, %v5577, %v5396
        %v5586 = vsel %vm937, %v5578, %v5398
        %v5587 = vsel %vm937, %v5579, %v5400
        %v5588 = vsel %vm937, %v5580, %v5402
        %v5589 = vsel %vm937, %v5581, %v5404
        %v5590 = vsel %vm937, %v5582, %v5406
        %v5591 = vsel %vm946, %v5583, %v5424
        %v5592 = vsel %vm946, %v5584, %v5426
        %v5593 = vsel %vm946, %v5585, %v5428
        %v5594 = vsel %vm946, %v5586, %v5430
        %v5595 = vsel %vm946, %v5587, %v5432
        %v5596 = vsel %vm946, %v5588, %v5434
        %v5597 = vsel %vm946, %v5589, %v5436
        %v5598 = vsel %vm946, %v5590, %v5438
        %v5599 = vsel %vm955, %v5591, %v5456
        %v5600 = vsel %vm955, %v5592, %v5458
        %v5601 = vsel %vm955, %v5593, %v5460
        %v5602 = vsel %vm955, %v5594, %v5462
        %v5603 = vsel %vm955, %v5595, %v5464
        %v5604 = vsel %vm955, %v5596, %v5466
        %v5605 = vsel %vm955, %v5597, %v5468
        %v5606 = vsel %vm955, %v5598, %v5470
        %v5607 = vsel %vm964, %v5599, %v5488
        %v5608 = vsel %vm964, %v5600, %v5490
        %v5609 = vsel %vm964, %v5601, %v5492
        %v5610 = vsel %vm964, %v5602, %v5494
        %v5611 = vsel %vm964, %v5603, %v5496
        %v5612 = vsel %vm964, %v5604, %v5498
        %v5613 = vsel %vm964, %v5605, %v5500
        %v5614 = vsel %vm964, %v5606, %v5502
        %v5615 = vsel %vm973, %v5607, %v5520
        %v5616 = vsel %vm973, %v5608, %v5522
        %v5617 = vsel %vm973, %v5609, %v5524
        %v5618 = vsel %vm973, %v5610, %v5526
        %v5619 = vsel %vm973, %v5611, %v5528
        %v5620 = vsel %vm973, %v5612, %v5530
        %v5621 = vsel %vm973, %v5613, %v5532
        %v5622 = vsel %vm973, %v5614, %v5534
        %5631 = vrot.lane.b32.xlu0 %v5615, 64
        %v5632 = vpop.permute.xlu0 %5631
        %5633 = vrot.lane.b32.xlu0 %v5616, 64
        %v5634 = vpop.permute.xlu0 %5633
        %5635 = vrot.lane.b32.xlu0 %v5617, 64
        %v5636 = vpop.permute.xlu0 %5635
        %5637 = vrot.lane.b32.xlu0 %v5618, 64
        %v5638 = vpop.permute.xlu0 %5637
        %5639 = vrot.lane.b32.xlu0 %v5619, 64
        %v5640 = vpop.permute.xlu0 %5639
        %5641 = vrot.lane.b32.xlu0 %v5620, 64
        %v5642 = vpop.permute.xlu0 %5641
        %5643 = vrot.lane.b32.xlu0 %v5621, 64
        %v5644 = vpop.permute.xlu0 %5643
        %5645 = vrot.lane.b32.xlu0 %v5622, 64
        %v5646 = vpop.permute.xlu0 %5645
        %v5655 = vsel %vm1459, %v5215, %v5632
        %v5656 = vsel %vm1459, %v5216, %v5634
        %v5657 = vsel %vm1459, %v5217, %v5636
        %v5658 = vsel %vm1459, %v5218, %v5638
        %v5659 = vsel %vm1459, %v5219, %v5640
        %v5660 = vsel %vm1459, %v5220, %v5642
        %v5661 = vsel %vm1459, %v5221, %v5644
        %v5662 = vsel %vm1459, %v5222, %v5646
        %v5664 = vsel %vm1468, %v5655, 0
        %v5667 = vsel %vm1468, %v5656, 0
        %v5670 = vsel %vm1468, %v5657, 0
        %v5673 = vsel %vm1468, %v5658, 0
        %v5676 = vsel %vm1468, %v5659, 0
        %v5679 = vsel %vm1468, %v5660, 0
        %v5682 = vsel %vm1468, %v5661, 0
        %v5685 = vsel %vm1468, %v5662, 0
        %5687 = vmatprep.subr.mxu0 0.0
        %5688 = vmatpush1.msra.mxu0 0.0
        %5689 = vmatprep.subr.mxu0 0.0
        %5690 = vmatpush1.msra.mxu0 0.0
        %5691 = vmatprep.subr.mxu0 0.0
        %5692 = vmatpush1.msra.mxu0 %v1495
        %5693 = vmatprep.subr.mxu0 0.0
        %5694 = vmatpush1.msra.mxu0 %v186
        %5695 = vmatprep.subr.mxu0 0.0
        %5696 = vmatpush1.msra.mxu0 %v185
        %5697 = vmatprep.subr.mxu0 0.0
        %5698 = vmatpush1.msra.mxu0 %v184
        %5699 = vmatprep.subr.mxu0 0.0
        %5700 = vmatpush1.msra.mxu0 %v183
        %5701 = vmatprep.subr.mxu0 0.0
        %5702 = vmatpush1.msra.mxu0 %v182
        %5703 = vmatprep.subr.mxu0 0.0
        %5704 = vmatpush1.msra.mxu0 %v181
        %5705 = vmatprep.subr.mxu0 0.0
        %5706 = vmatpush1.msra.mxu0 %v180
        %5707 = vmatprep.subr.mxu0 0.0
        %5708 = vmatpush1.msra.mxu0 %v179
        %5709 = vmatprep.subr.mxu0 0.0
        %5710 = vmatpush1.msra.mxu0 %v178
        %5711 = vmatprep.subr.mxu0 0.0
        %5712 = vmatpush1.msra.mxu0 %v177
        %5713 = vmatprep.subr.mxu0 0.0
        %5714 = vmatpush1.msra.mxu0 %v176
        %5715 = vmatprep.subr.mxu0 0.0
        %5716 = vmatpush1.msra.mxu0 %v175
        %5717 = vmatprep.subr.mxu0 0.0
        %5718 = vmatpush1.msra.mxu0 %v174
        %5719 = vmatprep.subr.mxu0 0.0
        %5720 = vmatpush2.msra.mxu0 0.0
        %5721 = vmatprep.subr.mxu0 0.0
        %5722 = vmatpush2.msra.mxu0 0.0
        %5723 = vmatprep.subr.mxu0 0.0
        %5724 = vmatpush2.msra.mxu0 0.0
        %5725 = vmatprep.subr.mxu0 0.0
        %5726 = vmatpush2.msra.mxu0 0.0
        %5727 = vmatprep.subr.mxu0 0.0
        %5728 = vmatpush2.msra.mxu0 0.0
        %5729 = vmatprep.subr.mxu0 0.0
        %5730 = vmatpush2.msra.mxu0 0.0
        %5731 = vmatprep.subr.mxu0 0.0
        %5732 = vmatpush2.msra.mxu0 0.0
        %5733 = vmatprep.subr.mxu0 0.0
        %5734 = vmatpush2.msra.mxu0 0.0
        %5735 = vmatprep.subr.mxu0 0.0
        %5736 = vmatpush2.msra.mxu0 0.0
        %5737 = vmatprep.subr.mxu0 0.0
        %5738 = vmatpush2.msra.mxu0 0.0
        %5739 = vmatprep.subr.mxu0 0.0
        %5740 = vmatpush2.msra.mxu0 0.0
        %5741 = vmatprep.subr.mxu0 0.0
        %5742 = vmatpush2.msra.mxu0 0.0
        %5743 = vmatprep.subr.mxu0 0.0
        %5744 = vmatpush2.msra.mxu0 0.0
        %5745 = vmatprep.subr.mxu0 0.0
        %5746 = vmatpush2.msra.mxu0 0.0
        %5747 = vmatprep.subr.mxu0 0.0
        %5748 = vmatpush2.msra.mxu0 0.0
        %5749 = vmatprep.subr.mxu0 0.0
        %5750 = vmatpush2.msra.mxu0 0.0
        %5751 = vmatprep.mubr.f32.mxu0 0.0
        %5752 = vmatmul.mubr.f32.gmra.mxu0 %v5664
        %v5753 = vpop.f32.mrf.mxu0
        %v5754 = vadd.f32 0.0, %v5753
        %v5755 = vpop.f32.mrf.mxu0
        %5756 = vmatprep.mubr.f32.mxu0 0.0
        %5757 = vmatmul.mubr.f32.gmra.mxu0 %v5667
        %v5758 = vpop.f32.mrf.mxu0
        %v5759 = vadd.f32 0.0, %v5758
        %v5760 = vpop.f32.mrf.mxu0
        %5761 = vmatprep.mubr.f32.mxu0 0.0
        %5762 = vmatmul.mubr.f32.gmra.mxu0 %v5670
        %v5763 = vpop.f32.mrf.mxu0
        %v5764 = vadd.f32 0.0, %v5763
        %v5765 = vpop.f32.mrf.mxu0
        %5766 = vmatprep.mubr.f32.mxu0 0.0
        %5767 = vmatmul.mubr.f32.gmra.mxu0 %v5673
        %v5768 = vpop.f32.mrf.mxu0
        %v5769 = vadd.f32 0.0, %v5768
        %v5770 = vpop.f32.mrf.mxu0
        %5771 = vmatprep.mubr.f32.mxu0 0.0
        %5772 = vmatmul.mubr.f32.gmra.mxu0 %v5676
        %v5773 = vpop.f32.mrf.mxu0
        %v5774 = vadd.f32 0.0, %v5773
        %v5775 = vpop.f32.mrf.mxu0
        %5776 = vmatprep.mubr.f32.mxu0 0.0
        %5777 = vmatmul.mubr.f32.gmra.mxu0 %v5679
        %v5778 = vpop.f32.mrf.mxu0
        %v5779 = vadd.f32 0.0, %v5778
        %v5780 = vpop.f32.mrf.mxu0
        %5781 = vmatprep.mubr.f32.mxu0 0.0
        %5782 = vmatmul.mubr.f32.gmra.mxu0 %v5682
        %v5783 = vpop.f32.mrf.mxu0
        %v5784 = vadd.f32 0.0, %v5783
        %v5785 = vpop.f32.mrf.mxu0
        %5786 = vmatprep.mubr.f32.mxu0 0.0
        %5787 = vmatmul.mubr.f32.gmra.mxu0 %v5685
        %v5788 = vpop.f32.mrf.mxu0
        %v5789 = vadd.f32 0.0, %v5788
        %v5790 = vpop.f32.mrf.mxu0
        %5791 = vdwg.mxu0
        %s5792 = scalar_lea.vmem %s162, 192 [#allocation2]
        %5793 = vst [vmem:[%s5792] sm:$0xff] %v5754
        %5794 = vst [vmem:[%s5792 + $0x8] sm:$0xff] %v5759
        %5795 = vst [vmem:[%s5792 + $0x10] sm:$0xff] %v5764
        %5796 = vst [vmem:[%s5792 + $0x18] sm:$0xff] %v5769
        %5797 = vst [vmem:[%s5792 + $0x20] sm:$0xff] %v5774
        %5798 = vst [vmem:[%s5792 + $0x28] sm:$0xff] %v5779
        %5799 = vst [vmem:[%s5792 + $0x30] sm:$0xff] %v5784
        %5800 = vst [vmem:[%s5792 + $0x38] sm:$0xff] %v5789
        %s5801 = sand.u32 %s91, 1
        %s5802 = scalar_lea.sflag [#allocation3], %s5801
        %s5803 = sand.u32 %s91, 1
        %s5804 = smul.addr %s5803, 256
        %s5805 = scalar_lea.vmem [#allocation2], %s5804
        // Predicated region
        $region29: #{tpu_custom_call.1} parent=27 // pred_check
          %p5806 = pneg %p101
        $region30: #{tpu_custom_call.1} parent=27 // pred_check_branch
          %5808 = sbr.rel (%p5806) target = $region32
        $region31: #{tpu_custom_call.1} parent=27 // pred_region
          %s5809 = smul.u32 %s20, 2
          %s5810 = sadd.s32 %s5809, %s21
          %s5812 = ssub.s32 4096, 4096
          %5813 = vsyncadd %s5802, %s5812
          %s5814 = smul.addr %s5810, 32
          %s5815 = smul.addr %s5814, 128
          %s5816 = scalar_lea.hbm %s2, %s5815
          %s5817 = sshll.u32 %s5805, 4
          %s5818 = int_to_ptr.vmem [resolvable:$true] %s5817
          %5823 = dma.vmem_to_hbm [thread:$0]  %s5818, 4096, %s5816, %s5802, 128, 128, 8
        $region32: #{tpu_custom_call.1} parent=27 // pred_fallthru
          _
      $region28: #{tpu_custom_call.1} parent=5 // pred_fallthru
        _
      %p5824 = scmp.le.s32.totalorder 2, %s11
      // Predicated region
      $region33: #{tpu_custom_call.1} parent=5 // pred_check
        %p5825 = pneg %p5824
      $region34: #{tpu_custom_call.1} parent=5 // pred_check_branch
        %5827 = sbr.rel (%p5825) target = $region36
      $region35: #{tpu_custom_call.1} parent=5 // pred_region
        %s5828 = ssub.s32 %s11, 2
        // Predicated region
        $region37: #{tpu_custom_call.1} parent=35 // pred_check
          %p5829 = pneg %p107
        $region38: #{tpu_custom_call.1} parent=35 // pred_check_branch
          %5831 = sbr.rel (%p5829) target = $region40
        $region39: #{tpu_custom_call.1} parent=35 // pred_region
          %s5832 = sand.u32 %s92, 1
          %s5833 = scalar_lea.sflag [#allocation3], %s5832
          %s5834 = sand.u32 %s92, 1
          %s5835 = smul.addr %s5834, 256
          %s5836 = scalar_lea.vmem [#allocation2], %s5835
          %5837 = dma.done %s5833, 4096
        $region40: #{tpu_custom_call.1} parent=35 // pred_fallthru
          _
      $region36: #{tpu_custom_call.1} parent=5 // pred_fallthru
        _
    $region6: #{tpu_custom_call.1} parent=1 // loop_footer
      %s15 = sadd.s32 1, %s11
    $region7: #{tpu_custom_call.1} parent=1 // loop_footer_branch
      %10 = sbr.rel target = $region3
    $region8: #{tpu_custom_call.1} parent=1 // loop_exit
      _
    %5838 = vsyncpa [#allocation3], 1
    %s5839 = scalar_lea.sflag [#allocation3], 1
    %5840 = vsyncpa %s5839, 1

</llo_original>
